<compile_context>
chip_gen: v5e
topology: v5e:2x2
jax: 0.10.0
libtpu: 0.0.40
codegen_flags: <defaults>
</compile_context>

<pallas_src>
import jax
import jax.numpy as jnp
from jax.experimental import pallas as pl
from jax.experimental.pallas import tpu as pltpu

BN_EPS = 1e-5
LANE = 128
DEFAULT_TM = 1024                      # rows per M tile (multiple of 8)
VMEM_LIMIT = 48 * 1024 * 1024          # <= v7x per-TC VMEM; headroom on v5e/v6e


def _round_up(x, m):
    return (x + m - 1) // m * m


def _choose_tiling(m, cap=DEFAULT_TM):
    """Pick (tm, m_pad) for the flat-row kernels.

    Prefers a tile that divides M exactly (no zero-pad copy of the operand) and
    leaves >= 2 grid steps (keeps both v7x TensorCores busy and preserves input /
    output double-buffering).  Falls back to padding only if M has no
    multiple-of-8 divisor."""
    best = 0
    t = 8
    lim = min(cap, m)
    while t <= lim:
        if m % t == 0 and (m // t >= 2 or best == 0):
            best = t
        t += 8
    if best:
        return best, m
    m_pad = _round_up(m, 8)
    tm = min(cap, max(8, _round_up((m_pad + 1) // 2, 8)))
    return tm, _round_up(m_pad, tm)


# ---------------------------------------------------------------------------
# Kernel 1: fused branch-opening 1x1 convs as one wide GEMM
#           + per-channel bias + masked ReLU + per-tile per-channel sum/sumsq
# ---------------------------------------------------------------------------
def _stem_kernel(x_ref, w_ref, bias_ref, mask_ref, y_ref, st_ref):
    # x_ref: (TM, K) bf16   w_ref: (K, Cp) bf16 resident   bias/mask: (1, Cp) f32
    y = jnp.dot(x_ref[...], w_ref[...], preferred_element_type=jnp.float32)
    y = y + bias_ref[...]
    y = jnp.where(mask_ref[...] > 0.0, jnp.maximum(y, 0.0), y)   # ReLU where mask==1
    y_ref[...] = y.astype(y_ref.dtype)                            # bf16 writeback
    # Stats accumulate the pre-cast fp32 values (closest to the reference module).
    st_ref[0, 0:1, :] = jnp.sum(y, axis=0, keepdims=True)
    st_ref[0, 1:2, :] = jnp.sum(y * y, axis=0, keepdims=True)


def _stem_gemm(x_flat, w_mat, bias, relu_mask, *, tm, m_pad):
    """(M, K) @ (K, C) + bias, masked ReLU.  Output y is bf16, stats fp32.

    NOTE (stat invariant): if M is padded, the padded rows contribute 0 to the
    stats because every stat-consuming column has bias == 0 and ReLU(0) == 0.
    With the divisor-based tiling there normally are no padded rows at all.
    NOTE (variance): cross-tile reduction uses E[x^2]-E[x]^2 in fp32; for very
    large batches a Welford/M2 accumulation would be more robust."""
    M, K = x_flat.shape
    C = w_mat.shape[1]
    Cp = _round_up(max(C, LANE), LANE)
    n_tiles = m_pad // tm

    x_in = x_flat.astype(jnp.bfloat16)
    if m_pad != M:
        x_in = jnp.zeros((m_pad, K), jnp.bfloat16).at[:M].set(x_in)
    w_p = jnp.zeros((K, Cp), jnp.bfloat16).at[:, :C].set(w_mat.astype(jnp.bfloat16))
    bias_p = jnp.zeros((1, Cp), jnp.float32).at[0, :C].set(bias.astype(jnp.float32))
    mask_p = jnp.zeros((1, Cp), jnp.float32).at[0, :C].set(relu_mask.astype(jnp.float32))

    y, stats = pl.pallas_call(
        _stem_kernel,
        grid=(n_tiles,),
        in_specs=[
            pl.BlockSpec((tm, K), lambda i: (i, 0)),      # streamed M tiles
            pl.BlockSpec((K, Cp), lambda i: (0, 0)),      # resident weights
            pl.BlockSpec((1, Cp), lambda i: (0, 0)),
            pl.BlockSpec((1, Cp), lambda i: (0, 0)),
        ],
        out_specs=[
            pl.BlockSpec((tm, Cp), lambda i: (i, 0)),
            pl.BlockSpec((1, 2, Cp), lambda i: (i, 0, 0)),
        ],
        out_shape=[
            jax.ShapeDtypeStruct((m_pad, Cp), jnp.bfloat16),
            jax.ShapeDtypeStruct((n_tiles, 2, Cp), jnp.float32),
        ],
        compiler_params=pltpu.CompilerParams(
            dimension_semantics=("parallel",),
            vmem_limit_bytes=VMEM_LIMIT,
        ),
        cost_estimate=pl.CostEstimate(
            flops=2 * m_pad * K * Cp, transcendentals=0,
            bytes_accessed=m_pad * K * 2 + K * Cp * 2 + m_pad * Cp * 2),
    )(x_in, w_p, bias_p, mask_p)

    sums = jnp.sum(stats[:, 0, :C], axis=0)
    sumsq = jnp.sum(stats[:, 1, :C], axis=0)
    return y, sums, sumsq


# ---------------------------------------------------------------------------
# Kernel 2: per-tap 3x3 'same' conv + ReLU on halo'd per-image blocks (no im2col)
#           + per-image per-channel sum/sumsq
# ---------------------------------------------------------------------------
def _make_conv3x3_kernel(H, W):
    def kernel(x_ref, w_ref, y_ref, st_ref, xp_ref):
        # x_ref : (1, H+2, W+2, Cin) bf16 halo'd input block (one image)
        # w_ref : (9, Cin, Coutp)    bf16 per-tap weights, resident
        # xp_ref: (H+2, W+2, Cin)    f32 VMEM scratch — slicing the f32 (8,128)
        #         layout keeps the shifted-window loads on the plain 32-bit path.
        xp_ref[...] = x_ref[0].astype(jnp.float32)
        cin = xp_ref.shape[-1]
        cout = w_ref.shape[-1]
        acc = jnp.zeros((H * W, cout), jnp.float32)
        for dy in range(3):
            for dx in range(3):
                patch = xp_ref[dy:dy + H, dx:dx + W, :].reshape(H * W, cin)
                acc = acc + jnp.dot(patch.astype(jnp.bfloat16),
                                    w_ref[dy * 3 + dx],
                                    preferred_element_type=jnp.float32)
        acc = jnp.maximum(acc, 0.0)                        # ReLU
        y_ref[...] = acc.astype(y_ref.dtype)[None]
        st_ref[0, 0:1, :] = jnp.sum(acc, axis=0, keepdims=True)
        st_ref[0, 1:2, :] = jnp.sum(acc * acc, axis=0, keepdims=True)
    return kernel


def _conv3x3(x_halo, w_taps, *, H, W):
    """x_halo: (N, H+2, W+2, Cin) bf16, w_taps: (9, Cin, Coutp) bf16.
    Returns (y_flat (N*H*W, Coutp) bf16, sums (Coutp,), sumsq (Coutp,))."""
    N, _, _, Cin = x_halo.shape
    Coutp = w_taps.shape[2]

    y, stats = pl.pallas_call(
        _make_conv3x3_kernel(H, W),
        grid=(N,),
        in_specs=[
            pl.BlockSpec((1, H + 2, W + 2, Cin), lambda n: (n, 0, 0, 0)),
            pl.BlockSpec((9, Cin, Coutp), lambda n: (0, 0, 0)),   # resident
        ],
        out_specs=[
            pl.BlockSpec((1, H * W, Coutp), lambda n: (n, 0, 0)),
            pl.BlockSpec((1, 2, Coutp), lambda n: (n, 0, 0)),
        ],
        out_shape=[
            jax.ShapeDtypeStruct((N, H * W, Coutp), jnp.bfloat16),
            jax.ShapeDtypeStruct((N, 2, Coutp), jnp.float32),
        ],
        scratch_shapes=[pltpu.VMEM((H + 2, W + 2, Cin), jnp.float32)],
        compiler_params=pltpu.CompilerParams(
            dimension_semantics=("parallel",),
            vmem_limit_bytes=VMEM_LIMIT,
        ),
        cost_estimate=pl.CostEstimate(
            flops=2 * 9 * N * H * W * Cin * Coutp, transcendentals=0,
            bytes_accessed=N * ((H + 2) * (W + 2) * Cin * 2 + H * W * Coutp * 2)
                           + 9 * Cin * Coutp * 2),
    )(x_halo, w_taps)

    return (y.reshape(N * H * W, Coutp),
            jnp.sum(stats[:, 0, :], axis=0),
            jnp.sum(stats[:, 1, :], axis=0))


# ---------------------------------------------------------------------------
# Kernel 3: finalize — folded (inner BN o final BN) per-channel scale/bias,
#           lane-dense slabs only.
# ---------------------------------------------------------------------------
def _finalize_kernel(x1_ref, x2_ref, x3_ref,
                     s1_ref, t1_ref, s2_ref, t2_ref, s3_ref, t3_ref,
                     o1_ref, o2_ref, o3_ref):
    o1_ref[...] = x1_ref[...].astype(jnp.float32) * s1_ref[...] + t1_ref[...]
    o2_ref[...] = x2_ref[...].astype(jnp.float32) * s2_ref[...] + t2_ref[...]
    o3_ref[...] = x3_ref[...].astype(jnp.float32) * s3_ref[...] + t3_ref[...]


def _finalize(slabs, scales, shifts, *, tm, m_pad):
    n_tiles = m_pad // tm
    widths = [s.shape[1] for s in slabs]
    slabs = [s if s.shape[0] == m_pad else
             jnp.zeros((m_pad, s.shape[1]), s.dtype).at[:s.shape[0]].set(s)
             for s in slabs]
    vecs = []
    for s, t in zip(scales, shifts):
        vecs += [s.reshape(1, -1).astype(jnp.float32),
                 t.reshape(1, -1).astype(jnp.float32)]

    def mspec(w):
        return pl.BlockSpec((tm, w), lambda i: (i, 0))

    def vspec(w):
        return pl.BlockSpec((1, w), lambda i: (0, 0))

    return pl.pallas_call(
        _finalize_kernel,
        grid=(n_tiles,),
        in_specs=[mspec(w) for w in widths]
                 + [vspec(w) for w in widths for _ in (0, 1)],
        out_specs=[mspec(w) for w in widths],
        out_shape=[jax.ShapeDtypeStruct((m_pad, w), jnp.float32) for w in widths],
        compiler_params=pltpu.CompilerParams(
            dimension_semantics=("parallel",),
            vmem_limit_bytes=VMEM_LIMIT,
        ),
    )(*slabs, *vecs)


# ---------------------------------------------------------------------------
# JAX glue: weight layout / halo pad (with fused BN affine)
# ---------------------------------------------------------------------------
def _conv1x1_weight_to_mat(w):
    # PyTorch (C_out, C_in, 1, 1) -> (C_in, C_out)
    return jnp.transpose(w[:, :, 0, 0], (1, 0))


def _conv3x3_weight_block(entries, c_in_p, c_out_p):
    """entries: list of (w, row_off, col_off); w is PyTorch (C_out, C_in, 3, 3).
    Returns (9, c_in_p, c_out_p) bf16 tap-major weights; unused rows/cols are 0,
    so the kernel can consume the full-width input slab without lane slicing."""
    wt = jnp.zeros((9, c_in_p, c_out_p), jnp.float32)
    for w, ro, co in entries:
        c_out, c_in = w.shape[0], w.shape[1]
        wm = jnp.transpose(w, (2, 3, 1, 0)).reshape(9, c_in, c_out)
        wt = wt.at[:, ro:ro + c_in, co:co + c_out].set(wm.astype(jnp.float32))
    return wt.astype(jnp.bfloat16)


def _affine_halo_pad(slab, scale, shift, *, N, H, W):
    """(M, C) bf16 slab -> (N, H+2, W+2, C) bf16 halo'd block.

    The inner-BN per-channel affine is fused into this (single) pad pass, so it
    costs no extra HBM round trip; the halo itself is zero (matching ZeroPad2d
    applied to the BN output in the reference module)."""
    C = slab.shape[1]
    u = slab.reshape(N, H, W, C).astype(jnp.float32) * scale + shift
    return jnp.pad(u.astype(jnp.bfloat16), ((0, 0), (1, 1), (1, 1), (0, 0)))


# ---------------------------------------------------------------------------
# Multi_2D_CNN_block forward
# ---------------------------------------------------------------------------
def multi_2d_cnn_block(x, params, num_kernel, *, tm_cap=DEFAULT_TM):
    """x: (N, C_in, H, W) float32 NCHW.  Returns (N, out_channels, H, W) float32."""
    N, C_in, H, W = x.shape
    nk = num_kernel
    ca, cb1, cb2 = int(nk / 3), int(nk / 2), int(nk)
    cc1, cc2, cc3 = int(nk / 3), int(nk / 2), int(nk)
    cd = int(nk / 3)
    c_total = ca + cb2 + cc3 + cd

    M = N * H * W
    tm, m_pad = _choose_tiling(M, tm_cap)
    count = float(M)

    # NHWC puts channels on the 128-lane axis.
    x_flat = jnp.transpose(x, (0, 2, 3, 1)).reshape(M, C_in).astype(jnp.float32)

    # --- tiny per-channel BN math (plain JAX on C-length vectors) ------------
    def mv(sums, sumsq):
        mean = sums / count
        var = jnp.maximum(sumsq / count - mean * mean, 0.0)   # biased (training) var
        return mean, var

    def bn_affine(mean, var, gamma, beta):
        scale = gamma * jax.lax.rsqrt(var + BN_EPS)
        return scale, beta - mean * scale

    def compose_bn(mean_z, var_z, g1, b1, g2, b2):
        # (final BN) o (inner BN), folded to one scale/bias pair.
        s1, t1 = bn_affine(mean_z, var_z, g1, b1)
        mean_u = s1 * mean_z + t1
        var_u = s1 * s1 * var_z
        s2, t2 = bn_affine(mean_u, var_u, g2, b2)
        return s1 * s2, t1 * s2 + t2

    gf, bf_ = params["gamma_f"], params["beta_f"]

    # --- fused stem: the four branch-opening 1x1 convs as ONE wide GEMM ------
    # Column order [b1 | c1 | a | d] (the 3x3-conv inputs form the prefix).
    o_b1, o_c1, o_a, o_d = 0, cb1, cb1 + cc1, cb1 + cc1 + ca
    c_stem = cb1 + cc1 + ca + cd
    w_stem = jnp.concatenate(
        [_conv1x1_weight_to_mat(params["wb1"]),
         _conv1x1_weight_to_mat(params["wc1"]),
         _conv1x1_weight_to_mat(params["wa"]),
         _conv1x1_weight_to_mat(params["wd"])], axis=1)
    bias_stem = jnp.zeros((c_stem,), jnp.float32).at[o_d:o_d + cd].set(params["bd"])
    relu_stem = jnp.ones((c_stem,), jnp.float32).at[o_d:o_d + cd].set(0.0)  # d: no ReLU

    stem_y, stem_sum, stem_sq = _stem_gemm(x_flat, w_stem, bias_stem, relu_stem,
                                           tm=tm, m_pad=m_pad)
    Cp_stem = stem_y.shape[1]
    stem_y = stem_y[:M]

    # --- BN affines of the stem outputs ---------------------------------------
    mean_b1, var_b1 = mv(stem_sum[o_b1:o_b1 + cb1], stem_sq[o_b1:o_b1 + cb1])
    s_b1, t_b1 = bn_affine(mean_b1, var_b1, params["gb1"], params["bb1"])
    mean_c1, var_c1 = mv(stem_sum[o_c1:o_c1 + cc1], stem_sq[o_c1:o_c1 + cc1])
    s_c1, t_c1 = bn_affine(mean_c1, var_c1, params["gc1"], params["bc1"])
    mean_a, var_a = mv(stem_sum[o_a:o_a + ca], stem_sq[o_a:o_a + ca])
    s_a, t_a = compose_bn(mean_a, var_a, params["ga"], params["ba"],
                          gf[0:ca], bf_[0:ca])

    # --- conv1: branch-b 3x3 and branch-c first 3x3, fused (shared input) -----
    scale1 = jnp.zeros((Cp_stem,), jnp.float32)
    scale1 = scale1.at[o_b1:o_b1 + cb1].set(s_b1).at[o_c1:o_c1 + cc1].set(s_c1)
    shift1 = jnp.zeros((Cp_stem,), jnp.float32)
    shift1 = shift1.at[o_b1:o_b1 + cb1].set(t_b1).at[o_c1:o_c1 + cc1].set(t_c1)
    halo1 = _affine_halo_pad(stem_y, scale1, shift1, N=N, H=H, W=W)

    c_out1 = cb2 + cc2                        # output order [b2 | c2]
    Cp1 = _round_up(max(c_out1, LANE), LANE)
    w1 = _conv3x3_weight_block(
        [(params["wb2"], o_b1, 0), (params["wc2"], o_c1, cb2)], Cp_stem, Cp1)
    y1, sum1, sq1 = _conv3x3(halo1, w1, H=H, W=W)

    mean_b2, var_b2 = mv(sum1[0:cb2], sq1[0:cb2])
    s_b, t_b = compose_bn(mean_b2, var_b2, params["gb2"], params["bb2"],
                          gf[ca:ca + cb2], bf_[ca:ca + cb2])
    mean_c2, var_c2 = mv(sum1[cb2:cb2 + cc2], sq1[cb2:cb2 + cc2])
    s_c2, t_c2 = bn_affine(mean_c2, var_c2, params["gc2"], params["bc2"])

    # --- conv2: branch-c second 3x3 --------------------------------------------
    scale2 = jnp.zeros((Cp1,), jnp.float32).at[cb2:cb2 + cc2].set(s_c2)
    shift2 = jnp.zeros((Cp1,), jnp.float32).at[cb2:cb2 + cc2].set(t_c2)
    halo2 = _affine_halo_pad(y1, scale2, shift2, N=N, H=H, W=W)
    Cp2 = _round_up(max(cc3, LANE), LANE)
    w2 = _conv3x3_weight_block([(params["wc3"], cb2, 0)], Cp1, Cp2)
    y2, sum2, sq2 = _conv3x3(halo2, w2, H=H, W=W)
    mean_c3, var_c3 = mv(sum2[0:cc3], sq2[0:cc3])
    s_c, t_c = compose_bn(mean_c3, var_c3, params["gc3"], params["bc3"],
                          gf[ca + cb2:ca + cb2 + cc3], bf_[ca + cb2:ca + cb2 + cc3])

    # --- branch d: (bias 1x1 conv already in stem) -> 3x3/s1/p1 max pool -------
    zd = stem_y[:, o_d:o_d + cd].reshape(N, H, W, cd).astype(jnp.float32)
    pooled = jax.lax.reduce_window(
        zd, -jnp.inf, jax.lax.max,
        window_dimensions=(1, 3, 3, 1), window_strides=(1, 1, 1, 1),
        padding=((0, 0), (1, 1), (1, 1), (0, 0)))
    pooled_flat = pooled.reshape(M, cd)
    mean_d = jnp.mean(pooled_flat, axis=0)
    var_d = jnp.mean(jnp.square(pooled_flat - mean_d[None, :]), axis=0)
    d0 = ca + cb2 + cc3
    s_d, t_d = bn_affine(mean_d, var_d, gf[d0:d0 + cd], bf_[d0:d0 + cd])

    # --- single fused, lane-dense normalize pass -------------------------------
    # Branches a (width ca) and d (width cd) are packed into one 128-wide slab so
    # every finalize input/output block is lane-dense (unmasked stores).
    Cad = LANE
    ad_slab = jnp.zeros((M, Cad), jnp.bfloat16)
    ad_slab = ad_slab.at[:, :ca].set(stem_y[:, o_a:o_a + ca])
    ad_slab = ad_slab.at[:, ca:ca + cd].set(pooled_flat.astype(jnp.bfloat16))

    def padvec(v, width):
        return jnp.zeros((width,), jnp.float32).at[:v.shape[0]].set(v)

    s_ad = padvec(s_a, Cad).at[ca:ca + cd].set(s_d)
    t_ad = padvec(t_a, Cad).at[ca:ca + cd].set(t_d)

    out_ad, out_b, out_c = _finalize(
        [ad_slab, y1, y2],
        [s_ad, padvec(s_b, y1.shape[1]), padvec(s_c, y2.shape[1])],
        [t_ad, padvec(t_b, y1.shape[1]), padvec(t_c, y2.shape[1])],
        tm=tm, m_pad=m_pad)

    # --- layout epilogue: channel concat + NHWC -> NCHW (one fused XLA pass) ---
    final = jnp.concatenate(
        [out_ad[:M, :ca], out_b[:M, :cb2], out_c[:M, :cc3],
         out_ad[:M, ca:ca + cd]], axis=1)
    return jnp.transpose(final.reshape(N, H, W, c_total), (0, 3, 1, 2))


if __name__ == "__main__":
    key = jax.random.PRNGKey(0)
    N, C_in, H, W = 2, 4, 16, 16
    num_kernel = 16
    nk = num_kernel
    ca, cb1, cb2 = int(nk / 3), int(nk / 2), int(nk)
    cc1, cc2, cc3 = int(nk / 3), int(nk / 2), int(nk)
    cd = int(nk / 3)
    c_total = ca + cb2 + cc3 + cd            # == output_channels(num_kernel)

    ks = jax.random.split(key, 24)

    def rnd(k, shape, scale=0.1):
        return scale * jax.random.normal(k, shape, dtype=jnp.float32)

    params = {
        # branch a: BasicConv2d(in, nk//3, 1x1)
        "wa": rnd(ks[0], (ca, C_in, 1, 1)),
        "ga": 1.0 + rnd(ks[1], (ca,)), "ba": rnd(ks[2], (ca,)),
        # branch b: BasicConv2d(in, nk//2, 1x1) -> BasicConv2d(nk//2, nk, 3x3)
        "wb1": rnd(ks[3], (cb1, C_in, 1, 1)),
        "gb1": 1.0 + rnd(ks[4], (cb1,)), "bb1": rnd(ks[5], (cb1,)),
        "wb2": rnd(ks[6], (cb2, cb1, 3, 3)),
        "gb2": 1.0 + rnd(ks[7], (cb2,)), "bb2": rnd(ks[8], (cb2,)),
        # branch c: 1x1 -> 3x3 -> 3x3
        "wc1": rnd(ks[9], (cc1, C_in, 1, 1)),
        "gc1": 1.0 + rnd(ks[10], (cc1,)), "bc1": rnd(ks[11], (cc1,)),
        "wc2": rnd(ks[12], (cc2, cc1, 3, 3)),
        "gc2": 1.0 + rnd(ks[13], (cc2,)), "bc2": rnd(ks[14], (cc2,)),
        "wc3": rnd(ks[15], (cc3, cc2, 3, 3)),
        "gc3": 1.0 + rnd(ks[16], (cc3,)), "bc3": rnd(ks[17], (cc3,)),
        # branch d: Conv2d(in, nk//3, 1x1) with bias, then MaxPool2d(3,3,s=1,p=1)
        "wd": rnd(ks[18], (cd, C_in, 1, 1)), "bd": rnd(ks[19], (cd,)),
        # final BatchNorm2d over the channel concat
        "gamma_f": 1.0 + rnd(ks[20], (c_total,)), "beta_f": rnd(ks[21], (c_total,)),
    }

    x = jax.random.normal(ks[22], (N, C_in, H, W), dtype=jnp.float32)

    fwd = jax.jit(lambda inp: multi_2d_cnn_block(inp, params, num_kernel))
    y = fwd(x)
    jax.block_until_ready(y)
    assert y.shape == (N, c_total, H, W), y.shape
    assert bool(jnp.all(jnp.isfinite(y)))
    print("KERNEL_OK")
</pallas_src>

<mosaic_0001>
module attributes {stable_mosaic.version = 11 : i64} {
  func.func @_stem_kernel(%arg0: i32, %arg1: memref<256x4xbf16, #tpu.memory_space<vmem>>, %arg2: memref<4x128xbf16, #tpu.memory_space<vmem>>, %arg3: memref<1x128xf32, #tpu.memory_space<vmem>>, %arg4: memref<1x128xf32, #tpu.memory_space<vmem>>, %arg5: memref<256x128xbf16, #tpu.memory_space<vmem>>, %arg6: memref<1x2x128xf32, #tpu.memory_space<vmem>>) attributes {dimension_semantics = [#tpu.dimension_semantics<parallel>], iteration_bounds = array<i64: 2>, scalar_prefetch = 0 : i64, scratch_operands = 0 : i64, tpu.core_type = #tpu.core_type<tc>, window_params = [{transform_indices = @transform_0, window_bounds = array<i64: 256, 4>}, {pipeline_mode = #tpu.pipeline_mode<synchronous>, transform_indices = @transform_1, window_bounds = array<i64: 4, 128>}, {pipeline_mode = #tpu.pipeline_mode<synchronous>, transform_indices = @transform_2, window_bounds = array<i64: 1, 128>}, {pipeline_mode = #tpu.pipeline_mode<synchronous>, transform_indices = @transform_3, window_bounds = array<i64: 1, 128>}, {transform_indices = @transform_4, window_bounds = array<i64: 256, 128>}, {transform_indices = @transform_5, window_bounds = array<i64: 1, 2, 128>}]} {
    %c0 = arith.constant 0 : index
    %c0_0 = arith.constant 0 : index
    %0 = vector.load %arg1[%c0, %c0_0] : memref<256x4xbf16, #tpu.memory_space<vmem>>, vector<256x4xbf16>
    %c0_1 = arith.constant 0 : index
    %c0_2 = arith.constant 0 : index
    %1 = vector.load %arg2[%c0_1, %c0_2] : memref<4x128xbf16, #tpu.memory_space<vmem>>, vector<4x128xbf16>
    %cst = arith.constant dense<0.000000e+00> : vector<256x128xf32>
    %2 = tpu.matmul %0, %1, %cst {dimension_numbers = #tpu.dot_dimension_numbers<[1], [0], [0], [1], [0, 0, 1, 1], [], []>} : vector<256x4xbf16>, vector<4x128xbf16>, vector<256x128xf32> -> vector<256x128xf32>
    %c0_3 = arith.constant 0 : index
    %c0_4 = arith.constant 0 : index
    %3 = vector.load %arg3[%c0_3, %c0_4] : memref<1x128xf32, #tpu.memory_space<vmem>>, vector<1x128xf32>
    %4 = vector.broadcast %3 : vector<1x128xf32> to vector<256x128xf32>
    %5 = arith.addf %2, %4 : vector<256x128xf32>
    %c0_5 = arith.constant 0 : index
    %c0_6 = arith.constant 0 : index
    %6 = vector.load %arg4[%c0_5, %c0_6] : memref<1x128xf32, #tpu.memory_space<vmem>>, vector<1x128xf32>
    %cst_7 = arith.constant 0.000000e+00 : f32
    %7 = vector.broadcast %cst_7 : f32 to vector<1x128xf32>
    %8 = arith.cmpf ogt, %6, %7 : vector<1x128xf32>
    %cst_8 = arith.constant 0.000000e+00 : f32
    %9 = vector.broadcast %cst_8 : f32 to vector<256x128xf32>
    %10 = arith.maximumf %5, %9 : vector<256x128xf32>
    %11 = vector.shape_cast %8 : vector<1x128xi1> to vector<1x128xi1>
    %12 = vector.broadcast %11 : vector<1x128xi1> to vector<256x128xi1>
    %13 = arith.select %12, %10, %5 : vector<256x128xi1>, vector<256x128xf32>
    %14 = arith.truncf %13 : vector<256x128xf32> to vector<256x128xbf16>
    %c0_9 = arith.constant 0 : index
    %c0_10 = arith.constant 0 : index
    %15 = vector.load %arg5[%c0_9, %c0_10] : memref<256x128xbf16, #tpu.memory_space<vmem>>, vector<256x128xbf16>
    tpu.vector_store %arg5[%c0_9, %c0_10], %14 {strides = array<i32>} : memref<256x128xbf16, #tpu.memory_space<vmem>>, vector<256x128xbf16>,
    %cst_11 = arith.constant dense<0.000000e+00> : vector<128xf32>
    %16 = vector.multi_reduction <add>, %13, %cst_11 [0] : vector<256x128xf32> to vector<128xf32>
    %17 = vector.shape_cast %16 : vector<128xf32> to vector<1x128xf32>
    %c0_12 = arith.constant 0 : index
    %c0_13 = arith.constant 0 : index
    %c0_14 = arith.constant 0 : index
    %18 = vector.load %arg6[%c0_12, %c0_13, %c0_14] : memref<1x2x128xf32, #tpu.memory_space<vmem>>, vector<1x1x128xf32>
    %19 = vector.shape_cast %18 : vector<1x1x128xf32> to vector<1x128xf32>
    %20 = vector.shape_cast %17 : vector<1x128xf32> to vector<1x1x128xf32>
    tpu.vector_store %arg6[%c0_12, %c0_13, %c0_14], %20 {strides = array<i32>} : memref<1x2x128xf32, #tpu.memory_space<vmem>>, vector<1x1x128xf32>,
    %21 = arith.mulf %13, %13 : vector<256x128xf32>
    %cst_15 = arith.constant dense<0.000000e+00> : vector<128xf32>
    %22 = vector.multi_reduction <add>, %21, %cst_15 [0] : vector<256x128xf32> to vector<128xf32>
    %23 = vector.shape_cast %22 : vector<128xf32> to vector<1x128xf32>
    %c0_16 = arith.constant 0 : index
    %c1 = arith.constant 1 : index
    %c0_17 = arith.constant 0 : index
    %24 = vector.load %arg6[%c0_16, %c1, %c0_17] : memref<1x2x128xf32, #tpu.memory_space<vmem>>, vector<1x1x128xf32>
    %25 = vector.shape_cast %24 : vector<1x1x128xf32> to vector<1x128xf32>
    %26 = vector.shape_cast %23 : vector<1x128xf32> to vector<1x1x128xf32>
    tpu.vector_store %arg6[%c0_16, %c1, %c0_17], %26 {strides = array<i32>} : memref<1x2x128xf32, #tpu.memory_space<vmem>>, vector<1x1x128xf32>,
    return
  }
  func.func @transform_0(%arg0: i32) -> (i32, i32) {
    %c0_i32 = arith.constant 0 : i32
    %c0_i32_0 = arith.constant 0 : i32
    return %arg0, %c0_i32 : i32, i32
  }
  func.func @transform_1(%arg0: i32) -> (i32, i32) {
    %c0_i32 = arith.constant 0 : i32
    %c0_i32_0 = arith.constant 0 : i32
    %c0_i32_1 = arith.constant 0 : i32
    return %c0_i32, %c0_i32_0 : i32, i32
  }
  func.func @transform_2(%arg0: i32) -> (i32, i32) {
    %c0_i32 = arith.constant 0 : i32
    %c0_i32_0 = arith.constant 0 : i32
    %c0_i32_1 = arith.constant 0 : i32
    return %c0_i32, %c0_i32_0 : i32, i32
  }
  func.func @transform_3(%arg0: i32) -> (i32, i32) {
    %c0_i32 = arith.constant 0 : i32
    %c0_i32_0 = arith.constant 0 : i32
    %c0_i32_1 = arith.constant 0 : i32
    return %c0_i32, %c0_i32_0 : i32, i32
  }
  func.func @transform_4(%arg0: i32) -> (i32, i32) {
    %c0_i32 = arith.constant 0 : i32
    %c0_i32_0 = arith.constant 0 : i32
    return %arg0, %c0_i32 : i32, i32
  }
  func.func @transform_5(%arg0: i32) -> (i32, i32, i32) {
    %c0_i32 = arith.constant 0 : i32
    %c0_i32_0 = arith.constant 0 : i32
    %c0_i32_1 = arith.constant 0 : i32
    return %arg0, %c0_i32, %c0_i32_0 : i32, i32, i32
  }
}

module attributes {stable_mosaic.version = 11 : i64} {
  func.func @kernel(%arg0: i32, %arg1: memref<1x18x18x128xbf16, #tpu.memory_space<vmem>>, %arg2: memref<9x128x128xbf16, #tpu.memory_space<vmem>>, %arg3: memref<1x256x128xbf16, #tpu.memory_space<vmem>>, %arg4: memref<1x2x128xf32, #tpu.memory_space<vmem>>, %arg5: memref<18x18x128xf32, #tpu.memory_space<vmem>>) attributes {dimension_semantics = [#tpu.dimension_semantics<parallel>], iteration_bounds = array<i64: 2>, scalar_prefetch = 0 : i64, scratch_operands = 1 : i64, tpu.core_type = #tpu.core_type<tc>, window_params = [{transform_indices = @transform_0, window_bounds = array<i64: 1, 18, 18, 128>}, {pipeline_mode = #tpu.pipeline_mode<synchronous>, transform_indices = @transform_1, window_bounds = array<i64: 9, 128, 128>}, {transform_indices = @transform_2, window_bounds = array<i64: 1, 256, 128>}, {transform_indices = @transform_3, window_bounds = array<i64: 1, 2, 128>}]} {
    %c0 = arith.constant 0 : index
    %c0_0 = arith.constant 0 : index
    %c0_1 = arith.constant 0 : index
    %c0_2 = arith.constant 0 : index
    %0 = vector.load %arg1[%c0, %c0_0, %c0_1, %c0_2] : memref<1x18x18x128xbf16, #tpu.memory_space<vmem>>, vector<1x18x18x128xbf16>
    %1 = vector.shape_cast %0 : vector<1x18x18x128xbf16> to vector<18x18x128xbf16>
    %2 = arith.extf %1 : vector<18x18x128xbf16> to vector<18x18x128xf32>
    %c0_3 = arith.constant 0 : index
    %c0_4 = arith.constant 0 : index
    %c0_5 = arith.constant 0 : index
    %3 = vector.load %arg5[%c0_3, %c0_4, %c0_5] : memref<18x18x128xf32, #tpu.memory_space<vmem>>, vector<18x18x128xf32>
    tpu.vector_store %arg5[%c0_3, %c0_4, %c0_5], %2 {strides = array<i32>} : memref<18x18x128xf32, #tpu.memory_space<vmem>>, vector<18x18x128xf32>,
    %cst = arith.constant 0.000000e+00 : f32
    %4 = vector.broadcast %cst : f32 to vector<256x128xf32>
    %c0_6 = arith.constant 0 : index
    %c0_7 = arith.constant 0 : index
    %c0_8 = arith.constant 0 : index
    %5 = vector.load %arg5[%c0_6, %c0_7, %c0_8] : memref<18x18x128xf32, #tpu.memory_space<vmem>>, vector<16x16x128xf32>
    %6 = vector.shape_cast %5 : vector<16x16x128xf32> to vector<256x128xf32>
    %7 = arith.truncf %6 : vector<256x128xf32> to vector<256x128xbf16>
    %c0_9 = arith.constant 0 : index
    %c0_10 = arith.constant 0 : index
    %c0_11 = arith.constant 0 : index
    %8 = vector.load %arg2[%c0_9, %c0_10, %c0_11] : memref<9x128x128xbf16, #tpu.memory_space<vmem>>, vector<1x128x128xbf16>
    %9 = vector.shape_cast %8 : vector<1x128x128xbf16> to vector<128x128xbf16>
    %cst_12 = arith.constant dense<0.000000e+00> : vector<256x128xf32>
    %10 = tpu.matmul %7, %9, %cst_12 {dimension_numbers = #tpu.dot_dimension_numbers<[1], [0], [0], [1], [0, 0, 1, 1], [], []>} : vector<256x128xbf16>, vector<128x128xbf16>, vector<256x128xf32> -> vector<256x128xf32>
    %11 = arith.addf %4, %10 : vector<256x128xf32>
    %c0_13 = arith.constant 0 : index
    %c1 = arith.constant 1 : index
    %c0_14 = arith.constant 0 : index
    %12 = vector.load %arg5[%c0_13, %c1, %c0_14] : memref<18x18x128xf32, #tpu.memory_space<vmem>>, vector<16x16x128xf32>
    %13 = vector.shape_cast %12 : vector<16x16x128xf32> to vector<256x128xf32>
    %14 = arith.truncf %13 : vector<256x128xf32> to vector<256x128xbf16>
    %c1_15 = arith.constant 1 : index
    %c0_16 = arith.constant 0 : index
    %c0_17 = arith.constant 0 : index
    %15 = vector.load %arg2[%c1_15, %c0_16, %c0_17] : memref<9x128x128xbf16, #tpu.memory_space<vmem>>, vector<1x128x128xbf16>
    %16 = vector.shape_cast %15 : vector<1x128x128xbf16> to vector<128x128xbf16>
    %cst_18 = arith.constant dense<0.000000e+00> : vector<256x128xf32>
    %17 = tpu.matmul %14, %16, %cst_18 {dimension_numbers = #tpu.dot_dimension_numbers<[1], [0], [0], [1], [0, 0, 1, 1], [], []>} : vector<256x128xbf16>, vector<128x128xbf16>, vector<256x128xf32> -> vector<256x128xf32>
    %18 = arith.addf %11, %17 : vector<256x128xf32>
    %c0_19 = arith.constant 0 : index
    %c2 = arith.constant 2 : index
    %c0_20 = arith.constant 0 : index
    %19 = vector.load %arg5[%c0_19, %c2, %c0_20] : memref<18x18x128xf32, #tpu.memory_space<vmem>>, vector<16x16x128xf32>
    %20 = vector.shape_cast %19 : vector<16x16x128xf32> to vector<256x128xf32>
    %21 = arith.truncf %20 : vector<256x128xf32> to vector<256x128xbf16>
    %c2_21 = arith.constant 2 : index
    %c0_22 = arith.constant 0 : index
    %c0_23 = arith.constant 0 : index
    %22 = vector.load %arg2[%c2_21, %c0_22, %c0_23] : memref<9x128x128xbf16, #tpu.memory_space<vmem>>, vector<1x128x128xbf16>
    %23 = vector.shape_cast %22 : vector<1x128x128xbf16> to vector<128x128xbf16>
    %cst_24 = arith.constant dense<0.000000e+00> : vector<256x128xf32>
    %24 = tpu.matmul %21, %23, %cst_24 {dimension_numbers = #tpu.dot_dimension_numbers<[1], [0], [0], [1], [0, 0, 1, 1], [], []>} : vector<256x128xbf16>, vector<128x128xbf16>, vector<256x128xf32> -> vector<256x128xf32>
    %25 = arith.addf %18, %24 : vector<256x128xf32>
    %c1_25 = arith.constant 1 : index
    %c0_26 = arith.constant 0 : index
    %c0_27 = arith.constant 0 : index
    %26 = vector.load %arg5[%c1_25, %c0_26, %c0_27] : memref<18x18x128xf32, #tpu.memory_space<vmem>>, vector<16x16x128xf32>
    %27 = vector.shape_cast %26 : vector<16x16x128xf32> to vector<256x128xf32>
    %28 = arith.truncf %27 : vector<256x128xf32> to vector<256x128xbf16>
    %c3 = arith.constant 3 : index
    %c0_28 = arith.constant 0 : index
    %c0_29 = arith.constant 0 : index
    %29 = vector.load %arg2[%c3, %c0_28, %c0_29] : memref<9x128x128xbf16, #tpu.memory_space<vmem>>, vector<1x128x128xbf16>
    %30 = vector.shape_cast %29 : vector<1x128x128xbf16> to vector<128x128xbf16>
    %cst_30 = arith.constant dense<0.000000e+00> : vector<256x128xf32>
    %31 = tpu.matmul %28, %30, %cst_30 {dimension_numbers = #tpu.dot_dimension_numbers<[1], [0], [0], [1], [0, 0, 1, 1], [], []>} : vector<256x128xbf16>, vector<128x128xbf16>, vector<256x128xf32> -> vector<256x128xf32>
    %32 = arith.addf %25, %31 : vector<256x128xf32>
    %c1_31 = arith.constant 1 : index
    %c1_32 = arith.constant 1 : index
    %c0_33 = arith.constant 0 : index
    %33 = vector.load %arg5[%c1_31, %c1_32, %c0_33] : memref<18x18x128xf32, #tpu.memory_space<vmem>>, vector<16x16x128xf32>
    %34 = vector.shape_cast %33 : vector<16x16x128xf32> to vector<256x128xf32>
    %35 = arith.truncf %34 : vector<256x128xf32> to vector<256x128xbf16>
    %c4 = arith.constant 4 : index
    %c0_34 = arith.constant 0 : index
    %c0_35 = arith.constant 0 : index
    %36 = vector.load %arg2[%c4, %c0_34, %c0_35] : memref<9x128x128xbf16, #tpu.memory_space<vmem>>, vector<1x128x128xbf16>
    %37 = vector.shape_cast %36 : vector<1x128x128xbf16> to vector<128x128xbf16>
    %cst_36 = arith.constant dense<0.000000e+00> : vector<256x128xf32>
    %38 = tpu.matmul %35, %37, %cst_36 {dimension_numbers = #tpu.dot_dimension_numbers<[1], [0], [0], [1], [0, 0, 1, 1], [], []>} : vector<256x128xbf16>, vector<128x128xbf16>, vector<256x128xf32> -> vector<256x128xf32>
    %39 = arith.addf %32, %38 : vector<256x128xf32>
    %c1_37 = arith.constant 1 : index
    %c2_38 = arith.constant 2 : index
    %c0_39 = arith.constant 0 : index
    %40 = vector.load %arg5[%c1_37, %c2_38, %c0_39] : memref<18x18x128xf32, #tpu.memory_space<vmem>>, vector<16x16x128xf32>
    %41 = vector.shape_cast %40 : vector<16x16x128xf32> to vector<256x128xf32>
    %42 = arith.truncf %41 : vector<256x128xf32> to vector<256x128xbf16>
    %c5 = arith.constant 5 : index
    %c0_40 = arith.constant 0 : index
    %c0_41 = arith.constant 0 : index
    %43 = vector.load %arg2[%c5, %c0_40, %c0_41] : memref<9x128x128xbf16, #tpu.memory_space<vmem>>, vector<1x128x128xbf16>
    %44 = vector.shape_cast %43 : vector<1x128x128xbf16> to vector<128x128xbf16>
    %cst_42 = arith.constant dense<0.000000e+00> : vector<256x128xf32>
    %45 = tpu.matmul %42, %44, %cst_42 {dimension_numbers = #tpu.dot_dimension_numbers<[1], [0], [0], [1], [0, 0, 1, 1], [], []>} : vector<256x128xbf16>, vector<128x128xbf16>, vector<256x128xf32> -> vector<256x128xf32>
    %46 = arith.addf %39, %45 : vector<256x128xf32>
    %c2_43 = arith.constant 2 : index
    %c0_44 = arith.constant 0 : index
    %c0_45 = arith.constant 0 : index
    %47 = vector.load %arg5[%c2_43, %c0_44, %c0_45] : memref<18x18x128xf32, #tpu.memory_space<vmem>>, vector<16x16x128xf32>
    %48 = vector.shape_cast %47 : vector<16x16x128xf32> to vector<256x128xf32>
    %49 = arith.truncf %48 : vector<256x128xf32> to vector<256x128xbf16>
    %c6 = arith.constant 6 : index
    %c0_46 = arith.constant 0 : index
    %c0_47 = arith.constant 0 : index
    %50 = vector.load %arg2[%c6, %c0_46, %c0_47] : memref<9x128x128xbf16, #tpu.memory_space<vmem>>, vector<1x128x128xbf16>
    %51 = vector.shape_cast %50 : vector<1x128x128xbf16> to vector<128x128xbf16>
    %cst_48 = arith.constant dense<0.000000e+00> : vector<256x128xf32>
    %52 = tpu.matmul %49, %51, %cst_48 {dimension_numbers = #tpu.dot_dimension_numbers<[1], [0], [0], [1], [0, 0, 1, 1], [], []>} : vector<256x128xbf16>, vector<128x128xbf16>, vector<256x128xf32> -> vector<256x128xf32>
    %53 = arith.addf %46, %52 : vector<256x128xf32>
    %c2_49 = arith.constant 2 : index
    %c1_50 = arith.constant 1 : index
    %c0_51 = arith.constant 0 : index
    %54 = vector.load %arg5[%c2_49, %c1_50, %c0_51] : memref<18x18x128xf32, #tpu.memory_space<vmem>>, vector<16x16x128xf32>
    %55 = vector.shape_cast %54 : vector<16x16x128xf32> to vector<256x128xf32>
    %56 = arith.truncf %55 : vector<256x128xf32> to vector<256x128xbf16>
    %c7 = arith.constant 7 : index
    %c0_52 = arith.constant 0 : index
    %c0_53 = arith.constant 0 : index
    %57 = vector.load %arg2[%c7, %c0_52, %c0_53] : memref<9x128x128xbf16, #tpu.memory_space<vmem>>, vector<1x128x128xbf16>
    %58 = vector.shape_cast %57 : vector<1x128x128xbf16> to vector<128x128xbf16>
    %cst_54 = arith.constant dense<0.000000e+00> : vector<256x128xf32>
    %59 = tpu.matmul %56, %58, %cst_54 {dimension_numbers = #tpu.dot_dimension_numbers<[1], [0], [0], [1], [0, 0, 1, 1], [], []>} : vector<256x128xbf16>, vector<128x128xbf16>, vector<256x128xf32> -> vector<256x128xf32>
    %60 = arith.addf %53, %59 : vector<256x128xf32>
    %c2_55 = arith.constant 2 : index
    %c2_56 = arith.constant 2 : index
    %c0_57 = arith.constant 0 : index
    %61 = vector.load %arg5[%c2_55, %c2_56, %c0_57] : memref<18x18x128xf32, #tpu.memory_space<vmem>>, vector<16x16x128xf32>
    %62 = vector.shape_cast %61 : vector<16x16x128xf32> to vector<256x128xf32>
    %63 = arith.truncf %62 : vector<256x128xf32> to vector<256x128xbf16>
    %c8 = arith.constant 8 : index
    %c0_58 = arith.constant 0 : index
    %c0_59 = arith.constant 0 : index
    %64 = vector.load %arg2[%c8, %c0_58, %c0_59] : memref<9x128x128xbf16, #tpu.memory_space<vmem>>, vector<1x128x128xbf16>
    %65 = vector.shape_cast %64 : vector<1x128x128xbf16> to vector<128x128xbf16>
    %cst_60 = arith.constant dense<0.000000e+00> : vector<256x128xf32>
    %66 = tpu.matmul %63, %65, %cst_60 {dimension_numbers = #tpu.dot_dimension_numbers<[1], [0], [0], [1], [0, 0, 1, 1], [], []>} : vector<256x128xbf16>, vector<128x128xbf16>, vector<256x128xf32> -> vector<256x128xf32>
    %67 = arith.addf %60, %66 : vector<256x128xf32>
    %cst_61 = arith.constant 0.000000e+00 : f32
    %68 = vector.broadcast %cst_61 : f32 to vector<256x128xf32>
    %69 = arith.maximumf %67, %68 : vector<256x128xf32>
    %70 = arith.truncf %69 : vector<256x128xf32> to vector<256x128xbf16>
    %71 = vector.shape_cast %70 : vector<256x128xbf16> to vector<1x256x128xbf16>
    %c0_62 = arith.constant 0 : index
    %c0_63 = arith.constant 0 : index
    %c0_64 = arith.constant 0 : index
    %72 = vector.load %arg3[%c0_62, %c0_63, %c0_64] : memref<1x256x128xbf16, #tpu.memory_space<vmem>>, vector<1x256x128xbf16>
    tpu.vector_store %arg3[%c0_62, %c0_63, %c0_64], %71 {strides = array<i32>} : memref<1x256x128xbf16, #tpu.memory_space<vmem>>, vector<1x256x128xbf16>,
    %cst_65 = arith.constant dense<0.000000e+00> : vector<128xf32>
    %73 = vector.multi_reduction <add>, %69, %cst_65 [0] : vector<256x128xf32> to vector<128xf32>
    %74 = vector.shape_cast %73 : vector<128xf32> to vector<1x128xf32>
    %c0_66 = arith.constant 0 : index
    %c0_67 = arith.constant 0 : index
    %c0_68 = arith.constant 0 : index
    %75 = vector.load %arg4[%c0_66, %c0_67, %c0_68] : memref<1x2x128xf32, #tpu.memory_space<vmem>>, vector<1x1x128xf32>
    %76 = vector.shape_cast %75 : vector<1x1x128xf32> to vector<1x128xf32>
    %77 = vector.shape_cast %74 : vector<1x128xf32> to vector<1x1x128xf32>
    tpu.vector_store %arg4[%c0_66, %c0_67, %c0_68], %77 {strides = array<i32>} : memref<1x2x128xf32, #tpu.memory_space<vmem>>, vector<1x1x128xf32>,
    %78 = arith.mulf %69, %69 : vector<256x128xf32>
    %cst_69 = arith.constant dense<0.000000e+00> : vector<128xf32>
    %79 = vector.multi_reduction <add>, %78, %cst_69 [0] : vector<256x128xf32> to vector<128xf32>
    %80 = vector.shape_cast %79 : vector<128xf32> to vector<1x128xf32>
    %c0_70 = arith.constant 0 : index
    %c1_71 = arith.constant 1 : index
    %c0_72 = arith.constant 0 : index
    %81 = vector.load %arg4[%c0_70, %c1_71, %c0_72] : memref<1x2x128xf32, #tpu.memory_space<vmem>>, vector<1x1x128xf32>
    %82 = vector.shape_cast %81 : vector<1x1x128xf32> to vector<1x128xf32>
    %83 = vector.shape_cast %80 : vector<1x128xf32> to vector<1x1x128xf32>
    tpu.vector_store %arg4[%c0_70, %c1_71, %c0_72], %83 {strides = array<i32>} : memref<1x2x128xf32, #tpu.memory_space<vmem>>, vector<1x1x128xf32>,
    return
  }
  func.func @transform_0(%arg0: i32) -> (i32, i32, i32, i32) {
    %c0_i32 = arith.constant 0 : i32
    %c0_i32_0 = arith.constant 0 : i32
    %c0_i32_1 = arith.constant 0 : i32
    %c0_i32_2 = arith.constant 0 : i32
    return %arg0, %c0_i32, %c0_i32_0, %c0_i32_1 : i32, i32, i32, i32
  }
  func.func @transform_1(%arg0: i32) -> (i32, i32, i32) {
    %c0_i32 = arith.constant 0 : i32
    %c0_i32_0 = arith.constant 0 : i32
    %c0_i32_1 = arith.constant 0 : i32
    %c0_i32_2 = arith.constant 0 : i32
    return %c0_i32, %c0_i32_0, %c0_i32_1 : i32, i32, i32
  }
  func.func @transform_2(%arg0: i32) -> (i32, i32, i32) {
    %c0_i32 = arith.constant 0 : i32
    %c0_i32_0 = arith.constant 0 : i32
    %c0_i32_1 = arith.constant 0 : i32
    return %arg0, %c0_i32, %c0_i32_0 : i32, i32, i32
  }
  func.func @transform_3(%arg0: i32) -> (i32, i32, i32) {
    %c0_i32 = arith.constant 0 : i32
    %c0_i32_0 = arith.constant 0 : i32
    %c0_i32_1 = arith.constant 0 : i32
    return %arg0, %c0_i32, %c0_i32_0 : i32, i32, i32
  }
}

module attributes {stable_mosaic.version = 11 : i64} {
  func.func @_finalize_kernel(%arg0: i32, %arg1: memref<256x128xbf16, #tpu.memory_space<vmem>>, %arg2: memref<256x128xbf16, #tpu.memory_space<vmem>>, %arg3: memref<256x128xbf16, #tpu.memory_space<vmem>>, %arg4: memref<1x128xf32, #tpu.memory_space<vmem>>, %arg5: memref<1x128xf32, #tpu.memory_space<vmem>>, %arg6: memref<1x128xf32, #tpu.memory_space<vmem>>, %arg7: memref<1x128xf32, #tpu.memory_space<vmem>>, %arg8: memref<1x128xf32, #tpu.memory_space<vmem>>, %arg9: memref<1x128xf32, #tpu.memory_space<vmem>>, %arg10: memref<256x128xf32, #tpu.memory_space<vmem>>, %arg11: memref<256x128xf32, #tpu.memory_space<vmem>>, %arg12: memref<256x128xf32, #tpu.memory_space<vmem>>) attributes {dimension_semantics = [#tpu.dimension_semantics<parallel>], iteration_bounds = array<i64: 2>, scalar_prefetch = 0 : i64, scratch_operands = 0 : i64, tpu.core_type = #tpu.core_type<tc>, window_params = [{transform_indices = @transform_0, window_bounds = array<i64: 256, 128>}, {transform_indices = @transform_1, window_bounds = array<i64: 256, 128>}, {transform_indices = @transform_2, window_bounds = array<i64: 256, 128>}, {pipeline_mode = #tpu.pipeline_mode<synchronous>, transform_indices = @transform_3, window_bounds = array<i64: 1, 128>}, {pipeline_mode = #tpu.pipeline_mode<synchronous>, transform_indices = @transform_4, window_bounds = array<i64: 1, 128>}, {pipeline_mode = #tpu.pipeline_mode<synchronous>, transform_indices = @transform_5, window_bounds = array<i64: 1, 128>}, {pipeline_mode = #tpu.pipeline_mode<synchronous>, transform_indices = @transform_6, window_bounds = array<i64: 1, 128>}, {pipeline_mode = #tpu.pipeline_mode<synchronous>, transform_indices = @transform_7, window_bounds = array<i64: 1, 128>}, {pipeline_mode = #tpu.pipeline_mode<synchronous>, transform_indices = @transform_8, window_bounds = array<i64: 1, 128>}, {transform_indices = @transform_9, window_bounds = array<i64: 256, 128>}, {transform_indices = @transform_10, window_bounds = array<i64: 256, 128>}, {transform_indices = @transform_11, window_bounds = array<i64: 256, 128>}]} {
    %c0 = arith.constant 0 : index
    %c0_0 = arith.constant 0 : index
    %0 = vector.load %arg1[%c0, %c0_0] : memref<256x128xbf16, #tpu.memory_space<vmem>>, vector<256x128xbf16>
    %1 = arith.extf %0 : vector<256x128xbf16> to vector<256x128xf32>
    %c0_1 = arith.constant 0 : index
    %c0_2 = arith.constant 0 : index
    %2 = vector.load %arg4[%c0_1, %c0_2] : memref<1x128xf32, #tpu.memory_space<vmem>>, vector<1x128xf32>
    %3 = vector.broadcast %2 : vector<1x128xf32> to vector<256x128xf32>
    %4 = arith.mulf %1, %3 : vector<256x128xf32>
    %c0_3 = arith.constant 0 : index
    %c0_4 = arith.constant 0 : index
    %5 = vector.load %arg5[%c0_3, %c0_4] : memref<1x128xf32, #tpu.memory_space<vmem>>, vector<1x128xf32>
    %6 = vector.broadcast %5 : vector<1x128xf32> to vector<256x128xf32>
    %7 = arith.addf %4, %6 : vector<256x128xf32>
    %c0_5 = arith.constant 0 : index
    %c0_6 = arith.constant 0 : index
    %8 = vector.load %arg10[%c0_5, %c0_6] : memref<256x128xf32, #tpu.memory_space<vmem>>, vector<256x128xf32>
    tpu.vector_store %arg10[%c0_5, %c0_6], %7 {strides = array<i32>} : memref<256x128xf32, #tpu.memory_space<vmem>>, vector<256x128xf32>,
    %c0_7 = arith.constant 0 : index
    %c0_8 = arith.constant 0 : index
    %9 = vector.load %arg2[%c0_7, %c0_8] : memref<256x128xbf16, #tpu.memory_space<vmem>>, vector<256x128xbf16>
    %10 = arith.extf %9 : vector<256x128xbf16> to vector<256x128xf32>
    %c0_9 = arith.constant 0 : index
    %c0_10 = arith.constant 0 : index
    %11 = vector.load %arg6[%c0_9, %c0_10] : memref<1x128xf32, #tpu.memory_space<vmem>>, vector<1x128xf32>
    %12 = vector.broadcast %11 : vector<1x128xf32> to vector<256x128xf32>
    %13 = arith.mulf %10, %12 : vector<256x128xf32>
    %c0_11 = arith.constant 0 : index
    %c0_12 = arith.constant 0 : index
    %14 = vector.load %arg7[%c0_11, %c0_12] : memref<1x128xf32, #tpu.memory_space<vmem>>, vector<1x128xf32>
    %15 = vector.broadcast %14 : vector<1x128xf32> to vector<256x128xf32>
    %16 = arith.addf %13, %15 : vector<256x128xf32>
    %c0_13 = arith.constant 0 : index
    %c0_14 = arith.constant 0 : index
    %17 = vector.load %arg11[%c0_13, %c0_14] : memref<256x128xf32, #tpu.memory_space<vmem>>, vector<256x128xf32>
    tpu.vector_store %arg11[%c0_13, %c0_14], %16 {strides = array<i32>} : memref<256x128xf32, #tpu.memory_space<vmem>>, vector<256x128xf32>,
    %c0_15 = arith.constant 0 : index
    %c0_16 = arith.constant 0 : index
    %18 = vector.load %arg3[%c0_15, %c0_16] : memref<256x128xbf16, #tpu.memory_space<vmem>>, vector<256x128xbf16>
    %19 = arith.extf %18 : vector<256x128xbf16> to vector<256x128xf32>
    %c0_17 = arith.constant 0 : index
    %c0_18 = arith.constant 0 : index
    %20 = vector.load %arg8[%c0_17, %c0_18] : memref<1x128xf32, #tpu.memory_space<vmem>>, vector<1x128xf32>
    %21 = vector.broadcast %20 : vector<1x128xf32> to vector<256x128xf32>
    %22 = arith.mulf %19, %21 : vector<256x128xf32>
    %c0_19 = arith.constant 0 : index
    %c0_20 = arith.constant 0 : index
    %23 = vector.load %arg9[%c0_19, %c0_20] : memref<1x128xf32, #tpu.memory_space<vmem>>, vector<1x128xf32>
    %24 = vector.broadcast %23 : vector<1x128xf32> to vector<256x128xf32>
    %25 = arith.addf %22, %24 : vector<256x128xf32>
    %c0_21 = arith.constant 0 : index
    %c0_22 = arith.constant 0 : index
    %26 = vector.load %arg12[%c0_21, %c0_22] : memref<256x128xf32, #tpu.memory_space<vmem>>, vector<256x128xf32>
    tpu.vector_store %arg12[%c0_21, %c0_22], %25 {strides = array<i32>} : memref<256x128xf32, #tpu.memory_space<vmem>>, vector<256x128xf32>,
    return
  }
  func.func @transform_0(%arg0: i32) -> (i32, i32) {
    %c0_i32 = arith.constant 0 : i32
    %c0_i32_0 = arith.constant 0 : i32
    return %arg0, %c0_i32 : i32, i32
  }
  func.func @transform_1(%arg0: i32) -> (i32, i32) {
    %c0_i32 = arith.constant 0 : i32
    %c0_i32_0 = arith.constant 0 : i32
    return %arg0, %c0_i32 : i32, i32
  }
  func.func @transform_2(%arg0: i32) -> (i32, i32) {
    %c0_i32 = arith.constant 0 : i32
    %c0_i32_0 = arith.constant 0 : i32
    return %arg0, %c0_i32 : i32, i32
  }
  func.func @transform_3(%arg0: i32) -> (i32, i32) {
    %c0_i32 = arith.constant 0 : i32
    %c0_i32_0 = arith.constant 0 : i32
    %c0_i32_1 = arith.constant 0 : i32
    return %c0_i32, %c0_i32_0 : i32, i32
  }
  func.func @transform_4(%arg0: i32) -> (i32, i32) {
    %c0_i32 = arith.constant 0 : i32
    %c0_i32_0 = arith.constant 0 : i32
    %c0_i32_1 = arith.constant 0 : i32
    return %c0_i32, %c0_i32_0 : i32, i32
  }
  func.func @transform_5(%arg0: i32) -> (i32, i32) {
    %c0_i32 = arith.constant 0 : i32
    %c0_i32_0 = arith.constant 0 : i32
    %c0_i32_1 = arith.constant 0 : i32
    return %c0_i32, %c0_i32_0 : i32, i32
  }
  func.func @transform_6(%arg0: i32) -> (i32, i32) {
    %c0_i32 = arith.constant 0 : i32
    %c0_i32_0 = arith.constant 0 : i32
    %c0_i32_1 = arith.constant 0 : i32
    return %c0_i32, %c0_i32_0 : i32, i32
  }
  func.func @transform_7(%arg0: i32) -> (i32, i32) {
    %c0_i32 = arith.constant 0 : i32
    %c0_i32_0 = arith.constant 0 : i32
    %c0_i32_1 = arith.constant 0 : i32
    return %c0_i32, %c0_i32_0 : i32, i32
  }
  func.func @transform_8(%arg0: i32) -> (i32, i32) {
    %c0_i32 = arith.constant 0 : i32
    %c0_i32_0 = arith.constant 0 : i32
    %c0_i32_1 = arith.constant 0 : i32
    return %c0_i32, %c0_i32_0 : i32, i32
  }
  func.func @transform_9(%arg0: i32) -> (i32, i32) {
    %c0_i32 = arith.constant 0 : i32
    %c0_i32_0 = arith.constant 0 : i32
    return %arg0, %c0_i32 : i32, i32
  }
  func.func @transform_10(%arg0: i32) -> (i32, i32) {
    %c0_i32 = arith.constant 0 : i32
    %c0_i32_0 = arith.constant 0 : i32
    return %arg0, %c0_i32 : i32, i32
  }
  func.func @transform_11(%arg0: i32) -> (i32, i32) {
    %c0_i32 = arith.constant 0 : i32
    %c0_i32_0 = arith.constant 0 : i32
    return %arg0, %c0_i32 : i32, i32
  }
}

</mosaic_0001>

<llo_original>
// kernel: _lambda_.4
$region0: #{_lambda_.4}
  #allocation0 [shape = 'u32[]', space=smem, size = 0x4, offset = 0x4, fixed_abs, tag = 'smem constant byte address 0x4 - core index']
  #allocation1 [shape = 'u32[72,128]{1,0:T(1,128)}', space=vmem, size = 0x9000, scoped, tag = 'internal scratch']
  %s0 = inlined_call_operand.vmem [shape: bf16[512,4], index: 0, kind: input, shape index: {}]
  %s1 = inlined_call_operand.vmem [shape: bf16[4,128], index: 1, kind: input, shape index: {}]
  %s2 = inlined_call_operand.vmem [shape: f32[1,128], index: 2, kind: input, shape index: {}]
  %s3 = inlined_call_operand.vmem [shape: f32[1,128], index: 3, kind: input, shape index: {}]
  %s4 = inlined_call_operand.vmem [shape: bf16[512,128], index: 4, kind: output, shape index: {0}]
  %s5 = inlined_call_operand.vmem [shape: f32[2,2,128], index: 5, kind: output, shape index: {1}]
  %6 = xla_tuple %s4, %s5
  %s7 = sld [smem:[#allocation0]]
  $region57: #{_lambda_.4} parent=0
    _
  %s9 = ssub.s32 1, %s7
  %s10 = scalar_select 0, %s9, %s7
  loop: start=0, step=1, limit=4
  $region2: #{_lambda_.4} parent=0 // loop_pre_header
    _
  $region3: #{_lambda_.4} parent=0 // loop_header
    %s12 = sphi 0, %s16
    %p13 = scmp.ge.s32.totalorder %s12, 4
    %s22 = sphi 0, %s24
    %s25 = sphi 0, %s22
    %s26 = sphi 0, %s25
    %s42 = sphi 0, %s26
    %s46 = sphi 0, %s46
    %s48 = sphi 0, %s46
    %s49 = sphi 0, %s48
    %s63 = sphi 0, %s49
    %s67 = sphi 0, %s67
    %s69 = sphi 0, %s67
    %s70 = sphi 0, %s69
    %s84 = sphi 0, %s70
    %s88 = sphi 0, %s88
    %s90 = sphi 0, %s88
    %s91 = sphi 0, %s90
    %s105 = sphi 0, %s91
    %s111 = sphi 0, %s113
    %s114 = sphi 0, %s111
    %s115 = sphi 0, %s114
    %s131 = sphi 0, %s115
    %s137 = sphi 0, %s139
    %s140 = sphi 0, %s137
    %s141 = sphi 0, %s140
    %s157 = sphi 0, %s141
  $region4: #{_lambda_.4} parent=0 // loop_header_branch
    %15 = sbr.rel (%p13) target = $region8
  $region5: #{_lambda_.4} parent=0 // loop_body
    %s17 = ssub.s32 %s12, 1
    %s18 = ssub.s32 %s12, 2
    %s19 = sadd.s32 %s12, 1
    %s20 = ssub.s32 %s12, %s19
    %p21 = scmp.eq.s32.totalorder %s20, 0
    %s23 = sadd.s32 %s22, 1
    %s24 = scalar_select %p21, %s22, %s23
    %p27 = pneg %p21
    %p28 = scmp.eq.s32.totalorder %s12, 1
    %p29 = por %p27, %p28
    %p30 = scmp.ne.s32.totalorder %s22, %s25
    %p31 = scmp.eq.s32.totalorder %s12, 0
    %p32 = por %p30, %p31
    %p33 = scmp.ne.s32.totalorder %s22, %s25
    %p34 = scmp.eq.s32.totalorder %s17, 1
    %p35 = por %p33, %p34
    %p36 = scmp.ne.s32.totalorder %s25, %s26
    %p37 = scmp.eq.s32.totalorder %s17, 0
    %p38 = por %p36, %p37
    %p39 = scmp.ne.s32.totalorder %s25, %s26
    %p40 = scmp.eq.s32.totalorder %s18, 1
    %p41 = por %p39, %p40
    %p43 = scmp.ne.s32.totalorder %s26, %s42
    %p44 = scmp.eq.s32.totalorder %s18, 0
    %p45 = por %p43, %p44
    %s47 = sadd.s32 %s46, 1
    %p50 = scmp.eq.s32.totalorder %s12, 1
    %p51 = scmp.ne.s32.totalorder %s46, %s48
    %p52 = scmp.eq.s32.totalorder %s12, 0
    %p53 = por %p51, %p52
    %p54 = scmp.ne.s32.totalorder %s46, %s48
    %p55 = scmp.eq.s32.totalorder %s17, 1
    %p56 = por %p54, %p55
    %p57 = scmp.ne.s32.totalorder %s48, %s49
    %p58 = scmp.eq.s32.totalorder %s17, 0
    %p59 = por %p57, %p58
    %p60 = scmp.ne.s32.totalorder %s48, %s49
    %p61 = scmp.eq.s32.totalorder %s18, 1
    %p62 = por %p60, %p61
    %p64 = scmp.ne.s32.totalorder %s49, %s63
    %p65 = scmp.eq.s32.totalorder %s18, 0
    %p66 = por %p64, %p65
    %s68 = sadd.s32 %s67, 1
    %p71 = scmp.eq.s32.totalorder %s12, 1
    %p72 = scmp.ne.s32.totalorder %s67, %s69
    %p73 = scmp.eq.s32.totalorder %s12, 0
    %p74 = por %p72, %p73
    %p75 = scmp.ne.s32.totalorder %s67, %s69
    %p76 = scmp.eq.s32.totalorder %s17, 1
    %p77 = por %p75, %p76
    %p78 = scmp.ne.s32.totalorder %s69, %s70
    %p79 = scmp.eq.s32.totalorder %s17, 0
    %p80 = por %p78, %p79
    %p81 = scmp.ne.s32.totalorder %s69, %s70
    %p82 = scmp.eq.s32.totalorder %s18, 1
    %p83 = por %p81, %p82
    %p85 = scmp.ne.s32.totalorder %s70, %s84
    %p86 = scmp.eq.s32.totalorder %s18, 0
    %p87 = por %p85, %p86
    %s89 = sadd.s32 %s88, 1
    %p92 = scmp.eq.s32.totalorder %s12, 1
    %p93 = scmp.ne.s32.totalorder %s88, %s90
    %p94 = scmp.eq.s32.totalorder %s12, 0
    %p95 = por %p93, %p94
    %p96 = scmp.ne.s32.totalorder %s88, %s90
    %p97 = scmp.eq.s32.totalorder %s17, 1
    %p98 = por %p96, %p97
    %p99 = scmp.ne.s32.totalorder %s90, %s91
    %p100 = scmp.eq.s32.totalorder %s17, 0
    %p101 = por %p99, %p100
    %p102 = scmp.ne.s32.totalorder %s90, %s91
    %p103 = scmp.eq.s32.totalorder %s18, 1
    %p104 = por %p102, %p103
    %p106 = scmp.ne.s32.totalorder %s91, %s105
    %p107 = scmp.eq.s32.totalorder %s18, 0
    %p108 = por %p106, %p107
    %s109 = ssub.s32 %s12, %s19
    %p110 = scmp.eq.s32.totalorder %s109, 0
    %s112 = sadd.s32 %s111, 1
    %s113 = scalar_select %p110, %s111, %s112
    %p116 = pneg %p110
    %p117 = scmp.eq.s32.totalorder %s12, 1
    %p118 = por %p116, %p117
    %p119 = scmp.ne.s32.totalorder %s111, %s114
    %p120 = scmp.eq.s32.totalorder %s12, 0
    %p121 = por %p119, %p120
    %p122 = scmp.ne.s32.totalorder %s111, %s114
    %p123 = scmp.eq.s32.totalorder %s17, 1
    %p124 = por %p122, %p123
    %p125 = scmp.ne.s32.totalorder %s114, %s115
    %p126 = scmp.eq.s32.totalorder %s17, 0
    %p127 = por %p125, %p126
    %p128 = scmp.ne.s32.totalorder %s114, %s115
    %p129 = scmp.eq.s32.totalorder %s18, 1
    %p130 = por %p128, %p129
    %p132 = scmp.ne.s32.totalorder %s115, %s131
    %p133 = scmp.eq.s32.totalorder %s18, 0
    %p134 = por %p132, %p133
    %s135 = ssub.s32 %s12, %s19
    %p136 = scmp.eq.s32.totalorder %s135, 0
    %s138 = sadd.s32 %s137, 1
    %s139 = scalar_select %p136, %s137, %s138
    %p142 = pneg %p136
    %p143 = scmp.eq.s32.totalorder %s12, 1
    %p144 = por %p142, %p143
    %p145 = scmp.ne.s32.totalorder %s137, %s140
    %p146 = scmp.eq.s32.totalorder %s12, 0
    %p147 = por %p145, %p146
    %p148 = scmp.ne.s32.totalorder %s137, %s140
    %p149 = scmp.eq.s32.totalorder %s17, 1
    %p150 = por %p148, %p149
    %p151 = scmp.ne.s32.totalorder %s140, %s141
    %p152 = scmp.eq.s32.totalorder %s17, 0
    %p153 = por %p151, %p152
    %p154 = scmp.ne.s32.totalorder %s140, %s141
    %p155 = scmp.eq.s32.totalorder %s18, 1
    %p156 = por %p154, %p155
    %p158 = scmp.ne.s32.totalorder %s141, %s157
    %p159 = scmp.eq.s32.totalorder %s18, 0
    %p160 = por %p158, %p159
    %p161 = scmp.le.s32.totalorder 1, %s12
    %p162 = scmp.lt.s32.totalorder %s12, 3
    %p163 = pnand %p161, %p162
    %p164 = pneg %p163
    // Predicated region
    $region9: #{_lambda_.4} parent=5 // pred_check
      _
    $region10: #{_lambda_.4} parent=5 // pred_check_branch
      %166 = sbr.rel (%p163) target = $region12
    $region11: #{_lambda_.4} parent=5 // pred_region
      %s167 = ssub.s32 %s12, 1
      // Predicated region
      $region13: #{_lambda_.4} parent=11 // pred_check
        %p168 = pneg %p59
      $region14: #{_lambda_.4} parent=11 // pred_check_branch
        %170 = sbr.rel (%p168) target = $region16
      $region15: #{_lambda_.4} parent=11 // pred_region
        _
      $region16: #{_lambda_.4} parent=11 // pred_fallthru
        _
      // Predicated region
      $region17: #{_lambda_.4} parent=11 // pred_check
        %p171 = pneg %p80
      $region18: #{_lambda_.4} parent=11 // pred_check_branch
        %173 = sbr.rel (%p171) target = $region20
      $region19: #{_lambda_.4} parent=11 // pred_region
        _
      $region20: #{_lambda_.4} parent=11 // pred_fallthru
        _
      // Predicated region
      $region21: #{_lambda_.4} parent=11 // pred_check
        %p174 = pneg %p101
      $region22: #{_lambda_.4} parent=11 // pred_check_branch
        %176 = sbr.rel (%p174) target = $region24
      $region23: #{_lambda_.4} parent=11 // pred_region
        _
      $region24: #{_lambda_.4} parent=11 // pred_fallthru
        _
    $region12: #{_lambda_.4} parent=5 // pred_fallthru
      _
    %p177 = scmp.lt.s32.totalorder %s12, 2
    // Predicated region
    $region25: #{_lambda_.4} parent=5 // pred_check
      %p178 = pneg %p177
    $region26: #{_lambda_.4} parent=5 // pred_check_branch
      %180 = sbr.rel (%p178) target = $region28
    $region27: #{_lambda_.4} parent=5 // pred_region
      // Predicated region
      $region29: #{_lambda_.4} parent=27 // pred_check
        %p181 = pneg %p32
      $region30: #{_lambda_.4} parent=27 // pred_check_branch
        %183 = sbr.rel (%p181) target = $region32
      $region31: #{_lambda_.4} parent=27 // pred_region
        %s184 = smul.u32 32, %s12
        %p185 = scmp.lt.s32.totalorder %s184, 63
        %s186 = scalar_select %p185, %s184, 63
        %s187 = smul.addr %s186, 4
        %s188 = scalar_lea.vmem %s0, %s187
        %s189 = smul.u32 32, %s12
      $region32: #{_lambda_.4} parent=27 // pred_fallthru
        _
    $region28: #{_lambda_.4} parent=5 // pred_fallthru
      _
    %p190 = scmp.le.s32.totalorder 1, %s12
    %p191 = scmp.lt.s32.totalorder %s12, 3
    %p192 = pnand %p190, %p191
    %p193 = pneg %p192
    // Predicated region
    $region33: #{_lambda_.4} parent=5 // pred_check
      _
    $region34: #{_lambda_.4} parent=5 // pred_check_branch
      %195 = sbr.rel (%p192) target = $region36
    $region35: #{_lambda_.4} parent=5 // pred_region
      %s196 = ssub.s32 %s12, 1
      %s197 = smul.u32 32, %s17
      %p198 = scmp.lt.s32.totalorder %s197, 63
      %s199 = scalar_select %p198, %s197, 63
      %s200 = smul.addr %s199, 4
      %s201 = scalar_lea.vmem %s0, %s200
      %p202 = pneg %p38
      %p203 = pneg %p35
      %p204 = pneg %p59
      %p205 = pneg %p56
      %p206 = pneg %p80
      %p207 = pneg %p77
      %p208 = pneg %p101
      %p209 = pneg %p98
      %p210 = pneg %p127
      %p211 = pneg %p124
      %s212 = smul.u32 32, %s17
      %p213 = scmp.lt.s32.totalorder %s212, 63
      %s214 = scalar_select %p213, %s212, 63
      %s215 = smul.addr %s214, 4
      %s216 = scalar_lea.vmem %s4, %s215
      %p217 = pneg %p153
      %p218 = pneg %p150
      %p219 = scmp.lt.s32.totalorder %s17, 1
      %s220 = scalar_select %p219, %s17, 1
      %s221 = smul.addr %s220, 2
      %s222 = scalar_lea.vmem %s5, %s221
      %s223 = smul.u32 32, %s17
      %p224 = scmp.lt.s32.totalorder %s223, 63
      %s225 = scalar_select %p224, %s223, 63
      %s226 = smul.addr %s225, 4
      %s227 = scalar_lea.vmem %s0, %s226
      %s228 = smul.u32 32, %s17
      %s229 = smul.u32 32, %s17
      %p230 = scmp.lt.s32.totalorder %s229, 63
      %s231 = scalar_select %p230, %s229, 63
      %s232 = smul.addr %s231, 4
      %s233 = scalar_lea.vmem %s4, %s232
      %s234 = smul.u32 32, %s17
      %p235 = scmp.lt.s32.totalorder %s17, 1
      %s236 = scalar_select %p235, %s17, 1
      %s237 = smul.addr %s236, 2
      %s238 = scalar_lea.vmem %s5, %s237
      %v240 = vld [vmem:[%s227] sm:$0xf]
      %v241 = vld [vmem:[%s227 + $0x4] sm:$0xf]
      %v242 = vld [vmem:[%s227 + $0x8] sm:$0xf]
      %v243 = vld [vmem:[%s227 + $0xc] sm:$0xf]
      %v244 = vld [vmem:[%s227 + $0x10] sm:$0xf]
      %v245 = vld [vmem:[%s227 + $0x14] sm:$0xf]
      %v246 = vld [vmem:[%s227 + $0x18] sm:$0xf]
      %v247 = vld [vmem:[%s227 + $0x1c] sm:$0xf]
      %v248 = vld [vmem:[%s227 + $0x20] sm:$0xf]
      %v249 = vld [vmem:[%s227 + $0x24] sm:$0xf]
      %v250 = vld [vmem:[%s227 + $0x28] sm:$0xf]
      %v251 = vld [vmem:[%s227 + $0x2c] sm:$0xf]
      %v252 = vld [vmem:[%s227 + $0x30] sm:$0xf]
      %v253 = vld [vmem:[%s227 + $0x34] sm:$0xf]
      %v254 = vld [vmem:[%s227 + $0x38] sm:$0xf]
      %v255 = vld [vmem:[%s227 + $0x3c] sm:$0xf]
      %v256 = vld [vmem:[%s227 + $0x40] sm:$0xf]
      %v257 = vld [vmem:[%s227 + $0x44] sm:$0xf]
      %v258 = vld [vmem:[%s227 + $0x48] sm:$0xf]
      %v259 = vld [vmem:[%s227 + $0x4c] sm:$0xf]
      %v260 = vld [vmem:[%s227 + $0x50] sm:$0xf]
      %v261 = vld [vmem:[%s227 + $0x54] sm:$0xf]
      %v262 = vld [vmem:[%s227 + $0x58] sm:$0xf]
      %v263 = vld [vmem:[%s227 + $0x5c] sm:$0xf]
      %v264 = vld [vmem:[%s227 + $0x60] sm:$0xf]
      %v265 = vld [vmem:[%s227 + $0x64] sm:$0xf]
      %v266 = vld [vmem:[%s227 + $0x68] sm:$0xf]
      %v267 = vld [vmem:[%s227 + $0x6c] sm:$0xf]
      %v268 = vld [vmem:[%s227 + $0x70] sm:$0xf]
      %v269 = vld [vmem:[%s227 + $0x74] sm:$0xf]
      %v270 = vld [vmem:[%s227 + $0x78] sm:$0xf]
      %v271 = vld [vmem:[%s227 + $0x7c] sm:$0xf]
      %v272 = vld [vmem:[%s1] sm:$0x3]
      %v273 = vld [vmem:[%s2] sm:$0x1]
      %v275 = vperm.slane %v273, 0
      %v309 = vunpack.c.l.b16 %v240
      %v310 = vunpack.c.l.b16 %v241
      %v311 = vunpack.c.l.b16 %v242
      %v312 = vunpack.c.l.b16 %v243
      %v313 = vunpack.c.l.b16 %v244
      %v314 = vunpack.c.l.b16 %v245
      %v315 = vunpack.c.l.b16 %v246
      %v316 = vunpack.c.l.b16 %v247
      %v317 = vunpack.c.l.b16 %v248
      %v318 = vunpack.c.l.b16 %v249
      %v319 = vunpack.c.l.b16 %v250
      %v320 = vunpack.c.l.b16 %v251
      %v321 = vunpack.c.l.b16 %v252
      %v322 = vunpack.c.l.b16 %v253
      %v323 = vunpack.c.l.b16 %v254
      %v324 = vunpack.c.l.b16 %v255
      %v325 = vunpack.c.l.b16 %v256
      %v326 = vunpack.c.l.b16 %v257
      %v327 = vunpack.c.l.b16 %v258
      %v328 = vunpack.c.l.b16 %v259
      %v329 = vunpack.c.l.b16 %v260
      %v330 = vunpack.c.l.b16 %v261
      %v331 = vunpack.c.l.b16 %v262
      %v332 = vunpack.c.l.b16 %v263
      %v333 = vunpack.c.l.b16 %v264
      %v334 = vunpack.c.l.b16 %v265
      %v335 = vunpack.c.l.b16 %v266
      %v336 = vunpack.c.l.b16 %v267
      %v337 = vunpack.c.l.b16 %v268
      %v338 = vunpack.c.l.b16 %v269
      %v339 = vunpack.c.l.b16 %v270
      %v340 = vunpack.c.l.b16 %v271
      %v341 = vpack.c.b16 %v310, %v309
      %v342 = vpack.c.b16 %v312, %v311
      %v343 = vpack.c.b16 %v314, %v313
      %v344 = vpack.c.b16 %v316, %v315
      %v345 = vpack.c.b16 %v318, %v317
      %v346 = vpack.c.b16 %v320, %v319
      %v347 = vpack.c.b16 %v322, %v321
      %v348 = vpack.c.b16 %v324, %v323
      %v349 = vpack.c.b16 %v326, %v325
      %v350 = vpack.c.b16 %v328, %v327
      %v351 = vpack.c.b16 %v330, %v329
      %v352 = vpack.c.b16 %v332, %v331
      %v353 = vpack.c.b16 %v334, %v333
      %v354 = vpack.c.b16 %v336, %v335
      %v355 = vpack.c.b16 %v338, %v337
      %v356 = vpack.c.b16 %v340, %v339
      %vm357 = vcmask 31744
      %v359 = vsel %vm357, %v341, 0
      %v362 = vsel %vm357, %v342, 0
      %v365 = vsel %vm357, %v343, 0
      %v368 = vsel %vm357, %v344, 0
      %v371 = vsel %vm357, %v345, 0
      %v374 = vsel %vm357, %v346, 0
      %v377 = vsel %vm357, %v347, 0
      %v380 = vsel %vm357, %v348, 0
      %v383 = vsel %vm357, %v349, 0
      %v386 = vsel %vm357, %v350, 0
      %v389 = vsel %vm357, %v351, 0
      %v392 = vsel %vm357, %v352, 0
      %v395 = vsel %vm357, %v353, 0
      %v398 = vsel %vm357, %v354, 0
      %v401 = vsel %vm357, %v355, 0
      %v404 = vsel %vm357, %v356, 0
      %vm406 = vcmask 1041408
      %v408 = vsel %vm406, %v272, 0
      %410 = vmatpush.bf16.msra.mxu0 0
      %411 = vmatpush.bf16.msra.mxu0 0
      %412 = vmatpush.bf16.msra.mxu0 0
      %413 = vmatpush.bf16.msra.mxu0 0
      %414 = vmatpush.bf16.msra.mxu0 0
      %415 = vmatpush.bf16.msra.mxu0 0
      %416 = vmatpush.bf16.msra.mxu0 0
      %417 = vmatpush.bf16.msra.mxu0 %v408
      %418 = vmatmul.bf16.gmra.mxu0 %v359
      %v419 = vpop.f32.mrf.mxu0
      %v420 = vadd.f32 %v275, %v419
      %v421 = vpop.f32.mrf.mxu0
      %v422 = vadd.f32 %v275, %v421
      %423 = vmatmul.bf16.gmra.mxu0 %v362
      %v424 = vpop.f32.mrf.mxu0
      %v425 = vadd.f32 %v275, %v424
      %v426 = vpop.f32.mrf.mxu0
      %v427 = vadd.f32 %v275, %v426
      %428 = vmatmul.bf16.gmra.mxu0 %v365
      %v429 = vpop.f32.mrf.mxu0
      %v430 = vadd.f32 %v275, %v429
      %v431 = vpop.f32.mrf.mxu0
      %v432 = vadd.f32 %v275, %v431
      %433 = vmatmul.bf16.gmra.mxu0 %v368
      %v434 = vpop.f32.mrf.mxu0
      %v435 = vadd.f32 %v275, %v434
      %v436 = vpop.f32.mrf.mxu0
      %v437 = vadd.f32 %v275, %v436
      %438 = vmatmul.bf16.gmra.mxu0 %v371
      %v439 = vpop.f32.mrf.mxu0
      %v440 = vadd.f32 %v275, %v439
      %v441 = vpop.f32.mrf.mxu0
      %v442 = vadd.f32 %v275, %v441
      %443 = vmatmul.bf16.gmra.mxu0 %v374
      %v444 = vpop.f32.mrf.mxu0
      %v445 = vadd.f32 %v275, %v444
      %v446 = vpop.f32.mrf.mxu0
      %v447 = vadd.f32 %v275, %v446
      %448 = vmatmul.bf16.gmra.mxu0 %v377
      %v449 = vpop.f32.mrf.mxu0
      %v450 = vadd.f32 %v275, %v449
      %v451 = vpop.f32.mrf.mxu0
      %v452 = vadd.f32 %v275, %v451
      %453 = vmatmul.bf16.gmra.mxu0 %v380
      %v454 = vpop.f32.mrf.mxu0
      %v455 = vadd.f32 %v275, %v454
      %v456 = vpop.f32.mrf.mxu0
      %v457 = vadd.f32 %v275, %v456
      %458 = vmatmul.bf16.gmra.mxu0 %v383
      %v459 = vpop.f32.mrf.mxu0
      %v460 = vadd.f32 %v275, %v459
      %v461 = vpop.f32.mrf.mxu0
      %v462 = vadd.f32 %v275, %v461
      %463 = vmatmul.bf16.gmra.mxu0 %v386
      %v464 = vpop.f32.mrf.mxu0
      %v465 = vadd.f32 %v275, %v464
      %v466 = vpop.f32.mrf.mxu0
      %v467 = vadd.f32 %v275, %v466
      %468 = vmatmul.bf16.gmra.mxu0 %v389
      %v469 = vpop.f32.mrf.mxu0
      %v470 = vadd.f32 %v275, %v469
      %v471 = vpop.f32.mrf.mxu0
      %v472 = vadd.f32 %v275, %v471
      %473 = vmatmul.bf16.gmra.mxu0 %v392
      %v474 = vpop.f32.mrf.mxu0
      %v475 = vadd.f32 %v275, %v474
      %v476 = vpop.f32.mrf.mxu0
      %v477 = vadd.f32 %v275, %v476
      %478 = vmatmul.bf16.gmra.mxu0 %v395
      %v479 = vpop.f32.mrf.mxu0
      %v480 = vadd.f32 %v275, %v479
      %v481 = vpop.f32.mrf.mxu0
      %v482 = vadd.f32 %v275, %v481
      %483 = vmatmul.bf16.gmra.mxu0 %v398
      %v484 = vpop.f32.mrf.mxu0
      %v485 = vadd.f32 %v275, %v484
      %v486 = vpop.f32.mrf.mxu0
      %v487 = vadd.f32 %v275, %v486
      %488 = vmatmul.bf16.gmra.mxu0 %v401
      %v489 = vpop.f32.mrf.mxu0
      %v490 = vadd.f32 %v275, %v489
      %v491 = vpop.f32.mrf.mxu0
      %v492 = vadd.f32 %v275, %v491
      %493 = vmatmul.bf16.gmra.mxu0 %v404
      %v494 = vpop.f32.mrf.mxu0
      %v495 = vadd.f32 %v275, %v494
      %v496 = vpop.f32.mrf.mxu0
      %v497 = vadd.f32 %v275, %v496
      %498 = vdwg.mxu0
      %v499 = vld [vmem:[%s3] sm:$0x1]
      %vm500 = vcmp.gt.f32.partialorder %v499, 0.0
      %v501 = vmax.f32 %v420, 0.0
      %v502 = vmax.f32 %v422, 0.0
      %v503 = vmax.f32 %v425, 0.0
      %v504 = vmax.f32 %v427, 0.0
      %v505 = vmax.f32 %v430, 0.0
      %v506 = vmax.f32 %v432, 0.0
      %v507 = vmax.f32 %v435, 0.0
      %v508 = vmax.f32 %v437, 0.0
      %v509 = vmax.f32 %v440, 0.0
      %v510 = vmax.f32 %v442, 0.0
      %v511 = vmax.f32 %v445, 0.0
      %v512 = vmax.f32 %v447, 0.0
      %v513 = vmax.f32 %v450, 0.0
      %v514 = vmax.f32 %v452, 0.0
      %v515 = vmax.f32 %v455, 0.0
      %v516 = vmax.f32 %v457, 0.0
      %v517 = vmax.f32 %v460, 0.0
      %v518 = vmax.f32 %v462, 0.0
      %v519 = vmax.f32 %v465, 0.0
      %v520 = vmax.f32 %v467, 0.0
      %v521 = vmax.f32 %v470, 0.0
      %v522 = vmax.f32 %v472, 0.0
      %v523 = vmax.f32 %v475, 0.0
      %v524 = vmax.f32 %v477, 0.0
      %v525 = vmax.f32 %v480, 0.0
      %v526 = vmax.f32 %v482, 0.0
      %v527 = vmax.f32 %v485, 0.0
      %v528 = vmax.f32 %v487, 0.0
      %v529 = vmax.f32 %v490, 0.0
      %v530 = vmax.f32 %v492, 0.0
      %v531 = vmax.f32 %v495, 0.0
      %v532 = vmax.f32 %v497, 0.0
      %v533 = vsel %vm500, 1, 0
      %v534 = vperm.slane %v533, 0
      %vm535 = vcmp.eq.s32.totalorder %v534, 1
      %v536 = vsel %vm535, %v501, %v420
      %v537 = vsel %vm535, %v502, %v422
      %v538 = vsel %vm535, %v503, %v425
      %v539 = vsel %vm535, %v504, %v427
      %v540 = vsel %vm535, %v505, %v430
      %v541 = vsel %vm535, %v506, %v432
      %v542 = vsel %vm535, %v507, %v435
      %v543 = vsel %vm535, %v508, %v437
      %v544 = vsel %vm535, %v509, %v440
      %v545 = vsel %vm535, %v510, %v442
      %v546 = vsel %vm535, %v511, %v445
      %v547 = vsel %vm535, %v512, %v447
      %v548 = vsel %vm535, %v513, %v450
      %v549 = vsel %vm535, %v514, %v452
      %v550 = vsel %vm535, %v515, %v455
      %v551 = vsel %vm535, %v516, %v457
      %v552 = vsel %vm535, %v517, %v460
      %v553 = vsel %vm535, %v518, %v462
      %v554 = vsel %vm535, %v519, %v465
      %v555 = vsel %vm535, %v520, %v467
      %v556 = vsel %vm535, %v521, %v470
      %v557 = vsel %vm535, %v522, %v472
      %v558 = vsel %vm535, %v523, %v475
      %v559 = vsel %vm535, %v524, %v477
      %v560 = vsel %vm535, %v525, %v480
      %v561 = vsel %vm535, %v526, %v482
      %v562 = vsel %vm535, %v527, %v485
      %v563 = vsel %vm535, %v528, %v487
      %v564 = vsel %vm535, %v529, %v490
      %v565 = vsel %vm535, %v530, %v492
      %v566 = vsel %vm535, %v531, %v495
      %v567 = vsel %vm535, %v532, %v497
      %v568 = vpack.c.bf16 %v536, %v536
      %v569 = vpack.c.bf16 %v537, %v537
      %v570 = vpack.c.bf16 %v538, %v538
      %v571 = vpack.c.bf16 %v539, %v539
      %v572 = vpack.c.bf16 %v540, %v540
      %v573 = vpack.c.bf16 %v541, %v541
      %v574 = vpack.c.bf16 %v542, %v542
      %v575 = vpack.c.bf16 %v543, %v543
      %v576 = vpack.c.bf16 %v544, %v544
      %v577 = vpack.c.bf16 %v545, %v545
      %v578 = vpack.c.bf16 %v546, %v546
      %v579 = vpack.c.bf16 %v547, %v547
      %v580 = vpack.c.bf16 %v548, %v548
      %v581 = vpack.c.bf16 %v549, %v549
      %v582 = vpack.c.bf16 %v550, %v550
      %v583 = vpack.c.bf16 %v551, %v551
      %v584 = vpack.c.bf16 %v552, %v552
      %v585 = vpack.c.bf16 %v553, %v553
      %v586 = vpack.c.bf16 %v554, %v554
      %v587 = vpack.c.bf16 %v555, %v555
      %v588 = vpack.c.bf16 %v556, %v556
      %v589 = vpack.c.bf16 %v557, %v557
      %v590 = vpack.c.bf16 %v558, %v558
      %v591 = vpack.c.bf16 %v559, %v559
      %v592 = vpack.c.bf16 %v560, %v560
      %v593 = vpack.c.bf16 %v561, %v561
      %v594 = vpack.c.bf16 %v562, %v562
      %v595 = vpack.c.bf16 %v563, %v563
      %v596 = vpack.c.bf16 %v564, %v564
      %v597 = vpack.c.bf16 %v565, %v565
      %v598 = vpack.c.bf16 %v566, %v566
      %v599 = vpack.c.bf16 %v567, %v567
      %600 = vst [vmem:[%s233] sm:$0xf] %v568
      %601 = vst [vmem:[%s233 + $0x4] sm:$0xf] %v569
      %602 = vst [vmem:[%s233 + $0x8] sm:$0xf] %v570
      %603 = vst [vmem:[%s233 + $0xc] sm:$0xf] %v571
      %604 = vst [vmem:[%s233 + $0x10] sm:$0xf] %v572
      %605 = vst [vmem:[%s233 + $0x14] sm:$0xf] %v573
      %606 = vst [vmem:[%s233 + $0x18] sm:$0xf] %v574
      %607 = vst [vmem:[%s233 + $0x1c] sm:$0xf] %v575
      %608 = vst [vmem:[%s233 + $0x20] sm:$0xf] %v576
      %609 = vst [vmem:[%s233 + $0x24] sm:$0xf] %v577
      %610 = vst [vmem:[%s233 + $0x28] sm:$0xf] %v578
      %611 = vst [vmem:[%s233 + $0x2c] sm:$0xf] %v579
      %612 = vst [vmem:[%s233 + $0x30] sm:$0xf] %v580
      %613 = vst [vmem:[%s233 + $0x34] sm:$0xf] %v581
      %614 = vst [vmem:[%s233 + $0x38] sm:$0xf] %v582
      %615 = vst [vmem:[%s233 + $0x3c] sm:$0xf] %v583
      %616 = vst [vmem:[%s233 + $0x40] sm:$0xf] %v584
      %617 = vst [vmem:[%s233 + $0x44] sm:$0xf] %v585
      %618 = vst [vmem:[%s233 + $0x48] sm:$0xf] %v586
      %619 = vst [vmem:[%s233 + $0x4c] sm:$0xf] %v587
      %620 = vst [vmem:[%s233 + $0x50] sm:$0xf] %v588
      %621 = vst [vmem:[%s233 + $0x54] sm:$0xf] %v589
      %622 = vst [vmem:[%s233 + $0x58] sm:$0xf] %v590
      %623 = vst [vmem:[%s233 + $0x5c] sm:$0xf] %v591
      %624 = vst [vmem:[%s233 + $0x60] sm:$0xf] %v592
      %625 = vst [vmem:[%s233 + $0x64] sm:$0xf] %v593
      %626 = vst [vmem:[%s233 + $0x68] sm:$0xf] %v594
      %627 = vst [vmem:[%s233 + $0x6c] sm:$0xf] %v595
      %628 = vst [vmem:[%s233 + $0x70] sm:$0xf] %v596
      %629 = vst [vmem:[%s233 + $0x74] sm:$0xf] %v597
      %630 = vst [vmem:[%s233 + $0x78] sm:$0xf] %v598
      %631 = vst [vmem:[%s233 + $0x7c] sm:$0xf] %v599
      %v632 = vadd.f32 %v536, %v537
      %v633 = vadd.f32 %v632, %v538
      %v634 = vadd.f32 %v633, %v539
      %v635 = vadd.f32 %v634, %v540
      %v636 = vadd.f32 %v635, %v541
      %v637 = vadd.f32 %v636, %v542
      %v638 = vadd.f32 %v637, %v543
      %v639 = vadd.f32 %v638, %v544
      %v640 = vadd.f32 %v639, %v545
      %v641 = vadd.f32 %v640, %v546
      %v642 = vadd.f32 %v641, %v547
      %v643 = vadd.f32 %v642, %v548
      %v644 = vadd.f32 %v643, %v549
      %v645 = vadd.f32 %v644, %v550
      %v646 = vadd.f32 %v645, %v551
      %v647 = vadd.f32 %v646, %v552
      %v648 = vadd.f32 %v647, %v553
      %v649 = vadd.f32 %v648, %v554
      %v650 = vadd.f32 %v649, %v555
      %v651 = vadd.f32 %v650, %v556
      %v652 = vadd.f32 %v651, %v557
      %v653 = vadd.f32 %v652, %v558
      %v654 = vadd.f32 %v653, %v559
      %v655 = vadd.f32 %v654, %v560
      %v656 = vadd.f32 %v655, %v561
      %v657 = vadd.f32 %v656, %v562
      %v658 = vadd.f32 %v657, %v563
      %v659 = vadd.f32 %v658, %v564
      %v660 = vadd.f32 %v659, %v565
      %v661 = vadd.f32 %v660, %v566
      %v662 = vadd.f32 %v661, %v567
      %v663 = vrot.slane %v662, 4
      %v664 = vadd.f32 %v662, %v663
      %v665 = vrot.slane %v664, 2
      %v666 = vadd.f32 %v664, %v665
      %v667 = vrot.slane %v666, 1
      %v668 = vadd.f32 %v666, %v667
      %669 = vst [vmem:[%s238] sm:$0x1] %v668
      %v670 = vmul.f32 %v536, %v536
      %v671 = vmul.f32 %v537, %v537
      %v672 = vmul.f32 %v538, %v538
      %v673 = vmul.f32 %v539, %v539
      %v674 = vmul.f32 %v540, %v540
      %v675 = vmul.f32 %v541, %v541
      %v676 = vmul.f32 %v542, %v542
      %v677 = vmul.f32 %v543, %v543
      %v678 = vmul.f32 %v544, %v544
      %v679 = vmul.f32 %v545, %v545
      %v680 = vmul.f32 %v546, %v546
      %v681 = vmul.f32 %v547, %v547
      %v682 = vmul.f32 %v548, %v548
      %v683 = vmul.f32 %v549, %v549
      %v684 = vmul.f32 %v550, %v550
      %v685 = vmul.f32 %v551, %v551
      %v686 = vmul.f32 %v552, %v552
      %v687 = vmul.f32 %v553, %v553
      %v688 = vmul.f32 %v554, %v554
      %v689 = vmul.f32 %v555, %v555
      %v690 = vmul.f32 %v556, %v556
      %v691 = vmul.f32 %v557, %v557
      %v692 = vmul.f32 %v558, %v558
      %v693 = vmul.f32 %v559, %v559
      %v694 = vmul.f32 %v560, %v560
      %v695 = vmul.f32 %v561, %v561
      %v696 = vmul.f32 %v562, %v562
      %v697 = vmul.f32 %v563, %v563
      %v698 = vmul.f32 %v564, %v564
      %v699 = vmul.f32 %v565, %v565
      %v700 = vmul.f32 %v566, %v566
      %v701 = vmul.f32 %v567, %v567
      %v702 = vadd.f32 %v670, %v671
      %v703 = vadd.f32 %v702, %v672
      %v704 = vadd.f32 %v703, %v673
      %v705 = vadd.f32 %v704, %v674
      %v706 = vadd.f32 %v705, %v675
      %v707 = vadd.f32 %v706, %v676
      %v708 = vadd.f32 %v707, %v677
      %v709 = vadd.f32 %v708, %v678
      %v710 = vadd.f32 %v709, %v679
      %v711 = vadd.f32 %v710, %v680
      %v712 = vadd.f32 %v711, %v681
      %v713 = vadd.f32 %v712, %v682
      %v714 = vadd.f32 %v713, %v683
      %v715 = vadd.f32 %v714, %v684
      %v716 = vadd.f32 %v715, %v685
      %v717 = vadd.f32 %v716, %v686
      %v718 = vadd.f32 %v717, %v687
      %v719 = vadd.f32 %v718, %v688
      %v720 = vadd.f32 %v719, %v689
      %v721 = vadd.f32 %v720, %v690
      %v722 = vadd.f32 %v721, %v691
      %v723 = vadd.f32 %v722, %v692
      %v724 = vadd.f32 %v723, %v693
      %v725 = vadd.f32 %v724, %v694
      %v726 = vadd.f32 %v725, %v695
      %v727 = vadd.f32 %v726, %v696
      %v728 = vadd.f32 %v727, %v697
      %v729 = vadd.f32 %v728, %v698
      %v730 = vadd.f32 %v729, %v699
      %v731 = vadd.f32 %v730, %v700
      %v732 = vadd.f32 %v731, %v701
      %v733 = vrot.slane %v732, 4
      %v734 = vadd.f32 %v732, %v733
      %v735 = vrot.slane %v734, 2
      %v736 = vadd.f32 %v734, %v735
      %v737 = vrot.slane %v736, 1
      %v738 = vadd.f32 %v736, %v737
      %739 = vst [vmem:[%s238 + $0x1] sm:$0x1] %v738
      %s740 = smul.u32 32, %s17
      %p741 = scmp.lt.s32.totalorder %s740, 63
      %s742 = scalar_select %p741, %s740, 63
      %s743 = smul.addr %s742, 4
      %s744 = scalar_lea.vmem %s4, %s743
      %p745 = scmp.lt.s32.totalorder %s17, 1
      %s746 = scalar_select %p745, %s17, 1
      %s747 = smul.addr %s746, 2
      %s748 = scalar_lea.vmem %s5, %s747
      // Predicated region
      $region37: #{_lambda_.4} parent=35 // pred_check
        %p749 = pneg %p124
      $region38: #{_lambda_.4} parent=35 // pred_check_branch
        %751 = sbr.rel (%p749) target = $region40
      $region39: #{_lambda_.4} parent=35 // pred_region
        %s752 = smul.u32 32, %s17
      $region40: #{_lambda_.4} parent=35 // pred_fallthru
        _
      // Predicated region
      $region41: #{_lambda_.4} parent=35 // pred_check
        %p753 = pneg %p150
      $region42: #{_lambda_.4} parent=35 // pred_check_branch
        %755 = sbr.rel (%p753) target = $region44
      $region43: #{_lambda_.4} parent=35 // pred_region
        _
      $region44: #{_lambda_.4} parent=35 // pred_fallthru
        _
    $region36: #{_lambda_.4} parent=5 // pred_fallthru
      _
    %p756 = scmp.le.s32.totalorder 2, %s12
    // Predicated region
    $region45: #{_lambda_.4} parent=5 // pred_check
      %p757 = pneg %p756
    $region46: #{_lambda_.4} parent=5 // pred_check_branch
      %759 = sbr.rel (%p757) target = $region48
    $region47: #{_lambda_.4} parent=5 // pred_region
      %s760 = ssub.s32 %s12, 2
      // Predicated region
      $region49: #{_lambda_.4} parent=47 // pred_check
        %p761 = pneg %p130
      $region50: #{_lambda_.4} parent=47 // pred_check_branch
        %763 = sbr.rel (%p761) target = $region52
      $region51: #{_lambda_.4} parent=47 // pred_region
        %s764 = smul.u32 32, %s18
        %p765 = scmp.lt.s32.totalorder %s764, 63
        %s766 = scalar_select %p765, %s764, 63
        %s767 = smul.addr %s766, 4
        %s768 = scalar_lea.vmem %s4, %s767
      $region52: #{_lambda_.4} parent=47 // pred_fallthru
        _
      // Predicated region
      $region53: #{_lambda_.4} parent=47 // pred_check
        %p769 = pneg %p156
      $region54: #{_lambda_.4} parent=47 // pred_check_branch
        %771 = sbr.rel (%p769) target = $region56
      $region55: #{_lambda_.4} parent=47 // pred_region
        %p772 = scmp.lt.s32.totalorder %s18, 1
        %s773 = scalar_select %p772, %s18, 1
        %s774 = smul.addr %s773, 2
        %s775 = scalar_lea.vmem %s5, %s774
      $region56: #{_lambda_.4} parent=47 // pred_fallthru
        _
    $region48: #{_lambda_.4} parent=5 // pred_fallthru
      _
  $region6: #{_lambda_.4} parent=0 // loop_footer
    %s16 = sadd.s32 1, %s12
  $region7: #{_lambda_.4} parent=0 // loop_footer_branch
    %11 = sbr.rel target = $region3
  $region8: #{_lambda_.4} parent=0 // loop_exit
    _

// kernel: _lambda_.5
$region0: #{_lambda_.5}
  #allocation0 [shape = 'u32[]', space=smem, size = 0x4, offset = 0x4, fixed_abs, tag = 'smem constant byte address 0x4 - core index']
  #allocation1 [shape = 'u32[72,128]{1,0:T(1,128)}', space=vmem, size = 0x9000, scoped, tag = 'internal scratch']
  #allocation2 [shape = 'f32[18,18,128]{2,1,0:T(8,128)}', space=vmem, size = 0x36000, scoped, tag = 'scratch operand']
  %s0 = inlined_call_operand.vmem [shape: bf16[2,18,18,128], index: 0, kind: input, shape index: {}]
  %s1 = inlined_call_operand.vmem [shape: bf16[9,128,128], index: 1, kind: input, shape index: {}]
  %s2 = inlined_call_operand.vmem [shape: bf16[2,256,128], index: 2, kind: output, shape index: {0}]
  %s3 = inlined_call_operand.vmem [shape: f32[2,2,128], index: 3, kind: output, shape index: {1}]
  %4 = xla_tuple %s2, %s3
  %s5 = sld [smem:[#allocation0]]
  $region49: #{_lambda_.5} parent=0
    _
  %s7 = ssub.s32 1, %s5
  %s8 = scalar_select 0, %s7, %s5
  loop: start=0, step=1, limit=4
  $region2: #{_lambda_.5} parent=0 // loop_pre_header
    _
  $region3: #{_lambda_.5} parent=0 // loop_header
    %s10 = sphi 0, %s14
    %p11 = scmp.ge.s32.totalorder %s10, 4
    %s20 = sphi 0, %s22
    %s23 = sphi 0, %s20
    %s24 = sphi 0, %s23
    %s40 = sphi 0, %s24
    %s44 = sphi 0, %s44
    %s46 = sphi 0, %s44
    %s47 = sphi 0, %s46
    %s61 = sphi 0, %s47
    %s67 = sphi 0, %s69
    %s70 = sphi 0, %s67
    %s71 = sphi 0, %s70
    %s87 = sphi 0, %s71
    %s93 = sphi 0, %s95
    %s96 = sphi 0, %s93
    %s97 = sphi 0, %s96
    %s113 = sphi 0, %s97
  $region4: #{_lambda_.5} parent=0 // loop_header_branch
    %13 = sbr.rel (%p11) target = $region8
  $region5: #{_lambda_.5} parent=0 // loop_body
    %s15 = ssub.s32 %s10, 1
    %s16 = ssub.s32 %s10, 2
    %s17 = sadd.s32 %s10, 1
    %s18 = ssub.s32 %s10, %s17
    %p19 = scmp.eq.s32.totalorder %s18, 0
    %s21 = sadd.s32 %s20, 1
    %s22 = scalar_select %p19, %s20, %s21
    %p25 = pneg %p19
    %p26 = scmp.eq.s32.totalorder %s10, 1
    %p27 = por %p25, %p26
    %p28 = scmp.ne.s32.totalorder %s20, %s23
    %p29 = scmp.eq.s32.totalorder %s10, 0
    %p30 = por %p28, %p29
    %p31 = scmp.ne.s32.totalorder %s20, %s23
    %p32 = scmp.eq.s32.totalorder %s15, 1
    %p33 = por %p31, %p32
    %p34 = scmp.ne.s32.totalorder %s23, %s24
    %p35 = scmp.eq.s32.totalorder %s15, 0
    %p36 = por %p34, %p35
    %p37 = scmp.ne.s32.totalorder %s23, %s24
    %p38 = scmp.eq.s32.totalorder %s16, 1
    %p39 = por %p37, %p38
    %p41 = scmp.ne.s32.totalorder %s24, %s40
    %p42 = scmp.eq.s32.totalorder %s16, 0
    %p43 = por %p41, %p42
    %s45 = sadd.s32 %s44, 1
    %p48 = scmp.eq.s32.totalorder %s10, 1
    %p49 = scmp.ne.s32.totalorder %s44, %s46
    %p50 = scmp.eq.s32.totalorder %s10, 0
    %p51 = por %p49, %p50
    %p52 = scmp.ne.s32.totalorder %s44, %s46
    %p53 = scmp.eq.s32.totalorder %s15, 1
    %p54 = por %p52, %p53
    %p55 = scmp.ne.s32.totalorder %s46, %s47
    %p56 = scmp.eq.s32.totalorder %s15, 0
    %p57 = por %p55, %p56
    %p58 = scmp.ne.s32.totalorder %s46, %s47
    %p59 = scmp.eq.s32.totalorder %s16, 1
    %p60 = por %p58, %p59
    %p62 = scmp.ne.s32.totalorder %s47, %s61
    %p63 = scmp.eq.s32.totalorder %s16, 0
    %p64 = por %p62, %p63
    %s65 = ssub.s32 %s10, %s17
    %p66 = scmp.eq.s32.totalorder %s65, 0
    %s68 = sadd.s32 %s67, 1
    %s69 = scalar_select %p66, %s67, %s68
    %p72 = pneg %p66
    %p73 = scmp.eq.s32.totalorder %s10, 1
    %p74 = por %p72, %p73
    %p75 = scmp.ne.s32.totalorder %s67, %s70
    %p76 = scmp.eq.s32.totalorder %s10, 0
    %p77 = por %p75, %p76
    %p78 = scmp.ne.s32.totalorder %s67, %s70
    %p79 = scmp.eq.s32.totalorder %s15, 1
    %p80 = por %p78, %p79
    %p81 = scmp.ne.s32.totalorder %s70, %s71
    %p82 = scmp.eq.s32.totalorder %s15, 0
    %p83 = por %p81, %p82
    %p84 = scmp.ne.s32.totalorder %s70, %s71
    %p85 = scmp.eq.s32.totalorder %s16, 1
    %p86 = por %p84, %p85
    %p88 = scmp.ne.s32.totalorder %s71, %s87
    %p89 = scmp.eq.s32.totalorder %s16, 0
    %p90 = por %p88, %p89
    %s91 = ssub.s32 %s10, %s17
    %p92 = scmp.eq.s32.totalorder %s91, 0
    %s94 = sadd.s32 %s93, 1
    %s95 = scalar_select %p92, %s93, %s94
    %p98 = pneg %p92
    %p99 = scmp.eq.s32.totalorder %s10, 1
    %p100 = por %p98, %p99
    %p101 = scmp.ne.s32.totalorder %s93, %s96
    %p102 = scmp.eq.s32.totalorder %s10, 0
    %p103 = por %p101, %p102
    %p104 = scmp.ne.s32.totalorder %s93, %s96
    %p105 = scmp.eq.s32.totalorder %s15, 1
    %p106 = por %p104, %p105
    %p107 = scmp.ne.s32.totalorder %s96, %s97
    %p108 = scmp.eq.s32.totalorder %s15, 0
    %p109 = por %p107, %p108
    %p110 = scmp.ne.s32.totalorder %s96, %s97
    %p111 = scmp.eq.s32.totalorder %s16, 1
    %p112 = por %p110, %p111
    %p114 = scmp.ne.s32.totalorder %s97, %s113
    %p115 = scmp.eq.s32.totalorder %s16, 0
    %p116 = por %p114, %p115
    %p117 = scmp.le.s32.totalorder 1, %s10
    %p118 = scmp.lt.s32.totalorder %s10, 3
    %p119 = pnand %p117, %p118
    %p120 = pneg %p119
    // Predicated region
    $region9: #{_lambda_.5} parent=5 // pred_check
      _
    $region10: #{_lambda_.5} parent=5 // pred_check_branch
      %122 = sbr.rel (%p119) target = $region12
    $region11: #{_lambda_.5} parent=5 // pred_region
      %s123 = ssub.s32 %s10, 1
      // Predicated region
      $region13: #{_lambda_.5} parent=11 // pred_check
        %p124 = pneg %p57
      $region14: #{_lambda_.5} parent=11 // pred_check_branch
        %126 = sbr.rel (%p124) target = $region16
      $region15: #{_lambda_.5} parent=11 // pred_region
        _
      $region16: #{_lambda_.5} parent=11 // pred_fallthru
        _
    $region12: #{_lambda_.5} parent=5 // pred_fallthru
      _
    %p127 = scmp.lt.s32.totalorder %s10, 2
    // Predicated region
    $region17: #{_lambda_.5} parent=5 // pred_check
      %p128 = pneg %p127
    $region18: #{_lambda_.5} parent=5 // pred_check_branch
      %130 = sbr.rel (%p128) target = $region20
    $region19: #{_lambda_.5} parent=5 // pred_region
      // Predicated region
      $region21: #{_lambda_.5} parent=19 // pred_check
        %p131 = pneg %p30
      $region22: #{_lambda_.5} parent=19 // pred_check_branch
        %133 = sbr.rel (%p131) target = $region24
      $region23: #{_lambda_.5} parent=19 // pred_region
        %p134 = scmp.lt.s32.totalorder %s10, 1
        %s135 = scalar_select %p134, %s10, 1
        %s136 = smul.addr %s135, 54
        %s137 = smul.addr %s136, 4
        %s138 = scalar_lea.vmem %s0, %s137
      $region24: #{_lambda_.5} parent=19 // pred_fallthru
        _
    $region20: #{_lambda_.5} parent=5 // pred_fallthru
      _
    %p139 = scmp.le.s32.totalorder 1, %s10
    %p140 = scmp.lt.s32.totalorder %s10, 3
    %p141 = pnand %p139, %p140
    %p142 = pneg %p141
    // Predicated region
    $region25: #{_lambda_.5} parent=5 // pred_check
      _
    $region26: #{_lambda_.5} parent=5 // pred_check_branch
      %144 = sbr.rel (%p141) target = $region28
    $region27: #{_lambda_.5} parent=5 // pred_region
      %s145 = ssub.s32 %s10, 1
      %p146 = scmp.lt.s32.totalorder %s15, 1
      %s147 = scalar_select %p146, %s15, 1
      %s148 = smul.addr %s147, 54
      %s149 = smul.addr %s148, 4
      %s150 = scalar_lea.vmem %s0, %s149
      %p151 = pneg %p36
      %p152 = pneg %p33
      %p153 = pneg %p57
      %p154 = pneg %p54
      %p155 = pneg %p83
      %p156 = pneg %p80
      %p157 = scmp.lt.s32.totalorder %s15, 1
      %s158 = scalar_select %p157, %s15, 1
      %s159 = smul.addr %s158, 32
      %s160 = smul.addr %s159, 4
      %s161 = scalar_lea.vmem %s2, %s160
      %p162 = pneg %p109
      %p163 = pneg %p106
      %p164 = scmp.lt.s32.totalorder %s15, 1
      %s165 = scalar_select %p164, %s15, 1
      %s166 = smul.addr %s165, 2
      %s167 = scalar_lea.vmem %s3, %s166
      %p168 = scmp.lt.s32.totalorder %s15, 1
      %s169 = scalar_select %p168, %s15, 1
      %s170 = smul.addr %s169, 54
      %s171 = smul.addr %s170, 4
      %s172 = scalar_lea.vmem %s0, %s171
      %p173 = scmp.lt.s32.totalorder %s15, 1
      %s174 = scalar_select %p173, %s15, 1
      %s175 = smul.addr %s174, 32
      %s176 = smul.addr %s175, 4
      %s177 = scalar_lea.vmem %s2, %s176
      %p178 = scmp.lt.s32.totalorder %s15, 1
      %s179 = scalar_select %p178, %s15, 1
      %s180 = smul.addr %s179, 2
      %s181 = scalar_lea.vmem %s3, %s180
      %v182 = vld [vmem:[%s172] sm:$0xf]
      %v183 = vld [vmem:[%s172 + $0x4] sm:$0xf]
      %v184 = vld [vmem:[%s172 + $0x8] sm:$0x1]
      %v185 = vld [vmem:[%s172 + $0xc] sm:$0xf]
      %v186 = vld [vmem:[%s172 + $0x10] sm:$0xf]
      %v187 = vld [vmem:[%s172 + $0x14] sm:$0x1]
      %v188 = vld [vmem:[%s172 + $0x18] sm:$0xf]
      %v189 = vld [vmem:[%s172 + $0x1c] sm:$0xf]
      %v190 = vld [vmem:[%s172 + $0x20] sm:$0x1]
      %v191 = vld [vmem:[%s172 + $0x24] sm:$0xf]
      %v192 = vld [vmem:[%s172 + $0x28] sm:$0xf]
      %v193 = vld [vmem:[%s172 + $0x2c] sm:$0x1]
      %v194 = vld [vmem:[%s172 + $0x30] sm:$0xf]
      %v195 = vld [vmem:[%s172 + $0x34] sm:$0xf]
      %v196 = vld [vmem:[%s172 + $0x38] sm:$0x1]
      %v197 = vld [vmem:[%s172 + $0x3c] sm:$0xf]
      %v198 = vld [vmem:[%s172 + $0x40] sm:$0xf]
      %v199 = vld [vmem:[%s172 + $0x44] sm:$0x1]
      %v200 = vld [vmem:[%s172 + $0x48] sm:$0xf]
      %v201 = vld [vmem:[%s172 + $0x4c] sm:$0xf]
      %v202 = vld [vmem:[%s172 + $0x50] sm:$0x1]
      %v203 = vld [vmem:[%s172 + $0x54] sm:$0xf]
      %v204 = vld [vmem:[%s172 + $0x58] sm:$0xf]
      %v205 = vld [vmem:[%s172 + $0x5c] sm:$0x1]
      %v206 = vld [vmem:[%s172 + $0x60] sm:$0xf]
      %v207 = vld [vmem:[%s172 + $0x64] sm:$0xf]
      %v208 = vld [vmem:[%s172 + $0x68] sm:$0x1]
      %v209 = vld [vmem:[%s172 + $0x6c] sm:$0xf]
      %v210 = vld [vmem:[%s172 + $0x70] sm:$0xf]
      %v211 = vld [vmem:[%s172 + $0x74] sm:$0x1]
      %v212 = vld [vmem:[%s172 + $0x78] sm:$0xf]
      %v213 = vld [vmem:[%s172 + $0x7c] sm:$0xf]
      %v214 = vld [vmem:[%s172 + $0x80] sm:$0x1]
      %v215 = vld [vmem:[%s172 + $0x84] sm:$0xf]
      %v216 = vld [vmem:[%s172 + $0x88] sm:$0xf]
      %v217 = vld [vmem:[%s172 + $0x8c] sm:$0x1]
      %v218 = vld [vmem:[%s172 + $0x90] sm:$0xf]
      %v219 = vld [vmem:[%s172 + $0x94] sm:$0xf]
      %v220 = vld [vmem:[%s172 + $0x98] sm:$0x1]
      %v221 = vld [vmem:[%s172 + $0x9c] sm:$0xf]
      %v222 = vld [vmem:[%s172 + $0xa0] sm:$0xf]
      %v223 = vld [vmem:[%s172 + $0xa4] sm:$0x1]
      %v224 = vld [vmem:[%s172 + $0xa8] sm:$0xf]
      %v225 = vld [vmem:[%s172 + $0xac] sm:$0xf]
      %v226 = vld [vmem:[%s172 + $0xb0] sm:$0x1]
      %v227 = vld [vmem:[%s172 + $0xb4] sm:$0xf]
      %v228 = vld [vmem:[%s172 + $0xb8] sm:$0xf]
      %v229 = vld [vmem:[%s172 + $0xbc] sm:$0x1]
      %v230 = vld [vmem:[%s172 + $0xc0] sm:$0xf]
      %v231 = vld [vmem:[%s172 + $0xc4] sm:$0xf]
      %v232 = vld [vmem:[%s172 + $0xc8] sm:$0x1]
      %v233 = vld [vmem:[%s172 + $0xcc] sm:$0xf]
      %v234 = vld [vmem:[%s172 + $0xd0] sm:$0xf]
      %v235 = vld [vmem:[%s172 + $0xd4] sm:$0x1]
      %v236 = vunpack.c.l.bf16 %v182
      %v237 = vunpack.c.l.bf16 %v183
      %v238 = vunpack.c.l.bf16 %v184
      %v239 = vunpack.c.l.bf16 %v185
      %v240 = vunpack.c.l.bf16 %v186
      %v241 = vunpack.c.l.bf16 %v187
      %v242 = vunpack.c.l.bf16 %v188
      %v243 = vunpack.c.l.bf16 %v189
      %v244 = vunpack.c.l.bf16 %v190
      %v245 = vunpack.c.l.bf16 %v191
      %v246 = vunpack.c.l.bf16 %v192
      %v247 = vunpack.c.l.bf16 %v193
      %v248 = vunpack.c.l.bf16 %v194
      %v249 = vunpack.c.l.bf16 %v195
      %v250 = vunpack.c.l.bf16 %v196
      %v251 = vunpack.c.l.bf16 %v197
      %v252 = vunpack.c.l.bf16 %v198
      %v253 = vunpack.c.l.bf16 %v199
      %v254 = vunpack.c.l.bf16 %v200
      %v255 = vunpack.c.l.bf16 %v201
      %v256 = vunpack.c.l.bf16 %v202
      %v257 = vunpack.c.l.bf16 %v203
      %v258 = vunpack.c.l.bf16 %v204
      %v259 = vunpack.c.l.bf16 %v205
      %v260 = vunpack.c.l.bf16 %v206
      %v261 = vunpack.c.l.bf16 %v207
      %v262 = vunpack.c.l.bf16 %v208
      %v263 = vunpack.c.l.bf16 %v209
      %v264 = vunpack.c.l.bf16 %v210
      %v265 = vunpack.c.l.bf16 %v211
      %v266 = vunpack.c.l.bf16 %v212
      %v267 = vunpack.c.l.bf16 %v213
      %v268 = vunpack.c.l.bf16 %v214
      %v269 = vunpack.c.l.bf16 %v215
      %v270 = vunpack.c.l.bf16 %v216
      %v271 = vunpack.c.l.bf16 %v217
      %v272 = vunpack.c.l.bf16 %v218
      %v273 = vunpack.c.l.bf16 %v219
      %v274 = vunpack.c.l.bf16 %v220
      %v275 = vunpack.c.l.bf16 %v221
      %v276 = vunpack.c.l.bf16 %v222
      %v277 = vunpack.c.l.bf16 %v223
      %v278 = vunpack.c.l.bf16 %v224
      %v279 = vunpack.c.l.bf16 %v225
      %v280 = vunpack.c.l.bf16 %v226
      %v281 = vunpack.c.l.bf16 %v227
      %v282 = vunpack.c.l.bf16 %v228
      %v283 = vunpack.c.l.bf16 %v229
      %v284 = vunpack.c.l.bf16 %v230
      %v285 = vunpack.c.l.bf16 %v231
      %v286 = vunpack.c.l.bf16 %v232
      %v287 = vunpack.c.l.bf16 %v233
      %v288 = vunpack.c.l.bf16 %v234
      %v289 = vunpack.c.l.bf16 %v235
      %290 = vst [vmem:[#allocation2] sm:$0xff] %v236
      %291 = vst [vmem:[#allocation2 + $0x8] sm:$0xff] %v237
      %292 = vst [vmem:[#allocation2 + $0x10] sm:$0x3] %v238
      %293 = vst [vmem:[#allocation2 + $0x18] sm:$0xff] %v239
      %294 = vst [vmem:[#allocation2 + $0x20] sm:$0xff] %v240
      %295 = vst [vmem:[#allocation2 + $0x28] sm:$0x3] %v241
      %296 = vst [vmem:[#allocation2 + $0x30] sm:$0xff] %v242
      %297 = vst [vmem:[#allocation2 + $0x38] sm:$0xff] %v243
      %298 = vst [vmem:[#allocation2 + $0x40] sm:$0x3] %v244
      %299 = vst [vmem:[#allocation2 + $0x48] sm:$0xff] %v245
      %300 = vst [vmem:[#allocation2 + $0x50] sm:$0xff] %v246
      %301 = vst [vmem:[#allocation2 + $0x58] sm:$0x3] %v247
      %302 = vst [vmem:[#allocation2 + $0x60] sm:$0xff] %v248
      %303 = vst [vmem:[#allocation2 + $0x68] sm:$0xff] %v249
      %304 = vst [vmem:[#allocation2 + $0x70] sm:$0x3] %v250
      %305 = vst [vmem:[#allocation2 + $0x78] sm:$0xff] %v251
      %306 = vst [vmem:[#allocation2 + $0x80] sm:$0xff] %v252
      %307 = vst [vmem:[#allocation2 + $0x88] sm:$0x3] %v253
      %308 = vst [vmem:[#allocation2 + $0x90] sm:$0xff] %v254
      %309 = vst [vmem:[#allocation2 + $0x98] sm:$0xff] %v255
      %310 = vst [vmem:[#allocation2 + $0xa0] sm:$0x3] %v256
      %311 = vst [vmem:[#allocation2 + $0xa8] sm:$0xff] %v257
      %312 = vst [vmem:[#allocation2 + $0xb0] sm:$0xff] %v258
      %313 = vst [vmem:[#allocation2 + $0xb8] sm:$0x3] %v259
      %314 = vst [vmem:[#allocation2 + $0xc0] sm:$0xff] %v260
      %315 = vst [vmem:[#allocation2 + $0xc8] sm:$0xff] %v261
      %316 = vst [vmem:[#allocation2 + $0xd0] sm:$0x3] %v262
      %317 = vst [vmem:[#allocation2 + $0xd8] sm:$0xff] %v263
      %318 = vst [vmem:[#allocation2 + $0xe0] sm:$0xff] %v264
      %319 = vst [vmem:[#allocation2 + $0xe8] sm:$0x3] %v265
      %320 = vst [vmem:[#allocation2 + $0xf0] sm:$0xff] %v266
      %321 = vst [vmem:[#allocation2 + $0xf8] sm:$0xff] %v267
      %322 = vst [vmem:[#allocation2 + $0x100] sm:$0x3] %v268
      %323 = vst [vmem:[#allocation2 + $0x108] sm:$0xff] %v269
      %324 = vst [vmem:[#allocation2 + $0x110] sm:$0xff] %v270
      %325 = vst [vmem:[#allocation2 + $0x118] sm:$0x3] %v271
      %326 = vst [vmem:[#allocation2 + $0x120] sm:$0xff] %v272
      %327 = vst [vmem:[#allocation2 + $0x128] sm:$0xff] %v273
      %328 = vst [vmem:[#allocation2 + $0x130] sm:$0x3] %v274
      %329 = vst [vmem:[#allocation2 + $0x138] sm:$0xff] %v275
      %330 = vst [vmem:[#allocation2 + $0x140] sm:$0xff] %v276
      %331 = vst [vmem:[#allocation2 + $0x148] sm:$0x3] %v277
      %332 = vst [vmem:[#allocation2 + $0x150] sm:$0xff] %v278
      %333 = vst [vmem:[#allocation2 + $0x158] sm:$0xff] %v279
      %334 = vst [vmem:[#allocation2 + $0x160] sm:$0x3] %v280
      %335 = vst [vmem:[#allocation2 + $0x168] sm:$0xff] %v281
      %336 = vst [vmem:[#allocation2 + $0x170] sm:$0xff] %v282
      %337 = vst [vmem:[#allocation2 + $0x178] sm:$0x3] %v283
      %338 = vst [vmem:[#allocation2 + $0x180] sm:$0xff] %v284
      %339 = vst [vmem:[#allocation2 + $0x188] sm:$0xff] %v285
      %340 = vst [vmem:[#allocation2 + $0x190] sm:$0x3] %v286
      %341 = vst [vmem:[#allocation2 + $0x198] sm:$0xff] %v287
      %342 = vst [vmem:[#allocation2 + $0x1a0] sm:$0xff] %v288
      %343 = vst [vmem:[#allocation2 + $0x1a8] sm:$0x3] %v289
      %v344 = vld [vmem:[#allocation2] sm:$0xff]
      %v345 = vld [vmem:[#allocation2 + $0x8] sm:$0xff]
      %v346 = vld [vmem:[#allocation2 + $0x18] sm:$0xff]
      %v347 = vld [vmem:[#allocation2 + $0x20] sm:$0xff]
      %v348 = vld [vmem:[#allocation2 + $0x30] sm:$0xff]
      %v349 = vld [vmem:[#allocation2 + $0x38] sm:$0xff]
      %v350 = vld [vmem:[#allocation2 + $0x48] sm:$0xff]
      %v351 = vld [vmem:[#allocation2 + $0x50] sm:$0xff]
      %v352 = vld [vmem:[#allocation2 + $0x60] sm:$0xff]
      %v353 = vld [vmem:[#allocation2 + $0x68] sm:$0xff]
      %v354 = vld [vmem:[#allocation2 + $0x78] sm:$0xff]
      %v355 = vld [vmem:[#allocation2 + $0x80] sm:$0xff]
      %v356 = vld [vmem:[#allocation2 + $0x90] sm:$0xff]
      %v357 = vld [vmem:[#allocation2 + $0x98] sm:$0xff]
      %v358 = vld [vmem:[#allocation2 + $0xa8] sm:$0xff]
      %v359 = vld [vmem:[#allocation2 + $0xb0] sm:$0xff]
      %v360 = vld [vmem:[#allocation2 + $0xc0] sm:$0xff]
      %v361 = vld [vmem:[#allocation2 + $0xc8] sm:$0xff]
      %v362 = vld [vmem:[#allocation2 + $0xd8] sm:$0xff]
      %v363 = vld [vmem:[#allocation2 + $0xe0] sm:$0xff]
      %v364 = vld [vmem:[#allocation2 + $0xf0] sm:$0xff]
      %v365 = vld [vmem:[#allocation2 + $0xf8] sm:$0xff]
      %v366 = vld [vmem:[#allocation2 + $0x108] sm:$0xff]
      %v367 = vld [vmem:[#allocation2 + $0x110] sm:$0xff]
      %v368 = vld [vmem:[#allocation2 + $0x120] sm:$0xff]
      %v369 = vld [vmem:[#allocation2 + $0x128] sm:$0xff]
      %v370 = vld [vmem:[#allocation2 + $0x138] sm:$0xff]
      %v371 = vld [vmem:[#allocation2 + $0x140] sm:$0xff]
      %v372 = vld [vmem:[#allocation2 + $0x150] sm:$0xff]
      %v373 = vld [vmem:[#allocation2 + $0x158] sm:$0xff]
      %v374 = vld [vmem:[#allocation2 + $0x168] sm:$0xff]
      %v375 = vld [vmem:[#allocation2 + $0x170] sm:$0xff]
      %v376 = vpack.c.bf16 %v345, %v344
      %v377 = vpack.c.bf16 %v347, %v346
      %v378 = vpack.c.bf16 %v349, %v348
      %v379 = vpack.c.bf16 %v351, %v350
      %v380 = vpack.c.bf16 %v353, %v352
      %v381 = vpack.c.bf16 %v355, %v354
      %v382 = vpack.c.bf16 %v357, %v356
      %v383 = vpack.c.bf16 %v359, %v358
      %v384 = vpack.c.bf16 %v361, %v360
      %v385 = vpack.c.bf16 %v363, %v362
      %v386 = vpack.c.bf16 %v365, %v364
      %v387 = vpack.c.bf16 %v367, %v366
      %v388 = vpack.c.bf16 %v369, %v368
      %v389 = vpack.c.bf16 %v371, %v370
      %v390 = vpack.c.bf16 %v373, %v372
      %v391 = vpack.c.bf16 %v375, %v374
      %v392 = vld [vmem:[%s1] sm:$0xf]
      %v393 = vld [vmem:[%s1 + $0x4] sm:$0xf]
      %v394 = vld [vmem:[%s1 + $0x8] sm:$0xf]
      %v395 = vld [vmem:[%s1 + $0xc] sm:$0xf]
      %v396 = vld [vmem:[%s1 + $0x10] sm:$0xf]
      %v397 = vld [vmem:[%s1 + $0x14] sm:$0xf]
      %v398 = vld [vmem:[%s1 + $0x18] sm:$0xf]
      %v399 = vld [vmem:[%s1 + $0x1c] sm:$0xf]
      %v400 = vld [vmem:[%s1 + $0x20] sm:$0xf]
      %v401 = vld [vmem:[%s1 + $0x24] sm:$0xf]
      %v402 = vld [vmem:[%s1 + $0x28] sm:$0xf]
      %v403 = vld [vmem:[%s1 + $0x2c] sm:$0xf]
      %v404 = vld [vmem:[%s1 + $0x30] sm:$0xf]
      %v405 = vld [vmem:[%s1 + $0x34] sm:$0xf]
      %v406 = vld [vmem:[%s1 + $0x38] sm:$0xf]
      %v407 = vld [vmem:[%s1 + $0x3c] sm:$0xf]
      %v408 = vld [vmem:[#allocation2 + $0x1] sm:$0xff]
      %v409 = vld [vmem:[#allocation2 + $0x9] sm:$0xff]
      %v410 = vld [vmem:[#allocation2 + $0x19] sm:$0xff]
      %v411 = vld [vmem:[#allocation2 + $0x21] sm:$0xff]
      %v412 = vld [vmem:[#allocation2 + $0x31] sm:$0xff]
      %v413 = vld [vmem:[#allocation2 + $0x39] sm:$0xff]
      %v414 = vld [vmem:[#allocation2 + $0x49] sm:$0xff]
      %v415 = vld [vmem:[#allocation2 + $0x51] sm:$0xff]
      %v416 = vld [vmem:[#allocation2 + $0x61] sm:$0xff]
      %v417 = vld [vmem:[#allocation2 + $0x69] sm:$0xff]
      %v418 = vld [vmem:[#allocation2 + $0x79] sm:$0xff]
      %v419 = vld [vmem:[#allocation2 + $0x81] sm:$0xff]
      %v420 = vld [vmem:[#allocation2 + $0x91] sm:$0xff]
      %v421 = vld [vmem:[#allocation2 + $0x99] sm:$0xff]
      %v422 = vld [vmem:[#allocation2 + $0xa9] sm:$0xff]
      %v423 = vld [vmem:[#allocation2 + $0xb1] sm:$0xff]
      %v424 = vld [vmem:[#allocation2 + $0xc1] sm:$0xff]
      %v425 = vld [vmem:[#allocation2 + $0xc9] sm:$0xff]
      %v426 = vld [vmem:[#allocation2 + $0xd9] sm:$0xff]
      %v427 = vld [vmem:[#allocation2 + $0xe1] sm:$0xff]
      %v428 = vld [vmem:[#allocation2 + $0xf1] sm:$0xff]
      %v429 = vld [vmem:[#allocation2 + $0xf9] sm:$0xff]
      %v430 = vld [vmem:[#allocation2 + $0x109] sm:$0xff]
      %v431 = vld [vmem:[#allocation2 + $0x111] sm:$0xff]
      %v432 = vld [vmem:[#allocation2 + $0x121] sm:$0xff]
      %v433 = vld [vmem:[#allocation2 + $0x129] sm:$0xff]
      %v434 = vld [vmem:[#allocation2 + $0x139] sm:$0xff]
      %v435 = vld [vmem:[#allocation2 + $0x141] sm:$0xff]
      %v436 = vld [vmem:[#allocation2 + $0x151] sm:$0xff]
      %v437 = vld [vmem:[#allocation2 + $0x159] sm:$0xff]
      %v438 = vld [vmem:[#allocation2 + $0x169] sm:$0xff]
      %v439 = vld [vmem:[#allocation2 + $0x171] sm:$0xff]
      %v440 = vpack.c.bf16 %v409, %v408
      %v441 = vpack.c.bf16 %v411, %v410
      %v442 = vpack.c.bf16 %v413, %v412
      %v443 = vpack.c.bf16 %v415, %v414
      %v444 = vpack.c.bf16 %v417, %v416
      %v445 = vpack.c.bf16 %v419, %v418
      %v446 = vpack.c.bf16 %v421, %v420
      %v447 = vpack.c.bf16 %v423, %v422
      %v448 = vpack.c.bf16 %v425, %v424
      %v449 = vpack.c.bf16 %v427, %v426
      %v450 = vpack.c.bf16 %v429, %v428
      %v451 = vpack.c.bf16 %v431, %v430
      %v452 = vpack.c.bf16 %v433, %v432
      %v453 = vpack.c.bf16 %v435, %v434
      %v454 = vpack.c.bf16 %v437, %v436
      %v455 = vpack.c.bf16 %v439, %v438
      %s456 = scalar_lea.vmem %s1, 64
      %v457 = vld [vmem:[%s456] sm:$0xf]
      %v458 = vld [vmem:[%s456 + $0x4] sm:$0xf]
      %v459 = vld [vmem:[%s456 + $0x8] sm:$0xf]
      %v460 = vld [vmem:[%s456 + $0xc] sm:$0xf]
      %v461 = vld [vmem:[%s456 + $0x10] sm:$0xf]
      %v462 = vld [vmem:[%s456 + $0x14] sm:$0xf]
      %v463 = vld [vmem:[%s456 + $0x18] sm:$0xf]
      %v464 = vld [vmem:[%s456 + $0x1c] sm:$0xf]
      %v465 = vld [vmem:[%s456 + $0x20] sm:$0xf]
      %v466 = vld [vmem:[%s456 + $0x24] sm:$0xf]
      %v467 = vld [vmem:[%s456 + $0x28] sm:$0xf]
      %v468 = vld [vmem:[%s456 + $0x2c] sm:$0xf]
      %v469 = vld [vmem:[%s456 + $0x30] sm:$0xf]
      %v470 = vld [vmem:[%s456 + $0x34] sm:$0xf]
      %v471 = vld [vmem:[%s456 + $0x38] sm:$0xf]
      %v472 = vld [vmem:[%s456 + $0x3c] sm:$0xf]
      %v489 = vunpack.c.l.b16 %v457
      %v490 = vunpack.c.l.b16 %v458
      %v491 = vunpack.c.l.b16 %v459
      %v492 = vunpack.c.l.b16 %v460
      %v493 = vunpack.c.l.b16 %v461
      %v494 = vunpack.c.l.b16 %v462
      %v495 = vunpack.c.l.b16 %v463
      %v496 = vunpack.c.l.b16 %v464
      %v497 = vunpack.c.l.b16 %v465
      %v498 = vunpack.c.l.b16 %v466
      %v499 = vunpack.c.l.b16 %v467
      %v500 = vunpack.c.l.b16 %v468
      %v501 = vunpack.c.l.b16 %v469
      %v502 = vunpack.c.l.b16 %v470
      %v503 = vunpack.c.l.b16 %v471
      %v504 = vunpack.c.l.b16 %v472
      %v505 = vpack.c.b16 %v490, %v489
      %v506 = vpack.c.b16 %v492, %v491
      %v507 = vpack.c.b16 %v494, %v493
      %v508 = vpack.c.b16 %v496, %v495
      %v509 = vpack.c.b16 %v498, %v497
      %v510 = vpack.c.b16 %v500, %v499
      %v511 = vpack.c.b16 %v502, %v501
      %v512 = vpack.c.b16 %v504, %v503
      %521 = vmatpush.bf16.msra.mxu0 %v512
      %522 = vmatpush.bf16.msra.mxu0 %v511
      %523 = vmatpush.bf16.msra.mxu0 %v510
      %524 = vmatpush.bf16.msra.mxu0 %v509
      %525 = vmatpush.bf16.msra.mxu0 %v508
      %526 = vmatpush.bf16.msra.mxu0 %v507
      %527 = vmatpush.bf16.msra.mxu0 %v506
      %528 = vmatpush.bf16.msra.mxu0 %v505
      %529 = vmatmul.bf16.gmra.mxu0 %v440
      %v530 = vpop.f32.mrf.mxu0
      %v531 = vadd.f32 0.0, %v530
      %v532 = vpop.f32.mrf.mxu0
      %v533 = vadd.f32 0.0, %v532
      %534 = vmatmul.bf16.gmra.mxu0 %v441
      %v535 = vpop.f32.mrf.mxu0
      %v536 = vadd.f32 0.0, %v535
      %v537 = vpop.f32.mrf.mxu0
      %v538 = vadd.f32 0.0, %v537
      %539 = vmatmul.bf16.gmra.mxu0 %v442
      %v540 = vpop.f32.mrf.mxu0
      %v541 = vadd.f32 0.0, %v540
      %v542 = vpop.f32.mrf.mxu0
      %v543 = vadd.f32 0.0, %v542
      %544 = vmatmul.bf16.gmra.mxu0 %v443
      %v545 = vpop.f32.mrf.mxu0
      %v546 = vadd.f32 0.0, %v545
      %v547 = vpop.f32.mrf.mxu0
      %v548 = vadd.f32 0.0, %v547
      %549 = vmatmul.bf16.gmra.mxu0 %v444
      %v550 = vpop.f32.mrf.mxu0
      %v551 = vadd.f32 0.0, %v550
      %v552 = vpop.f32.mrf.mxu0
      %v553 = vadd.f32 0.0, %v552
      %554 = vmatmul.bf16.gmra.mxu0 %v445
      %v555 = vpop.f32.mrf.mxu0
      %v556 = vadd.f32 0.0, %v555
      %v557 = vpop.f32.mrf.mxu0
      %v558 = vadd.f32 0.0, %v557
      %559 = vmatmul.bf16.gmra.mxu0 %v446
      %v560 = vpop.f32.mrf.mxu0
      %v561 = vadd.f32 0.0, %v560
      %v562 = vpop.f32.mrf.mxu0
      %v563 = vadd.f32 0.0, %v562
      %564 = vmatmul.bf16.gmra.mxu0 %v447
      %v565 = vpop.f32.mrf.mxu0
      %v566 = vadd.f32 0.0, %v565
      %v567 = vpop.f32.mrf.mxu0
      %v568 = vadd.f32 0.0, %v567
      %569 = vmatmul.bf16.gmra.mxu0 %v448
      %v570 = vpop.f32.mrf.mxu0
      %v571 = vadd.f32 0.0, %v570
      %v572 = vpop.f32.mrf.mxu0
      %v573 = vadd.f32 0.0, %v572
      %574 = vmatmul.bf16.gmra.mxu0 %v449
      %v575 = vpop.f32.mrf.mxu0
      %v576 = vadd.f32 0.0, %v575
      %v577 = vpop.f32.mrf.mxu0
      %v578 = vadd.f32 0.0, %v577
      %579 = vmatmul.bf16.gmra.mxu0 %v450
      %v580 = vpop.f32.mrf.mxu0
      %v581 = vadd.f32 0.0, %v580
      %v582 = vpop.f32.mrf.mxu0
      %v583 = vadd.f32 0.0, %v582
      %584 = vmatmul.bf16.gmra.mxu0 %v451
      %v585 = vpop.f32.mrf.mxu0
      %v586 = vadd.f32 0.0, %v585
      %v587 = vpop.f32.mrf.mxu0
      %v588 = vadd.f32 0.0, %v587
      %589 = vmatmul.bf16.gmra.mxu0 %v452
      %v590 = vpop.f32.mrf.mxu0
      %v591 = vadd.f32 0.0, %v590
      %v592 = vpop.f32.mrf.mxu0
      %v593 = vadd.f32 0.0, %v592
      %594 = vmatmul.bf16.gmra.mxu0 %v453
      %v595 = vpop.f32.mrf.mxu0
      %v596 = vadd.f32 0.0, %v595
      %v597 = vpop.f32.mrf.mxu0
      %v598 = vadd.f32 0.0, %v597
      %599 = vmatmul.bf16.gmra.mxu0 %v454
      %v600 = vpop.f32.mrf.mxu0
      %v601 = vadd.f32 0.0, %v600
      %v602 = vpop.f32.mrf.mxu0
      %v603 = vadd.f32 0.0, %v602
      %604 = vmatmul.bf16.gmra.mxu0 %v455
      %v605 = vpop.f32.mrf.mxu0
      %v606 = vadd.f32 0.0, %v605
      %v607 = vpop.f32.mrf.mxu0
      %v608 = vadd.f32 0.0, %v607
      %609 = vdwg.mxu0
      %v626 = vunpack.c.l.b16 %v392
      %v627 = vunpack.c.l.b16 %v393
      %v628 = vunpack.c.l.b16 %v394
      %v629 = vunpack.c.l.b16 %v395
      %v630 = vunpack.c.l.b16 %v396
      %v631 = vunpack.c.l.b16 %v397
      %v632 = vunpack.c.l.b16 %v398
      %v633 = vunpack.c.l.b16 %v399
      %v634 = vunpack.c.l.b16 %v400
      %v635 = vunpack.c.l.b16 %v401
      %v636 = vunpack.c.l.b16 %v402
      %v637 = vunpack.c.l.b16 %v403
      %v638 = vunpack.c.l.b16 %v404
      %v639 = vunpack.c.l.b16 %v405
      %v640 = vunpack.c.l.b16 %v406
      %v641 = vunpack.c.l.b16 %v407
      %v642 = vpack.c.b16 %v627, %v626
      %v643 = vpack.c.b16 %v629, %v628
      %v644 = vpack.c.b16 %v631, %v630
      %v645 = vpack.c.b16 %v633, %v632
      %v646 = vpack.c.b16 %v635, %v634
      %v647 = vpack.c.b16 %v637, %v636
      %v648 = vpack.c.b16 %v639, %v638
      %v649 = vpack.c.b16 %v641, %v640
      %658 = vmatpush.bf16.msra.mxu0 %v649
      %659 = vmatpush.bf16.msra.mxu0 %v648
      %660 = vmatpush.bf16.msra.mxu0 %v647
      %661 = vmatpush.bf16.msra.mxu0 %v646
      %662 = vmatpush.bf16.msra.mxu0 %v645
      %663 = vmatpush.bf16.msra.mxu0 %v644
      %664 = vmatpush.bf16.msra.mxu0 %v643
      %665 = vmatpush.bf16.msra.mxu0 %v642
      %666 = vmatmul.bf16.gmra.mxu0 %v376
      %v667 = vpop.f32.mrf.mxu0
      %v668 = vadd.f32 %v531, %v667
      %v669 = vpop.f32.mrf.mxu0
      %v670 = vadd.f32 %v533, %v669
      %671 = vmatmul.bf16.gmra.mxu0 %v377
      %v672 = vpop.f32.mrf.mxu0
      %v673 = vadd.f32 %v536, %v672
      %v674 = vpop.f32.mrf.mxu0
      %v675 = vadd.f32 %v538, %v674
      %676 = vmatmul.bf16.gmra.mxu0 %v378
      %v677 = vpop.f32.mrf.mxu0
      %v678 = vadd.f32 %v541, %v677
      %v679 = vpop.f32.mrf.mxu0
      %v680 = vadd.f32 %v543, %v679
      %681 = vmatmul.bf16.gmra.mxu0 %v379
      %v682 = vpop.f32.mrf.mxu0
      %v683 = vadd.f32 %v546, %v682
      %v684 = vpop.f32.mrf.mxu0
      %v685 = vadd.f32 %v548, %v684
      %686 = vmatmul.bf16.gmra.mxu0 %v380
      %v687 = vpop.f32.mrf.mxu0
      %v688 = vadd.f32 %v551, %v687
      %v689 = vpop.f32.mrf.mxu0
      %v690 = vadd.f32 %v553, %v689
      %691 = vmatmul.bf16.gmra.mxu0 %v381
      %v692 = vpop.f32.mrf.mxu0
      %v693 = vadd.f32 %v556, %v692
      %v694 = vpop.f32.mrf.mxu0
      %v695 = vadd.f32 %v558, %v694
      %696 = vmatmul.bf16.gmra.mxu0 %v382
      %v697 = vpop.f32.mrf.mxu0
      %v698 = vadd.f32 %v561, %v697
      %v699 = vpop.f32.mrf.mxu0
      %v700 = vadd.f32 %v563, %v699
      %701 = vmatmul.bf16.gmra.mxu0 %v383
      %v702 = vpop.f32.mrf.mxu0
      %v703 = vadd.f32 %v566, %v702
      %v704 = vpop.f32.mrf.mxu0
      %v705 = vadd.f32 %v568, %v704
      %706 = vmatmul.bf16.gmra.mxu0 %v384
      %v707 = vpop.f32.mrf.mxu0
      %v708 = vadd.f32 %v571, %v707
      %v709 = vpop.f32.mrf.mxu0
      %v710 = vadd.f32 %v573, %v709
      %711 = vmatmul.bf16.gmra.mxu0 %v385
      %v712 = vpop.f32.mrf.mxu0
      %v713 = vadd.f32 %v576, %v712
      %v714 = vpop.f32.mrf.mxu0
      %v715 = vadd.f32 %v578, %v714
      %716 = vmatmul.bf16.gmra.mxu0 %v386
      %v717 = vpop.f32.mrf.mxu0
      %v718 = vadd.f32 %v581, %v717
      %v719 = vpop.f32.mrf.mxu0
      %v720 = vadd.f32 %v583, %v719
      %721 = vmatmul.bf16.gmra.mxu0 %v387
      %v722 = vpop.f32.mrf.mxu0
      %v723 = vadd.f32 %v586, %v722
      %v724 = vpop.f32.mrf.mxu0
      %v725 = vadd.f32 %v588, %v724
      %726 = vmatmul.bf16.gmra.mxu0 %v388
      %v727 = vpop.f32.mrf.mxu0
      %v728 = vadd.f32 %v591, %v727
      %v729 = vpop.f32.mrf.mxu0
      %v730 = vadd.f32 %v593, %v729
      %731 = vmatmul.bf16.gmra.mxu0 %v389
      %v732 = vpop.f32.mrf.mxu0
      %v733 = vadd.f32 %v596, %v732
      %v734 = vpop.f32.mrf.mxu0
      %v735 = vadd.f32 %v598, %v734
      %736 = vmatmul.bf16.gmra.mxu0 %v390
      %v737 = vpop.f32.mrf.mxu0
      %v738 = vadd.f32 %v601, %v737
      %v739 = vpop.f32.mrf.mxu0
      %v740 = vadd.f32 %v603, %v739
      %741 = vmatmul.bf16.gmra.mxu0 %v391
      %v742 = vpop.f32.mrf.mxu0
      %v743 = vadd.f32 %v606, %v742
      %v744 = vpop.f32.mrf.mxu0
      %v745 = vadd.f32 %v608, %v744
      %746 = vdwg.mxu0
      %v747 = vld [vmem:[#allocation2 + $0x2] sm:$0xff]
      %v748 = vld [vmem:[#allocation2 + $0xa] sm:$0xff]
      %v749 = vld [vmem:[#allocation2 + $0x1a] sm:$0xff]
      %v750 = vld [vmem:[#allocation2 + $0x22] sm:$0xff]
      %v751 = vld [vmem:[#allocation2 + $0x32] sm:$0xff]
      %v752 = vld [vmem:[#allocation2 + $0x3a] sm:$0xff]
      %v753 = vld [vmem:[#allocation2 + $0x4a] sm:$0xff]
      %v754 = vld [vmem:[#allocation2 + $0x52] sm:$0xff]
      %v755 = vld [vmem:[#allocation2 + $0x62] sm:$0xff]
      %v756 = vld [vmem:[#allocation2 + $0x6a] sm:$0xff]
      %v757 = vld [vmem:[#allocation2 + $0x7a] sm:$0xff]
      %v758 = vld [vmem:[#allocation2 + $0x82] sm:$0xff]
      %v759 = vld [vmem:[#allocation2 + $0x92] sm:$0xff]
      %v760 = vld [vmem:[#allocation2 + $0x9a] sm:$0xff]
      %v761 = vld [vmem:[#allocation2 + $0xaa] sm:$0xff]
      %v762 = vld [vmem:[#allocation2 + $0xb2] sm:$0xff]
      %v763 = vld [vmem:[#allocation2 + $0xc2] sm:$0xff]
      %v764 = vld [vmem:[#allocation2 + $0xca] sm:$0xff]
      %v765 = vld [vmem:[#allocation2 + $0xda] sm:$0xff]
      %v766 = vld [vmem:[#allocation2 + $0xe2] sm:$0xff]
      %v767 = vld [vmem:[#allocation2 + $0xf2] sm:$0xff]
      %v768 = vld [vmem:[#allocation2 + $0xfa] sm:$0xff]
      %v769 = vld [vmem:[#allocation2 + $0x10a] sm:$0xff]
      %v770 = vld [vmem:[#allocation2 + $0x112] sm:$0xff]
      %v771 = vld [vmem:[#allocation2 + $0x122] sm:$0xff]
      %v772 = vld [vmem:[#allocation2 + $0x12a] sm:$0xff]
      %v773 = vld [vmem:[#allocation2 + $0x13a] sm:$0xff]
      %v774 = vld [vmem:[#allocation2 + $0x142] sm:$0xff]
      %v775 = vld [vmem:[#allocation2 + $0x152] sm:$0xff]
      %v776 = vld [vmem:[#allocation2 + $0x15a] sm:$0xff]
      %v777 = vld [vmem:[#allocation2 + $0x16a] sm:$0xff]
      %v778 = vld [vmem:[#allocation2 + $0x172] sm:$0xff]
      %v779 = vpack.c.bf16 %v748, %v747
      %v780 = vpack.c.bf16 %v750, %v749
      %v781 = vpack.c.bf16 %v752, %v751
      %v782 = vpack.c.bf16 %v754, %v753
      %v783 = vpack.c.bf16 %v756, %v755
      %v784 = vpack.c.bf16 %v758, %v757
      %v785 = vpack.c.bf16 %v760, %v759
      %v786 = vpack.c.bf16 %v762, %v761
      %v787 = vpack.c.bf16 %v764, %v763
      %v788 = vpack.c.bf16 %v766, %v765
      %v789 = vpack.c.bf16 %v768, %v767
      %v790 = vpack.c.bf16 %v770, %v769
      %v791 = vpack.c.bf16 %v772, %v771
      %v792 = vpack.c.bf16 %v774, %v773
      %v793 = vpack.c.bf16 %v776, %v775
      %v794 = vpack.c.bf16 %v778, %v777
      %s795 = scalar_lea.vmem %s1, 128
      %v796 = vld [vmem:[%s795] sm:$0xf]
      %v797 = vld [vmem:[%s795 + $0x4] sm:$0xf]
      %v798 = vld [vmem:[%s795 + $0x8] sm:$0xf]
      %v799 = vld [vmem:[%s795 + $0xc] sm:$0xf]
      %v800 = vld [vmem:[%s795 + $0x10] sm:$0xf]
      %v801 = vld [vmem:[%s795 + $0x14] sm:$0xf]
      %v802 = vld [vmem:[%s795 + $0x18] sm:$0xf]
      %v803 = vld [vmem:[%s795 + $0x1c] sm:$0xf]
      %v804 = vld [vmem:[%s795 + $0x20] sm:$0xf]
      %v805 = vld [vmem:[%s795 + $0x24] sm:$0xf]
      %v806 = vld [vmem:[%s795 + $0x28] sm:$0xf]
      %v807 = vld [vmem:[%s795 + $0x2c] sm:$0xf]
      %v808 = vld [vmem:[%s795 + $0x30] sm:$0xf]
      %v809 = vld [vmem:[%s795 + $0x34] sm:$0xf]
      %v810 = vld [vmem:[%s795 + $0x38] sm:$0xf]
      %v811 = vld [vmem:[%s795 + $0x3c] sm:$0xf]
      %v828 = vunpack.c.l.b16 %v796
      %v829 = vunpack.c.l.b16 %v797
      %v830 = vunpack.c.l.b16 %v798
      %v831 = vunpack.c.l.b16 %v799
      %v832 = vunpack.c.l.b16 %v800
      %v833 = vunpack.c.l.b16 %v801
      %v834 = vunpack.c.l.b16 %v802
      %v835 = vunpack.c.l.b16 %v803
      %v836 = vunpack.c.l.b16 %v804
      %v837 = vunpack.c.l.b16 %v805
      %v838 = vunpack.c.l.b16 %v806
      %v839 = vunpack.c.l.b16 %v807
      %v840 = vunpack.c.l.b16 %v808
      %v841 = vunpack.c.l.b16 %v809
      %v842 = vunpack.c.l.b16 %v810
      %v843 = vunpack.c.l.b16 %v811
      %v844 = vpack.c.b16 %v829, %v828
      %v845 = vpack.c.b16 %v831, %v830
      %v846 = vpack.c.b16 %v833, %v832
      %v847 = vpack.c.b16 %v835, %v834
      %v848 = vpack.c.b16 %v837, %v836
      %v849 = vpack.c.b16 %v839, %v838
      %v850 = vpack.c.b16 %v841, %v840
      %v851 = vpack.c.b16 %v843, %v842
      %860 = vmatpush.bf16.msra.mxu0 %v851
      %861 = vmatpush.bf16.msra.mxu0 %v850
      %862 = vmatpush.bf16.msra.mxu0 %v849
      %863 = vmatpush.bf16.msra.mxu0 %v848
      %864 = vmatpush.bf16.msra.mxu0 %v847
      %865 = vmatpush.bf16.msra.mxu0 %v846
      %866 = vmatpush.bf16.msra.mxu0 %v845
      %867 = vmatpush.bf16.msra.mxu0 %v844
      %868 = vmatmul.bf16.gmra.mxu0 %v779
      %v869 = vpop.f32.mrf.mxu0
      %v870 = vadd.f32 0.0, %v869
      %v871 = vpop.f32.mrf.mxu0
      %v872 = vadd.f32 0.0, %v871
      %873 = vmatmul.bf16.gmra.mxu0 %v780
      %v874 = vpop.f32.mrf.mxu0
      %v875 = vadd.f32 0.0, %v874
      %v876 = vpop.f32.mrf.mxu0
      %v877 = vadd.f32 0.0, %v876
      %878 = vmatmul.bf16.gmra.mxu0 %v781
      %v879 = vpop.f32.mrf.mxu0
      %v880 = vadd.f32 0.0, %v879
      %v881 = vpop.f32.mrf.mxu0
      %v882 = vadd.f32 0.0, %v881
      %883 = vmatmul.bf16.gmra.mxu0 %v782
      %v884 = vpop.f32.mrf.mxu0
      %v885 = vadd.f32 0.0, %v884
      %v886 = vpop.f32.mrf.mxu0
      %v887 = vadd.f32 0.0, %v886
      %888 = vmatmul.bf16.gmra.mxu0 %v783
      %v889 = vpop.f32.mrf.mxu0
      %v890 = vadd.f32 0.0, %v889
      %v891 = vpop.f32.mrf.mxu0
      %v892 = vadd.f32 0.0, %v891
      %893 = vmatmul.bf16.gmra.mxu0 %v784
      %v894 = vpop.f32.mrf.mxu0
      %v895 = vadd.f32 0.0, %v894
      %v896 = vpop.f32.mrf.mxu0
      %v897 = vadd.f32 0.0, %v896
      %898 = vmatmul.bf16.gmra.mxu0 %v785
      %v899 = vpop.f32.mrf.mxu0
      %v900 = vadd.f32 0.0, %v899
      %v901 = vpop.f32.mrf.mxu0
      %v902 = vadd.f32 0.0, %v901
      %903 = vmatmul.bf16.gmra.mxu0 %v786
      %v904 = vpop.f32.mrf.mxu0
      %v905 = vadd.f32 0.0, %v904
      %v906 = vpop.f32.mrf.mxu0
      %v907 = vadd.f32 0.0, %v906
      %908 = vmatmul.bf16.gmra.mxu0 %v787
      %v909 = vpop.f32.mrf.mxu0
      %v910 = vadd.f32 0.0, %v909
      %v911 = vpop.f32.mrf.mxu0
      %v912 = vadd.f32 0.0, %v911
      %913 = vmatmul.bf16.gmra.mxu0 %v788
      %v914 = vpop.f32.mrf.mxu0
      %v915 = vadd.f32 0.0, %v914
      %v916 = vpop.f32.mrf.mxu0
      %v917 = vadd.f32 0.0, %v916
      %918 = vmatmul.bf16.gmra.mxu0 %v789
      %v919 = vpop.f32.mrf.mxu0
      %v920 = vadd.f32 0.0, %v919
      %v921 = vpop.f32.mrf.mxu0
      %v922 = vadd.f32 0.0, %v921
      %923 = vmatmul.bf16.gmra.mxu0 %v790
      %v924 = vpop.f32.mrf.mxu0
      %v925 = vadd.f32 0.0, %v924
      %v926 = vpop.f32.mrf.mxu0
      %v927 = vadd.f32 0.0, %v926
      %928 = vmatmul.bf16.gmra.mxu0 %v791
      %v929 = vpop.f32.mrf.mxu0
      %v930 = vadd.f32 0.0, %v929
      %v931 = vpop.f32.mrf.mxu0
      %v932 = vadd.f32 0.0, %v931
      %933 = vmatmul.bf16.gmra.mxu0 %v792
      %v934 = vpop.f32.mrf.mxu0
      %v935 = vadd.f32 0.0, %v934
      %v936 = vpop.f32.mrf.mxu0
      %v937 = vadd.f32 0.0, %v936
      %938 = vmatmul.bf16.gmra.mxu0 %v793
      %v939 = vpop.f32.mrf.mxu0
      %v940 = vadd.f32 0.0, %v939
      %v941 = vpop.f32.mrf.mxu0
      %v942 = vadd.f32 0.0, %v941
      %943 = vmatmul.bf16.gmra.mxu0 %v794
      %v944 = vpop.f32.mrf.mxu0
      %v945 = vadd.f32 0.0, %v944
      %v946 = vpop.f32.mrf.mxu0
      %v947 = vadd.f32 0.0, %v946
      %948 = vdwg.mxu0
      %v949 = vadd.f32 %v668, %v870
      %v950 = vadd.f32 %v670, %v872
      %v951 = vadd.f32 %v673, %v875
      %v952 = vadd.f32 %v675, %v877
      %v953 = vadd.f32 %v678, %v880
      %v954 = vadd.f32 %v680, %v882
      %v955 = vadd.f32 %v683, %v885
      %v956 = vadd.f32 %v685, %v887
      %v957 = vadd.f32 %v688, %v890
      %v958 = vadd.f32 %v690, %v892
      %v959 = vadd.f32 %v693, %v895
      %v960 = vadd.f32 %v695, %v897
      %v961 = vadd.f32 %v698, %v900
      %v962 = vadd.f32 %v700, %v902
      %v963 = vadd.f32 %v703, %v905
      %v964 = vadd.f32 %v705, %v907
      %v965 = vadd.f32 %v708, %v910
      %v966 = vadd.f32 %v710, %v912
      %v967 = vadd.f32 %v713, %v915
      %v968 = vadd.f32 %v715, %v917
      %v969 = vadd.f32 %v718, %v920
      %v970 = vadd.f32 %v720, %v922
      %v971 = vadd.f32 %v723, %v925
      %v972 = vadd.f32 %v725, %v927
      %v973 = vadd.f32 %v728, %v930
      %v974 = vadd.f32 %v730, %v932
      %v975 = vadd.f32 %v733, %v935
      %v976 = vadd.f32 %v735, %v937
      %v977 = vadd.f32 %v738, %v940
      %v978 = vadd.f32 %v740, %v942
      %v979 = vadd.f32 %v743, %v945
      %v980 = vadd.f32 %v745, %v947
      %s981 = scalar_lea.vmem [#allocation2], 24
      %v982 = vld [vmem:[%s981] sm:$0xff]
      %v983 = vld [vmem:[%s981 + $0x8] sm:$0xff]
      %v984 = vld [vmem:[%s981 + $0x18] sm:$0xff]
      %v985 = vld [vmem:[%s981 + $0x20] sm:$0xff]
      %v986 = vld [vmem:[%s981 + $0x30] sm:$0xff]
      %v987 = vld [vmem:[%s981 + $0x38] sm:$0xff]
      %v988 = vld [vmem:[%s981 + $0x48] sm:$0xff]
      %v989 = vld [vmem:[%s981 + $0x50] sm:$0xff]
      %v990 = vld [vmem:[%s981 + $0x60] sm:$0xff]
      %v991 = vld [vmem:[%s981 + $0x68] sm:$0xff]
      %v992 = vld [vmem:[%s981 + $0x78] sm:$0xff]
      %v993 = vld [vmem:[%s981 + $0x80] sm:$0xff]
      %v994 = vld [vmem:[%s981 + $0x90] sm:$0xff]
      %v995 = vld [vmem:[%s981 + $0x98] sm:$0xff]
      %v996 = vld [vmem:[%s981 + $0xa8] sm:$0xff]
      %v997 = vld [vmem:[%s981 + $0xb0] sm:$0xff]
      %v998 = vld [vmem:[%s981 + $0xc0] sm:$0xff]
      %v999 = vld [vmem:[%s981 + $0xc8] sm:$0xff]
      %v1000 = vld [vmem:[%s981 + $0xd8] sm:$0xff]
      %v1001 = vld [vmem:[%s981 + $0xe0] sm:$0xff]
      %v1002 = vld [vmem:[%s981 + $0xf0] sm:$0xff]
      %v1003 = vld [vmem:[%s981 + $0xf8] sm:$0xff]
      %v1004 = vld [vmem:[%s981 + $0x108] sm:$0xff]
      %v1005 = vld [vmem:[%s981 + $0x110] sm:$0xff]
      %v1006 = vld [vmem:[%s981 + $0x120] sm:$0xff]
      %v1007 = vld [vmem:[%s981 + $0x128] sm:$0xff]
      %v1008 = vld [vmem:[%s981 + $0x138] sm:$0xff]
      %v1009 = vld [vmem:[%s981 + $0x140] sm:$0xff]
      %v1010 = vld [vmem:[%s981 + $0x150] sm:$0xff]
      %v1011 = vld [vmem:[%s981 + $0x158] sm:$0xff]
      %v1012 = vld [vmem:[%s981 + $0x168] sm:$0xff]
      %v1013 = vld [vmem:[%s981 + $0x170] sm:$0xff]
      %v1014 = vpack.c.bf16 %v983, %v982
      %v1015 = vpack.c.bf16 %v985, %v984
      %v1016 = vpack.c.bf16 %v987, %v986
      %v1017 = vpack.c.bf16 %v989, %v988
      %v1018 = vpack.c.bf16 %v991, %v990
      %v1019 = vpack.c.bf16 %v993, %v992
      %v1020 = vpack.c.bf16 %v995, %v994
      %v1021 = vpack.c.bf16 %v997, %v996
      %v1022 = vpack.c.bf16 %v999, %v998
      %v1023 = vpack.c.bf16 %v1001, %v1000
      %v1024 = vpack.c.bf16 %v1003, %v1002
      %v1025 = vpack.c.bf16 %v1005, %v1004
      %v1026 = vpack.c.bf16 %v1007, %v1006
      %v1027 = vpack.c.bf16 %v1009, %v1008
      %v1028 = vpack.c.bf16 %v1011, %v1010
      %v1029 = vpack.c.bf16 %v1013, %v1012
      %s1030 = scalar_lea.vmem %s1, 192
      %v1031 = vld [vmem:[%s1030] sm:$0xf]
      %v1032 = vld [vmem:[%s1030 + $0x4] sm:$0xf]
      %v1033 = vld [vmem:[%s1030 + $0x8] sm:$0xf]
      %v1034 = vld [vmem:[%s1030 + $0xc] sm:$0xf]
      %v1035 = vld [vmem:[%s1030 + $0x10] sm:$0xf]
      %v1036 = vld [vmem:[%s1030 + $0x14] sm:$0xf]
      %v1037 = vld [vmem:[%s1030 + $0x18] sm:$0xf]
      %v1038 = vld [vmem:[%s1030 + $0x1c] sm:$0xf]
      %v1039 = vld [vmem:[%s1030 + $0x20] sm:$0xf]
      %v1040 = vld [vmem:[%s1030 + $0x24] sm:$0xf]
      %v1041 = vld [vmem:[%s1030 + $0x28] sm:$0xf]
      %v1042 = vld [vmem:[%s1030 + $0x2c] sm:$0xf]
      %v1043 = vld [vmem:[%s1030 + $0x30] sm:$0xf]
      %v1044 = vld [vmem:[%s1030 + $0x34] sm:$0xf]
      %v1045 = vld [vmem:[%s1030 + $0x38] sm:$0xf]
      %v1046 = vld [vmem:[%s1030 + $0x3c] sm:$0xf]
      %v1063 = vunpack.c.l.b16 %v1031
      %v1064 = vunpack.c.l.b16 %v1032
      %v1065 = vunpack.c.l.b16 %v1033
      %v1066 = vunpack.c.l.b16 %v1034
      %v1067 = vunpack.c.l.b16 %v1035
      %v1068 = vunpack.c.l.b16 %v1036
      %v1069 = vunpack.c.l.b16 %v1037
      %v1070 = vunpack.c.l.b16 %v1038
      %v1071 = vunpack.c.l.b16 %v1039
      %v1072 = vunpack.c.l.b16 %v1040
      %v1073 = vunpack.c.l.b16 %v1041
      %v1074 = vunpack.c.l.b16 %v1042
      %v1075 = vunpack.c.l.b16 %v1043
      %v1076 = vunpack.c.l.b16 %v1044
      %v1077 = vunpack.c.l.b16 %v1045
      %v1078 = vunpack.c.l.b16 %v1046
      %v1079 = vpack.c.b16 %v1064, %v1063
      %v1080 = vpack.c.b16 %v1066, %v1065
      %v1081 = vpack.c.b16 %v1068, %v1067
      %v1082 = vpack.c.b16 %v1070, %v1069
      %v1083 = vpack.c.b16 %v1072, %v1071
      %v1084 = vpack.c.b16 %v1074, %v1073
      %v1085 = vpack.c.b16 %v1076, %v1075
      %v1086 = vpack.c.b16 %v1078, %v1077
      %1095 = vmatpush.bf16.msra.mxu0 %v1086
      %1096 = vmatpush.bf16.msra.mxu0 %v1085
      %1097 = vmatpush.bf16.msra.mxu0 %v1084
      %1098 = vmatpush.bf16.msra.mxu0 %v1083
      %1099 = vmatpush.bf16.msra.mxu0 %v1082
      %1100 = vmatpush.bf16.msra.mxu0 %v1081
      %1101 = vmatpush.bf16.msra.mxu0 %v1080
      %1102 = vmatpush.bf16.msra.mxu0 %v1079
      %1103 = vmatmul.bf16.gmra.mxu0 %v1014
      %v1104 = vpop.f32.mrf.mxu0
      %v1105 = vadd.f32 0.0, %v1104
      %v1106 = vpop.f32.mrf.mxu0
      %v1107 = vadd.f32 0.0, %v1106
      %1108 = vmatmul.bf16.gmra.mxu0 %v1015
      %v1109 = vpop.f32.mrf.mxu0
      %v1110 = vadd.f32 0.0, %v1109
      %v1111 = vpop.f32.mrf.mxu0
      %v1112 = vadd.f32 0.0, %v1111
      %1113 = vmatmul.bf16.gmra.mxu0 %v1016
      %v1114 = vpop.f32.mrf.mxu0
      %v1115 = vadd.f32 0.0, %v1114
      %v1116 = vpop.f32.mrf.mxu0
      %v1117 = vadd.f32 0.0, %v1116
      %1118 = vmatmul.bf16.gmra.mxu0 %v1017
      %v1119 = vpop.f32.mrf.mxu0
      %v1120 = vadd.f32 0.0, %v1119
      %v1121 = vpop.f32.mrf.mxu0
      %v1122 = vadd.f32 0.0, %v1121
      %1123 = vmatmul.bf16.gmra.mxu0 %v1018
      %v1124 = vpop.f32.mrf.mxu0
      %v1125 = vadd.f32 0.0, %v1124
      %v1126 = vpop.f32.mrf.mxu0
      %v1127 = vadd.f32 0.0, %v1126
      %1128 = vmatmul.bf16.gmra.mxu0 %v1019
      %v1129 = vpop.f32.mrf.mxu0
      %v1130 = vadd.f32 0.0, %v1129
      %v1131 = vpop.f32.mrf.mxu0
      %v1132 = vadd.f32 0.0, %v1131
      %1133 = vmatmul.bf16.gmra.mxu0 %v1020
      %v1134 = vpop.f32.mrf.mxu0
      %v1135 = vadd.f32 0.0, %v1134
      %v1136 = vpop.f32.mrf.mxu0
      %v1137 = vadd.f32 0.0, %v1136
      %1138 = vmatmul.bf16.gmra.mxu0 %v1021
      %v1139 = vpop.f32.mrf.mxu0
      %v1140 = vadd.f32 0.0, %v1139
      %v1141 = vpop.f32.mrf.mxu0
      %v1142 = vadd.f32 0.0, %v1141
      %1143 = vmatmul.bf16.gmra.mxu0 %v1022
      %v1144 = vpop.f32.mrf.mxu0
      %v1145 = vadd.f32 0.0, %v1144
      %v1146 = vpop.f32.mrf.mxu0
      %v1147 = vadd.f32 0.0, %v1146
      %1148 = vmatmul.bf16.gmra.mxu0 %v1023
      %v1149 = vpop.f32.mrf.mxu0
      %v1150 = vadd.f32 0.0, %v1149
      %v1151 = vpop.f32.mrf.mxu0
      %v1152 = vadd.f32 0.0, %v1151
      %1153 = vmatmul.bf16.gmra.mxu0 %v1024
      %v1154 = vpop.f32.mrf.mxu0
      %v1155 = vadd.f32 0.0, %v1154
      %v1156 = vpop.f32.mrf.mxu0
      %v1157 = vadd.f32 0.0, %v1156
      %1158 = vmatmul.bf16.gmra.mxu0 %v1025
      %v1159 = vpop.f32.mrf.mxu0
      %v1160 = vadd.f32 0.0, %v1159
      %v1161 = vpop.f32.mrf.mxu0
      %v1162 = vadd.f32 0.0, %v1161
      %1163 = vmatmul.bf16.gmra.mxu0 %v1026
      %v1164 = vpop.f32.mrf.mxu0
      %v1165 = vadd.f32 0.0, %v1164
      %v1166 = vpop.f32.mrf.mxu0
      %v1167 = vadd.f32 0.0, %v1166
      %1168 = vmatmul.bf16.gmra.mxu0 %v1027
      %v1169 = vpop.f32.mrf.mxu0
      %v1170 = vadd.f32 0.0, %v1169
      %v1171 = vpop.f32.mrf.mxu0
      %v1172 = vadd.f32 0.0, %v1171
      %1173 = vmatmul.bf16.gmra.mxu0 %v1028
      %v1174 = vpop.f32.mrf.mxu0
      %v1175 = vadd.f32 0.0, %v1174
      %v1176 = vpop.f32.mrf.mxu0
      %v1177 = vadd.f32 0.0, %v1176
      %1178 = vmatmul.bf16.gmra.mxu0 %v1029
      %v1179 = vpop.f32.mrf.mxu0
      %v1180 = vadd.f32 0.0, %v1179
      %v1181 = vpop.f32.mrf.mxu0
      %v1182 = vadd.f32 0.0, %v1181
      %1183 = vdwg.mxu0
      %v1184 = vadd.f32 %v949, %v1105
      %v1185 = vadd.f32 %v950, %v1107
      %v1186 = vadd.f32 %v951, %v1110
      %v1187 = vadd.f32 %v952, %v1112
      %v1188 = vadd.f32 %v953, %v1115
      %v1189 = vadd.f32 %v954, %v1117
      %v1190 = vadd.f32 %v955, %v1120
      %v1191 = vadd.f32 %v956, %v1122
      %v1192 = vadd.f32 %v957, %v1125
      %v1193 = vadd.f32 %v958, %v1127
      %v1194 = vadd.f32 %v959, %v1130
      %v1195 = vadd.f32 %v960, %v1132
      %v1196 = vadd.f32 %v961, %v1135
      %v1197 = vadd.f32 %v962, %v1137
      %v1198 = vadd.f32 %v963, %v1140
      %v1199 = vadd.f32 %v964, %v1142
      %v1200 = vadd.f32 %v965, %v1145
      %v1201 = vadd.f32 %v966, %v1147
      %v1202 = vadd.f32 %v967, %v1150
      %v1203 = vadd.f32 %v968, %v1152
      %v1204 = vadd.f32 %v969, %v1155
      %v1205 = vadd.f32 %v970, %v1157
      %v1206 = vadd.f32 %v971, %v1160
      %v1207 = vadd.f32 %v972, %v1162
      %v1208 = vadd.f32 %v973, %v1165
      %v1209 = vadd.f32 %v974, %v1167
      %v1210 = vadd.f32 %v975, %v1170
      %v1211 = vadd.f32 %v976, %v1172
      %v1212 = vadd.f32 %v977, %v1175
      %v1213 = vadd.f32 %v978, %v1177
      %v1214 = vadd.f32 %v979, %v1180
      %v1215 = vadd.f32 %v980, %v1182
      %v1216 = vld [vmem:[%s981 + $0x1] sm:$0xff]
      %v1217 = vld [vmem:[%s981 + $0x9] sm:$0xff]
      %v1218 = vld [vmem:[%s981 + $0x19] sm:$0xff]
      %v1219 = vld [vmem:[%s981 + $0x21] sm:$0xff]
      %v1220 = vld [vmem:[%s981 + $0x31] sm:$0xff]
      %v1221 = vld [vmem:[%s981 + $0x39] sm:$0xff]
      %v1222 = vld [vmem:[%s981 + $0x49] sm:$0xff]
      %v1223 = vld [vmem:[%s981 + $0x51] sm:$0xff]
      %v1224 = vld [vmem:[%s981 + $0x61] sm:$0xff]
      %v1225 = vld [vmem:[%s981 + $0x69] sm:$0xff]
      %v1226 = vld [vmem:[%s981 + $0x79] sm:$0xff]
      %v1227 = vld [vmem:[%s981 + $0x81] sm:$0xff]
      %v1228 = vld [vmem:[%s981 + $0x91] sm:$0xff]
      %v1229 = vld [vmem:[%s981 + $0x99] sm:$0xff]
      %v1230 = vld [vmem:[%s981 + $0xa9] sm:$0xff]
      %v1231 = vld [vmem:[%s981 + $0xb1] sm:$0xff]
      %v1232 = vld [vmem:[%s981 + $0xc1] sm:$0xff]
      %v1233 = vld [vmem:[%s981 + $0xc9] sm:$0xff]
      %v1234 = vld [vmem:[%s981 + $0xd9] sm:$0xff]
      %v1235 = vld [vmem:[%s981 + $0xe1] sm:$0xff]
      %v1236 = vld [vmem:[%s981 + $0xf1] sm:$0xff]
      %v1237 = vld [vmem:[%s981 + $0xf9] sm:$0xff]
      %v1238 = vld [vmem:[%s981 + $0x109] sm:$0xff]
      %v1239 = vld [vmem:[%s981 + $0x111] sm:$0xff]
      %v1240 = vld [vmem:[%s981 + $0x121] sm:$0xff]
      %v1241 = vld [vmem:[%s981 + $0x129] sm:$0xff]
      %v1242 = vld [vmem:[%s981 + $0x139] sm:$0xff]
      %v1243 = vld [vmem:[%s981 + $0x141] sm:$0xff]
      %v1244 = vld [vmem:[%s981 + $0x151] sm:$0xff]
      %v1245 = vld [vmem:[%s981 + $0x159] sm:$0xff]
      %v1246 = vld [vmem:[%s981 + $0x169] sm:$0xff]
      %v1247 = vld [vmem:[%s981 + $0x171] sm:$0xff]
      %v1248 = vpack.c.bf16 %v1217, %v1216
      %v1249 = vpack.c.bf16 %v1219, %v1218
      %v1250 = vpack.c.bf16 %v1221, %v1220
      %v1251 = vpack.c.bf16 %v1223, %v1222
      %v1252 = vpack.c.bf16 %v1225, %v1224
      %v1253 = vpack.c.bf16 %v1227, %v1226
      %v1254 = vpack.c.bf16 %v1229, %v1228
      %v1255 = vpack.c.bf16 %v1231, %v1230
      %v1256 = vpack.c.bf16 %v1233, %v1232
      %v1257 = vpack.c.bf16 %v1235, %v1234
      %v1258 = vpack.c.bf16 %v1237, %v1236
      %v1259 = vpack.c.bf16 %v1239, %v1238
      %v1260 = vpack.c.bf16 %v1241, %v1240
      %v1261 = vpack.c.bf16 %v1243, %v1242
      %v1262 = vpack.c.bf16 %v1245, %v1244
      %v1263 = vpack.c.bf16 %v1247, %v1246
      %s1264 = scalar_lea.vmem %s1, 256
      %v1265 = vld [vmem:[%s1264] sm:$0xf]
      %v1266 = vld [vmem:[%s1264 + $0x4] sm:$0xf]
      %v1267 = vld [vmem:[%s1264 + $0x8] sm:$0xf]
      %v1268 = vld [vmem:[%s1264 + $0xc] sm:$0xf]
      %v1269 = vld [vmem:[%s1264 + $0x10] sm:$0xf]
      %v1270 = vld [vmem:[%s1264 + $0x14] sm:$0xf]
      %v1271 = vld [vmem:[%s1264 + $0x18] sm:$0xf]
      %v1272 = vld [vmem:[%s1264 + $0x1c] sm:$0xf]
      %v1273 = vld [vmem:[%s1264 + $0x20] sm:$0xf]
      %v1274 = vld [vmem:[%s1264 + $0x24] sm:$0xf]
      %v1275 = vld [vmem:[%s1264 + $0x28] sm:$0xf]
      %v1276 = vld [vmem:[%s1264 + $0x2c] sm:$0xf]
      %v1277 = vld [vmem:[%s1264 + $0x30] sm:$0xf]
      %v1278 = vld [vmem:[%s1264 + $0x34] sm:$0xf]
      %v1279 = vld [vmem:[%s1264 + $0x38] sm:$0xf]
      %v1280 = vld [vmem:[%s1264 + $0x3c] sm:$0xf]
      %v1297 = vunpack.c.l.b16 %v1265
      %v1298 = vunpack.c.l.b16 %v1266
      %v1299 = vunpack.c.l.b16 %v1267
      %v1300 = vunpack.c.l.b16 %v1268
      %v1301 = vunpack.c.l.b16 %v1269
      %v1302 = vunpack.c.l.b16 %v1270
      %v1303 = vunpack.c.l.b16 %v1271
      %v1304 = vunpack.c.l.b16 %v1272
      %v1305 = vunpack.c.l.b16 %v1273
      %v1306 = vunpack.c.l.b16 %v1274
      %v1307 = vunpack.c.l.b16 %v1275
      %v1308 = vunpack.c.l.b16 %v1276
      %v1309 = vunpack.c.l.b16 %v1277
      %v1310 = vunpack.c.l.b16 %v1278
      %v1311 = vunpack.c.l.b16 %v1279
      %v1312 = vunpack.c.l.b16 %v1280
      %v1313 = vpack.c.b16 %v1298, %v1297
      %v1314 = vpack.c.b16 %v1300, %v1299
      %v1315 = vpack.c.b16 %v1302, %v1301
      %v1316 = vpack.c.b16 %v1304, %v1303
      %v1317 = vpack.c.b16 %v1306, %v1305
      %v1318 = vpack.c.b16 %v1308, %v1307
      %v1319 = vpack.c.b16 %v1310, %v1309
      %v1320 = vpack.c.b16 %v1312, %v1311
      %1329 = vmatpush.bf16.msra.mxu0 %v1320
      %1330 = vmatpush.bf16.msra.mxu0 %v1319
      %1331 = vmatpush.bf16.msra.mxu0 %v1318
      %1332 = vmatpush.bf16.msra.mxu0 %v1317
      %1333 = vmatpush.bf16.msra.mxu0 %v1316
      %1334 = vmatpush.bf16.msra.mxu0 %v1315
      %1335 = vmatpush.bf16.msra.mxu0 %v1314
      %1336 = vmatpush.bf16.msra.mxu0 %v1313
      %1337 = vmatmul.bf16.gmra.mxu0 %v1248
      %v1338 = vpop.f32.mrf.mxu0
      %v1339 = vadd.f32 0.0, %v1338
      %v1340 = vpop.f32.mrf.mxu0
      %v1341 = vadd.f32 0.0, %v1340
      %1342 = vmatmul.bf16.gmra.mxu0 %v1249
      %v1343 = vpop.f32.mrf.mxu0
      %v1344 = vadd.f32 0.0, %v1343
      %v1345 = vpop.f32.mrf.mxu0
      %v1346 = vadd.f32 0.0, %v1345
      %1347 = vmatmul.bf16.gmra.mxu0 %v1250
      %v1348 = vpop.f32.mrf.mxu0
      %v1349 = vadd.f32 0.0, %v1348
      %v1350 = vpop.f32.mrf.mxu0
      %v1351 = vadd.f32 0.0, %v1350
      %1352 = vmatmul.bf16.gmra.mxu0 %v1251
      %v1353 = vpop.f32.mrf.mxu0
      %v1354 = vadd.f32 0.0, %v1353
      %v1355 = vpop.f32.mrf.mxu0
      %v1356 = vadd.f32 0.0, %v1355
      %1357 = vmatmul.bf16.gmra.mxu0 %v1252
      %v1358 = vpop.f32.mrf.mxu0
      %v1359 = vadd.f32 0.0, %v1358
      %v1360 = vpop.f32.mrf.mxu0
      %v1361 = vadd.f32 0.0, %v1360
      %1362 = vmatmul.bf16.gmra.mxu0 %v1253
      %v1363 = vpop.f32.mrf.mxu0
      %v1364 = vadd.f32 0.0, %v1363
      %v1365 = vpop.f32.mrf.mxu0
      %v1366 = vadd.f32 0.0, %v1365
      %1367 = vmatmul.bf16.gmra.mxu0 %v1254
      %v1368 = vpop.f32.mrf.mxu0
      %v1369 = vadd.f32 0.0, %v1368
      %v1370 = vpop.f32.mrf.mxu0
      %v1371 = vadd.f32 0.0, %v1370
      %1372 = vmatmul.bf16.gmra.mxu0 %v1255
      %v1373 = vpop.f32.mrf.mxu0
      %v1374 = vadd.f32 0.0, %v1373
      %v1375 = vpop.f32.mrf.mxu0
      %v1376 = vadd.f32 0.0, %v1375
      %1377 = vmatmul.bf16.gmra.mxu0 %v1256
      %v1378 = vpop.f32.mrf.mxu0
      %v1379 = vadd.f32 0.0, %v1378
      %v1380 = vpop.f32.mrf.mxu0
      %v1381 = vadd.f32 0.0, %v1380
      %1382 = vmatmul.bf16.gmra.mxu0 %v1257
      %v1383 = vpop.f32.mrf.mxu0
      %v1384 = vadd.f32 0.0, %v1383
      %v1385 = vpop.f32.mrf.mxu0
      %v1386 = vadd.f32 0.0, %v1385
      %1387 = vmatmul.bf16.gmra.mxu0 %v1258
      %v1388 = vpop.f32.mrf.mxu0
      %v1389 = vadd.f32 0.0, %v1388
      %v1390 = vpop.f32.mrf.mxu0
      %v1391 = vadd.f32 0.0, %v1390
      %1392 = vmatmul.bf16.gmra.mxu0 %v1259
      %v1393 = vpop.f32.mrf.mxu0
      %v1394 = vadd.f32 0.0, %v1393
      %v1395 = vpop.f32.mrf.mxu0
      %v1396 = vadd.f32 0.0, %v1395
      %1397 = vmatmul.bf16.gmra.mxu0 %v1260
      %v1398 = vpop.f32.mrf.mxu0
      %v1399 = vadd.f32 0.0, %v1398
      %v1400 = vpop.f32.mrf.mxu0
      %v1401 = vadd.f32 0.0, %v1400
      %1402 = vmatmul.bf16.gmra.mxu0 %v1261
      %v1403 = vpop.f32.mrf.mxu0
      %v1404 = vadd.f32 0.0, %v1403
      %v1405 = vpop.f32.mrf.mxu0
      %v1406 = vadd.f32 0.0, %v1405
      %1407 = vmatmul.bf16.gmra.mxu0 %v1262
      %v1408 = vpop.f32.mrf.mxu0
      %v1409 = vadd.f32 0.0, %v1408
      %v1410 = vpop.f32.mrf.mxu0
      %v1411 = vadd.f32 0.0, %v1410
      %1412 = vmatmul.bf16.gmra.mxu0 %v1263
      %v1413 = vpop.f32.mrf.mxu0
      %v1414 = vadd.f32 0.0, %v1413
      %v1415 = vpop.f32.mrf.mxu0
      %v1416 = vadd.f32 0.0, %v1415
      %1417 = vdwg.mxu0
      %v1418 = vadd.f32 %v1184, %v1339
      %v1419 = vadd.f32 %v1185, %v1341
      %v1420 = vadd.f32 %v1186, %v1344
      %v1421 = vadd.f32 %v1187, %v1346
      %v1422 = vadd.f32 %v1188, %v1349
      %v1423 = vadd.f32 %v1189, %v1351
      %v1424 = vadd.f32 %v1190, %v1354
      %v1425 = vadd.f32 %v1191, %v1356
      %v1426 = vadd.f32 %v1192, %v1359
      %v1427 = vadd.f32 %v1193, %v1361
      %v1428 = vadd.f32 %v1194, %v1364
      %v1429 = vadd.f32 %v1195, %v1366
      %v1430 = vadd.f32 %v1196, %v1369
      %v1431 = vadd.f32 %v1197, %v1371
      %v1432 = vadd.f32 %v1198, %v1374
      %v1433 = vadd.f32 %v1199, %v1376
      %v1434 = vadd.f32 %v1200, %v1379
      %v1435 = vadd.f32 %v1201, %v1381
      %v1436 = vadd.f32 %v1202, %v1384
      %v1437 = vadd.f32 %v1203, %v1386
      %v1438 = vadd.f32 %v1204, %v1389
      %v1439 = vadd.f32 %v1205, %v1391
      %v1440 = vadd.f32 %v1206, %v1394
      %v1441 = vadd.f32 %v1207, %v1396
      %v1442 = vadd.f32 %v1208, %v1399
      %v1443 = vadd.f32 %v1209, %v1401
      %v1444 = vadd.f32 %v1210, %v1404
      %v1445 = vadd.f32 %v1211, %v1406
      %v1446 = vadd.f32 %v1212, %v1409
      %v1447 = vadd.f32 %v1213, %v1411
      %v1448 = vadd.f32 %v1214, %v1414
      %v1449 = vadd.f32 %v1215, %v1416
      %v1450 = vld [vmem:[%s981 + $0x2] sm:$0xff]
      %v1451 = vld [vmem:[%s981 + $0xa] sm:$0xff]
      %v1452 = vld [vmem:[%s981 + $0x1a] sm:$0xff]
      %v1453 = vld [vmem:[%s981 + $0x22] sm:$0xff]
      %v1454 = vld [vmem:[%s981 + $0x32] sm:$0xff]
      %v1455 = vld [vmem:[%s981 + $0x3a] sm:$0xff]
      %v1456 = vld [vmem:[%s981 + $0x4a] sm:$0xff]
      %v1457 = vld [vmem:[%s981 + $0x52] sm:$0xff]
      %v1458 = vld [vmem:[%s981 + $0x62] sm:$0xff]
      %v1459 = vld [vmem:[%s981 + $0x6a] sm:$0xff]
      %v1460 = vld [vmem:[%s981 + $0x7a] sm:$0xff]
      %v1461 = vld [vmem:[%s981 + $0x82] sm:$0xff]
      %v1462 = vld [vmem:[%s981 + $0x92] sm:$0xff]
      %v1463 = vld [vmem:[%s981 + $0x9a] sm:$0xff]
      %v1464 = vld [vmem:[%s981 + $0xaa] sm:$0xff]
      %v1465 = vld [vmem:[%s981 + $0xb2] sm:$0xff]
      %v1466 = vld [vmem:[%s981 + $0xc2] sm:$0xff]
      %v1467 = vld [vmem:[%s981 + $0xca] sm:$0xff]
      %v1468 = vld [vmem:[%s981 + $0xda] sm:$0xff]
      %v1469 = vld [vmem:[%s981 + $0xe2] sm:$0xff]
      %v1470 = vld [vmem:[%s981 + $0xf2] sm:$0xff]
      %v1471 = vld [vmem:[%s981 + $0xfa] sm:$0xff]
      %v1472 = vld [vmem:[%s981 + $0x10a] sm:$0xff]
      %v1473 = vld [vmem:[%s981 + $0x112] sm:$0xff]
      %v1474 = vld [vmem:[%s981 + $0x122] sm:$0xff]
      %v1475 = vld [vmem:[%s981 + $0x12a] sm:$0xff]
      %v1476 = vld [vmem:[%s981 + $0x13a] sm:$0xff]
      %v1477 = vld [vmem:[%s981 + $0x142] sm:$0xff]
      %v1478 = vld [vmem:[%s981 + $0x152] sm:$0xff]
      %v1479 = vld [vmem:[%s981 + $0x15a] sm:$0xff]
      %v1480 = vld [vmem:[%s981 + $0x16a] sm:$0xff]
      %v1481 = vld [vmem:[%s981 + $0x172] sm:$0xff]
      %v1482 = vpack.c.bf16 %v1451, %v1450
      %v1483 = vpack.c.bf16 %v1453, %v1452
      %v1484 = vpack.c.bf16 %v1455, %v1454
      %v1485 = vpack.c.bf16 %v1457, %v1456
      %v1486 = vpack.c.bf16 %v1459, %v1458
      %v1487 = vpack.c.bf16 %v1461, %v1460
      %v1488 = vpack.c.bf16 %v1463, %v1462
      %v1489 = vpack.c.bf16 %v1465, %v1464
      %v1490 = vpack.c.bf16 %v1467, %v1466
      %v1491 = vpack.c.bf16 %v1469, %v1468
      %v1492 = vpack.c.bf16 %v1471, %v1470
      %v1493 = vpack.c.bf16 %v1473, %v1472
      %v1494 = vpack.c.bf16 %v1475, %v1474
      %v1495 = vpack.c.bf16 %v1477, %v1476
      %v1496 = vpack.c.bf16 %v1479, %v1478
      %v1497 = vpack.c.bf16 %v1481, %v1480
      %s1498 = scalar_lea.vmem %s1, 320
      %v1499 = vld [vmem:[%s1498] sm:$0xf]
      %v1500 = vld [vmem:[%s1498 + $0x4] sm:$0xf]
      %v1501 = vld [vmem:[%s1498 + $0x8] sm:$0xf]
      %v1502 = vld [vmem:[%s1498 + $0xc] sm:$0xf]
      %v1503 = vld [vmem:[%s1498 + $0x10] sm:$0xf]
      %v1504 = vld [vmem:[%s1498 + $0x14] sm:$0xf]
      %v1505 = vld [vmem:[%s1498 + $0x18] sm:$0xf]
      %v1506 = vld [vmem:[%s1498 + $0x1c] sm:$0xf]
      %v1507 = vld [vmem:[%s1498 + $0x20] sm:$0xf]
      %v1508 = vld [vmem:[%s1498 + $0x24] sm:$0xf]
      %v1509 = vld [vmem:[%s1498 + $0x28] sm:$0xf]
      %v1510 = vld [vmem:[%s1498 + $0x2c] sm:$0xf]
      %v1511 = vld [vmem:[%s1498 + $0x30] sm:$0xf]
      %v1512 = vld [vmem:[%s1498 + $0x34] sm:$0xf]
      %v1513 = vld [vmem:[%s1498 + $0x38] sm:$0xf]
      %v1514 = vld [vmem:[%s1498 + $0x3c] sm:$0xf]
      %v1531 = vunpack.c.l.b16 %v1499
      %v1532 = vunpack.c.l.b16 %v1500
      %v1533 = vunpack.c.l.b16 %v1501
      %v1534 = vunpack.c.l.b16 %v1502
      %v1535 = vunpack.c.l.b16 %v1503
      %v1536 = vunpack.c.l.b16 %v1504
      %v1537 = vunpack.c.l.b16 %v1505
      %v1538 = vunpack.c.l.b16 %v1506
      %v1539 = vunpack.c.l.b16 %v1507
      %v1540 = vunpack.c.l.b16 %v1508
      %v1541 = vunpack.c.l.b16 %v1509
      %v1542 = vunpack.c.l.b16 %v1510
      %v1543 = vunpack.c.l.b16 %v1511
      %v1544 = vunpack.c.l.b16 %v1512
      %v1545 = vunpack.c.l.b16 %v1513
      %v1546 = vunpack.c.l.b16 %v1514
      %v1547 = vpack.c.b16 %v1532, %v1531
      %v1548 = vpack.c.b16 %v1534, %v1533
      %v1549 = vpack.c.b16 %v1536, %v1535
      %v1550 = vpack.c.b16 %v1538, %v1537
      %v1551 = vpack.c.b16 %v1540, %v1539
      %v1552 = vpack.c.b16 %v1542, %v1541
      %v1553 = vpack.c.b16 %v1544, %v1543
      %v1554 = vpack.c.b16 %v1546, %v1545
      %1563 = vmatpush.bf16.msra.mxu0 %v1554
      %1564 = vmatpush.bf16.msra.mxu0 %v1553
      %1565 = vmatpush.bf16.msra.mxu0 %v1552
      %1566 = vmatpush.bf16.msra.mxu0 %v1551
      %1567 = vmatpush.bf16.msra.mxu0 %v1550
      %1568 = vmatpush.bf16.msra.mxu0 %v1549
      %1569 = vmatpush.bf16.msra.mxu0 %v1548
      %1570 = vmatpush.bf16.msra.mxu0 %v1547
      %1571 = vmatmul.bf16.gmra.mxu0 %v1482
      %v1572 = vpop.f32.mrf.mxu0
      %v1573 = vadd.f32 0.0, %v1572
      %v1574 = vpop.f32.mrf.mxu0
      %v1575 = vadd.f32 0.0, %v1574
      %1576 = vmatmul.bf16.gmra.mxu0 %v1483
      %v1577 = vpop.f32.mrf.mxu0
      %v1578 = vadd.f32 0.0, %v1577
      %v1579 = vpop.f32.mrf.mxu0
      %v1580 = vadd.f32 0.0, %v1579
      %1581 = vmatmul.bf16.gmra.mxu0 %v1484
      %v1582 = vpop.f32.mrf.mxu0
      %v1583 = vadd.f32 0.0, %v1582
      %v1584 = vpop.f32.mrf.mxu0
      %v1585 = vadd.f32 0.0, %v1584
      %1586 = vmatmul.bf16.gmra.mxu0 %v1485
      %v1587 = vpop.f32.mrf.mxu0
      %v1588 = vadd.f32 0.0, %v1587
      %v1589 = vpop.f32.mrf.mxu0
      %v1590 = vadd.f32 0.0, %v1589
      %1591 = vmatmul.bf16.gmra.mxu0 %v1486
      %v1592 = vpop.f32.mrf.mxu0
      %v1593 = vadd.f32 0.0, %v1592
      %v1594 = vpop.f32.mrf.mxu0
      %v1595 = vadd.f32 0.0, %v1594
      %1596 = vmatmul.bf16.gmra.mxu0 %v1487
      %v1597 = vpop.f32.mrf.mxu0
      %v1598 = vadd.f32 0.0, %v1597
      %v1599 = vpop.f32.mrf.mxu0
      %v1600 = vadd.f32 0.0, %v1599
      %1601 = vmatmul.bf16.gmra.mxu0 %v1488
      %v1602 = vpop.f32.mrf.mxu0
      %v1603 = vadd.f32 0.0, %v1602
      %v1604 = vpop.f32.mrf.mxu0
      %v1605 = vadd.f32 0.0, %v1604
      %1606 = vmatmul.bf16.gmra.mxu0 %v1489
      %v1607 = vpop.f32.mrf.mxu0
      %v1608 = vadd.f32 0.0, %v1607
      %v1609 = vpop.f32.mrf.mxu0
      %v1610 = vadd.f32 0.0, %v1609
      %1611 = vmatmul.bf16.gmra.mxu0 %v1490
      %v1612 = vpop.f32.mrf.mxu0
      %v1613 = vadd.f32 0.0, %v1612
      %v1614 = vpop.f32.mrf.mxu0
      %v1615 = vadd.f32 0.0, %v1614
      %1616 = vmatmul.bf16.gmra.mxu0 %v1491
      %v1617 = vpop.f32.mrf.mxu0
      %v1618 = vadd.f32 0.0, %v1617
      %v1619 = vpop.f32.mrf.mxu0
      %v1620 = vadd.f32 0.0, %v1619
      %1621 = vmatmul.bf16.gmra.mxu0 %v1492
      %v1622 = vpop.f32.mrf.mxu0
      %v1623 = vadd.f32 0.0, %v1622
      %v1624 = vpop.f32.mrf.mxu0
      %v1625 = vadd.f32 0.0, %v1624
      %1626 = vmatmul.bf16.gmra.mxu0 %v1493
      %v1627 = vpop.f32.mrf.mxu0
      %v1628 = vadd.f32 0.0, %v1627
      %v1629 = vpop.f32.mrf.mxu0
      %v1630 = vadd.f32 0.0, %v1629
      %1631 = vmatmul.bf16.gmra.mxu0 %v1494
      %v1632 = vpop.f32.mrf.mxu0
      %v1633 = vadd.f32 0.0, %v1632
      %v1634 = vpop.f32.mrf.mxu0
      %v1635 = vadd.f32 0.0, %v1634
      %1636 = vmatmul.bf16.gmra.mxu0 %v1495
      %v1637 = vpop.f32.mrf.mxu0
      %v1638 = vadd.f32 0.0, %v1637
      %v1639 = vpop.f32.mrf.mxu0
      %v1640 = vadd.f32 0.0, %v1639
      %1641 = vmatmul.bf16.gmra.mxu0 %v1496
      %v1642 = vpop.f32.mrf.mxu0
      %v1643 = vadd.f32 0.0, %v1642
      %v1644 = vpop.f32.mrf.mxu0
      %v1645 = vadd.f32 0.0, %v1644
      %1646 = vmatmul.bf16.gmra.mxu0 %v1497
      %v1647 = vpop.f32.mrf.mxu0
      %v1648 = vadd.f32 0.0, %v1647
      %v1649 = vpop.f32.mrf.mxu0
      %v1650 = vadd.f32 0.0, %v1649
      %1651 = vdwg.mxu0
      %v1652 = vadd.f32 %v1418, %v1573
      %v1653 = vadd.f32 %v1419, %v1575
      %v1654 = vadd.f32 %v1420, %v1578
      %v1655 = vadd.f32 %v1421, %v1580
      %v1656 = vadd.f32 %v1422, %v1583
      %v1657 = vadd.f32 %v1423, %v1585
      %v1658 = vadd.f32 %v1424, %v1588
      %v1659 = vadd.f32 %v1425, %v1590
      %v1660 = vadd.f32 %v1426, %v1593
      %v1661 = vadd.f32 %v1427, %v1595
      %v1662 = vadd.f32 %v1428, %v1598
      %v1663 = vadd.f32 %v1429, %v1600
      %v1664 = vadd.f32 %v1430, %v1603
      %v1665 = vadd.f32 %v1431, %v1605
      %v1666 = vadd.f32 %v1432, %v1608
      %v1667 = vadd.f32 %v1433, %v1610
      %v1668 = vadd.f32 %v1434, %v1613
      %v1669 = vadd.f32 %v1435, %v1615
      %v1670 = vadd.f32 %v1436, %v1618
      %v1671 = vadd.f32 %v1437, %v1620
      %v1672 = vadd.f32 %v1438, %v1623
      %v1673 = vadd.f32 %v1439, %v1625
      %v1674 = vadd.f32 %v1440, %v1628
      %v1675 = vadd.f32 %v1441, %v1630
      %v1676 = vadd.f32 %v1442, %v1633
      %v1677 = vadd.f32 %v1443, %v1635
      %v1678 = vadd.f32 %v1444, %v1638
      %v1679 = vadd.f32 %v1445, %v1640
      %v1680 = vadd.f32 %v1446, %v1643
      %v1681 = vadd.f32 %v1447, %v1645
      %v1682 = vadd.f32 %v1448, %v1648
      %v1683 = vadd.f32 %v1449, %v1650
      %s1684 = scalar_lea.vmem [#allocation2], 48
      %v1685 = vld [vmem:[%s1684] sm:$0xff]
      %v1686 = vld [vmem:[%s1684 + $0x8] sm:$0xff]
      %v1687 = vld [vmem:[%s1684 + $0x18] sm:$0xff]
      %v1688 = vld [vmem:[%s1684 + $0x20] sm:$0xff]
      %v1689 = vld [vmem:[%s1684 + $0x30] sm:$0xff]
      %v1690 = vld [vmem:[%s1684 + $0x38] sm:$0xff]
      %v1691 = vld [vmem:[%s1684 + $0x48] sm:$0xff]
      %v1692 = vld [vmem:[%s1684 + $0x50] sm:$0xff]
      %v1693 = vld [vmem:[%s1684 + $0x60] sm:$0xff]
      %v1694 = vld [vmem:[%s1684 + $0x68] sm:$0xff]
      %v1695 = vld [vmem:[%s1684 + $0x78] sm:$0xff]
      %v1696 = vld [vmem:[%s1684 + $0x80] sm:$0xff]
      %v1697 = vld [vmem:[%s1684 + $0x90] sm:$0xff]
      %v1698 = vld [vmem:[%s1684 + $0x98] sm:$0xff]
      %v1699 = vld [vmem:[%s1684 + $0xa8] sm:$0xff]
      %v1700 = vld [vmem:[%s1684 + $0xb0] sm:$0xff]
      %v1701 = vld [vmem:[%s1684 + $0xc0] sm:$0xff]
      %v1702 = vld [vmem:[%s1684 + $0xc8] sm:$0xff]
      %v1703 = vld [vmem:[%s1684 + $0xd8] sm:$0xff]
      %v1704 = vld [vmem:[%s1684 + $0xe0] sm:$0xff]
      %v1705 = vld [vmem:[%s1684 + $0xf0] sm:$0xff]
      %v1706 = vld [vmem:[%s1684 + $0xf8] sm:$0xff]
      %v1707 = vld [vmem:[%s1684 + $0x108] sm:$0xff]
      %v1708 = vld [vmem:[%s1684 + $0x110] sm:$0xff]
      %v1709 = vld [vmem:[%s1684 + $0x120] sm:$0xff]
      %v1710 = vld [vmem:[%s1684 + $0x128] sm:$0xff]
      %v1711 = vld [vmem:[%s1684 + $0x138] sm:$0xff]
      %v1712 = vld [vmem:[%s1684 + $0x140] sm:$0xff]
      %v1713 = vld [vmem:[%s1684 + $0x150] sm:$0xff]
      %v1714 = vld [vmem:[%s1684 + $0x158] sm:$0xff]
      %v1715 = vld [vmem:[%s1684 + $0x168] sm:$0xff]
      %v1716 = vld [vmem:[%s1684 + $0x170] sm:$0xff]
      %v1717 = vpack.c.bf16 %v1686, %v1685
      %v1718 = vpack.c.bf16 %v1688, %v1687
      %v1719 = vpack.c.bf16 %v1690, %v1689
      %v1720 = vpack.c.bf16 %v1692, %v1691
      %v1721 = vpack.c.bf16 %v1694, %v1693
      %v1722 = vpack.c.bf16 %v1696, %v1695
      %v1723 = vpack.c.bf16 %v1698, %v1697
      %v1724 = vpack.c.bf16 %v1700, %v1699
      %v1725 = vpack.c.bf16 %v1702, %v1701
      %v1726 = vpack.c.bf16 %v1704, %v1703
      %v1727 = vpack.c.bf16 %v1706, %v1705
      %v1728 = vpack.c.bf16 %v1708, %v1707
      %v1729 = vpack.c.bf16 %v1710, %v1709
      %v1730 = vpack.c.bf16 %v1712, %v1711
      %v1731 = vpack.c.bf16 %v1714, %v1713
      %v1732 = vpack.c.bf16 %v1716, %v1715
      %s1733 = scalar_lea.vmem %s1, 384
      %v1734 = vld [vmem:[%s1733] sm:$0xf]
      %v1735 = vld [vmem:[%s1733 + $0x4] sm:$0xf]
      %v1736 = vld [vmem:[%s1733 + $0x8] sm:$0xf]
      %v1737 = vld [vmem:[%s1733 + $0xc] sm:$0xf]
      %v1738 = vld [vmem:[%s1733 + $0x10] sm:$0xf]
      %v1739 = vld [vmem:[%s1733 + $0x14] sm:$0xf]
      %v1740 = vld [vmem:[%s1733 + $0x18] sm:$0xf]
      %v1741 = vld [vmem:[%s1733 + $0x1c] sm:$0xf]
      %v1742 = vld [vmem:[%s1733 + $0x20] sm:$0xf]
      %v1743 = vld [vmem:[%s1733 + $0x24] sm:$0xf]
      %v1744 = vld [vmem:[%s1733 + $0x28] sm:$0xf]
      %v1745 = vld [vmem:[%s1733 + $0x2c] sm:$0xf]
      %v1746 = vld [vmem:[%s1733 + $0x30] sm:$0xf]
      %v1747 = vld [vmem:[%s1733 + $0x34] sm:$0xf]
      %v1748 = vld [vmem:[%s1733 + $0x38] sm:$0xf]
      %v1749 = vld [vmem:[%s1733 + $0x3c] sm:$0xf]
      %v1766 = vunpack.c.l.b16 %v1734
      %v1767 = vunpack.c.l.b16 %v1735
      %v1768 = vunpack.c.l.b16 %v1736
      %v1769 = vunpack.c.l.b16 %v1737
      %v1770 = vunpack.c.l.b16 %v1738
      %v1771 = vunpack.c.l.b16 %v1739
      %v1772 = vunpack.c.l.b16 %v1740
      %v1773 = vunpack.c.l.b16 %v1741
      %v1774 = vunpack.c.l.b16 %v1742
      %v1775 = vunpack.c.l.b16 %v1743
      %v1776 = vunpack.c.l.b16 %v1744
      %v1777 = vunpack.c.l.b16 %v1745
      %v1778 = vunpack.c.l.b16 %v1746
      %v1779 = vunpack.c.l.b16 %v1747
      %v1780 = vunpack.c.l.b16 %v1748
      %v1781 = vunpack.c.l.b16 %v1749
      %v1782 = vpack.c.b16 %v1767, %v1766
      %v1783 = vpack.c.b16 %v1769, %v1768
      %v1784 = vpack.c.b16 %v1771, %v1770
      %v1785 = vpack.c.b16 %v1773, %v1772
      %v1786 = vpack.c.b16 %v1775, %v1774
      %v1787 = vpack.c.b16 %v1777, %v1776
      %v1788 = vpack.c.b16 %v1779, %v1778
      %v1789 = vpack.c.b16 %v1781, %v1780
      %1798 = vmatpush.bf16.msra.mxu0 %v1789
      %1799 = vmatpush.bf16.msra.mxu0 %v1788
      %1800 = vmatpush.bf16.msra.mxu0 %v1787
      %1801 = vmatpush.bf16.msra.mxu0 %v1786
      %1802 = vmatpush.bf16.msra.mxu0 %v1785
      %1803 = vmatpush.bf16.msra.mxu0 %v1784
      %1804 = vmatpush.bf16.msra.mxu0 %v1783
      %1805 = vmatpush.bf16.msra.mxu0 %v1782
      %1806 = vmatmul.bf16.gmra.mxu0 %v1717
      %v1807 = vpop.f32.mrf.mxu0
      %v1808 = vadd.f32 0.0, %v1807
      %v1809 = vpop.f32.mrf.mxu0
      %v1810 = vadd.f32 0.0, %v1809
      %1811 = vmatmul.bf16.gmra.mxu0 %v1718
      %v1812 = vpop.f32.mrf.mxu0
      %v1813 = vadd.f32 0.0, %v1812
      %v1814 = vpop.f32.mrf.mxu0
      %v1815 = vadd.f32 0.0, %v1814
      %1816 = vmatmul.bf16.gmra.mxu0 %v1719
      %v1817 = vpop.f32.mrf.mxu0
      %v1818 = vadd.f32 0.0, %v1817
      %v1819 = vpop.f32.mrf.mxu0
      %v1820 = vadd.f32 0.0, %v1819
      %1821 = vmatmul.bf16.gmra.mxu0 %v1720
      %v1822 = vpop.f32.mrf.mxu0
      %v1823 = vadd.f32 0.0, %v1822
      %v1824 = vpop.f32.mrf.mxu0
      %v1825 = vadd.f32 0.0, %v1824
      %1826 = vmatmul.bf16.gmra.mxu0 %v1721
      %v1827 = vpop.f32.mrf.mxu0
      %v1828 = vadd.f32 0.0, %v1827
      %v1829 = vpop.f32.mrf.mxu0
      %v1830 = vadd.f32 0.0, %v1829
      %1831 = vmatmul.bf16.gmra.mxu0 %v1722
      %v1832 = vpop.f32.mrf.mxu0
      %v1833 = vadd.f32 0.0, %v1832
      %v1834 = vpop.f32.mrf.mxu0
      %v1835 = vadd.f32 0.0, %v1834
      %1836 = vmatmul.bf16.gmra.mxu0 %v1723
      %v1837 = vpop.f32.mrf.mxu0
      %v1838 = vadd.f32 0.0, %v1837
      %v1839 = vpop.f32.mrf.mxu0
      %v1840 = vadd.f32 0.0, %v1839
      %1841 = vmatmul.bf16.gmra.mxu0 %v1724
      %v1842 = vpop.f32.mrf.mxu0
      %v1843 = vadd.f32 0.0, %v1842
      %v1844 = vpop.f32.mrf.mxu0
      %v1845 = vadd.f32 0.0, %v1844
      %1846 = vmatmul.bf16.gmra.mxu0 %v1725
      %v1847 = vpop.f32.mrf.mxu0
      %v1848 = vadd.f32 0.0, %v1847
      %v1849 = vpop.f32.mrf.mxu0
      %v1850 = vadd.f32 0.0, %v1849
      %1851 = vmatmul.bf16.gmra.mxu0 %v1726
      %v1852 = vpop.f32.mrf.mxu0
      %v1853 = vadd.f32 0.0, %v1852
      %v1854 = vpop.f32.mrf.mxu0
      %v1855 = vadd.f32 0.0, %v1854
      %1856 = vmatmul.bf16.gmra.mxu0 %v1727
      %v1857 = vpop.f32.mrf.mxu0
      %v1858 = vadd.f32 0.0, %v1857
      %v1859 = vpop.f32.mrf.mxu0
      %v1860 = vadd.f32 0.0, %v1859
      %1861 = vmatmul.bf16.gmra.mxu0 %v1728
      %v1862 = vpop.f32.mrf.mxu0
      %v1863 = vadd.f32 0.0, %v1862
      %v1864 = vpop.f32.mrf.mxu0
      %v1865 = vadd.f32 0.0, %v1864
      %1866 = vmatmul.bf16.gmra.mxu0 %v1729
      %v1867 = vpop.f32.mrf.mxu0
      %v1868 = vadd.f32 0.0, %v1867
      %v1869 = vpop.f32.mrf.mxu0
      %v1870 = vadd.f32 0.0, %v1869
      %1871 = vmatmul.bf16.gmra.mxu0 %v1730
      %v1872 = vpop.f32.mrf.mxu0
      %v1873 = vadd.f32 0.0, %v1872
      %v1874 = vpop.f32.mrf.mxu0
      %v1875 = vadd.f32 0.0, %v1874
      %1876 = vmatmul.bf16.gmra.mxu0 %v1731
      %v1877 = vpop.f32.mrf.mxu0
      %v1878 = vadd.f32 0.0, %v1877
      %v1879 = vpop.f32.mrf.mxu0
      %v1880 = vadd.f32 0.0, %v1879
      %1881 = vmatmul.bf16.gmra.mxu0 %v1732
      %v1882 = vpop.f32.mrf.mxu0
      %v1883 = vadd.f32 0.0, %v1882
      %v1884 = vpop.f32.mrf.mxu0
      %v1885 = vadd.f32 0.0, %v1884
      %1886 = vdwg.mxu0
      %v1887 = vadd.f32 %v1652, %v1808
      %v1888 = vadd.f32 %v1653, %v1810
      %v1889 = vadd.f32 %v1654, %v1813
      %v1890 = vadd.f32 %v1655, %v1815
      %v1891 = vadd.f32 %v1656, %v1818
      %v1892 = vadd.f32 %v1657, %v1820
      %v1893 = vadd.f32 %v1658, %v1823
      %v1894 = vadd.f32 %v1659, %v1825
      %v1895 = vadd.f32 %v1660, %v1828
      %v1896 = vadd.f32 %v1661, %v1830
      %v1897 = vadd.f32 %v1662, %v1833
      %v1898 = vadd.f32 %v1663, %v1835
      %v1899 = vadd.f32 %v1664, %v1838
      %v1900 = vadd.f32 %v1665, %v1840
      %v1901 = vadd.f32 %v1666, %v1843
      %v1902 = vadd.f32 %v1667, %v1845
      %v1903 = vadd.f32 %v1668, %v1848
      %v1904 = vadd.f32 %v1669, %v1850
      %v1905 = vadd.f32 %v1670, %v1853
      %v1906 = vadd.f32 %v1671, %v1855
      %v1907 = vadd.f32 %v1672, %v1858
      %v1908 = vadd.f32 %v1673, %v1860
      %v1909 = vadd.f32 %v1674, %v1863
      %v1910 = vadd.f32 %v1675, %v1865
      %v1911 = vadd.f32 %v1676, %v1868
      %v1912 = vadd.f32 %v1677, %v1870
      %v1913 = vadd.f32 %v1678, %v1873
      %v1914 = vadd.f32 %v1679, %v1875
      %v1915 = vadd.f32 %v1680, %v1878
      %v1916 = vadd.f32 %v1681, %v1880
      %v1917 = vadd.f32 %v1682, %v1883
      %v1918 = vadd.f32 %v1683, %v1885
      %v1919 = vld [vmem:[%s1684 + $0x1] sm:$0xff]
      %v1920 = vld [vmem:[%s1684 + $0x9] sm:$0xff]
      %v1921 = vld [vmem:[%s1684 + $0x19] sm:$0xff]
      %v1922 = vld [vmem:[%s1684 + $0x21] sm:$0xff]
      %v1923 = vld [vmem:[%s1684 + $0x31] sm:$0xff]
      %v1924 = vld [vmem:[%s1684 + $0x39] sm:$0xff]
      %v1925 = vld [vmem:[%s1684 + $0x49] sm:$0xff]
      %v1926 = vld [vmem:[%s1684 + $0x51] sm:$0xff]
      %v1927 = vld [vmem:[%s1684 + $0x61] sm:$0xff]
      %v1928 = vld [vmem:[%s1684 + $0x69] sm:$0xff]
      %v1929 = vld [vmem:[%s1684 + $0x79] sm:$0xff]
      %v1930 = vld [vmem:[%s1684 + $0x81] sm:$0xff]
      %v1931 = vld [vmem:[%s1684 + $0x91] sm:$0xff]
      %v1932 = vld [vmem:[%s1684 + $0x99] sm:$0xff]
      %v1933 = vld [vmem:[%s1684 + $0xa9] sm:$0xff]
      %v1934 = vld [vmem:[%s1684 + $0xb1] sm:$0xff]
      %v1935 = vld [vmem:[%s1684 + $0xc1] sm:$0xff]
      %v1936 = vld [vmem:[%s1684 + $0xc9] sm:$0xff]
      %v1937 = vld [vmem:[%s1684 + $0xd9] sm:$0xff]
      %v1938 = vld [vmem:[%s1684 + $0xe1] sm:$0xff]
      %v1939 = vld [vmem:[%s1684 + $0xf1] sm:$0xff]
      %v1940 = vld [vmem:[%s1684 + $0xf9] sm:$0xff]
      %v1941 = vld [vmem:[%s1684 + $0x109] sm:$0xff]
      %v1942 = vld [vmem:[%s1684 + $0x111] sm:$0xff]
      %v1943 = vld [vmem:[%s1684 + $0x121] sm:$0xff]
      %v1944 = vld [vmem:[%s1684 + $0x129] sm:$0xff]
      %v1945 = vld [vmem:[%s1684 + $0x139] sm:$0xff]
      %v1946 = vld [vmem:[%s1684 + $0x141] sm:$0xff]
      %v1947 = vld [vmem:[%s1684 + $0x151] sm:$0xff]
      %v1948 = vld [vmem:[%s1684 + $0x159] sm:$0xff]
      %v1949 = vld [vmem:[%s1684 + $0x169] sm:$0xff]
      %v1950 = vld [vmem:[%s1684 + $0x171] sm:$0xff]
      %v1951 = vpack.c.bf16 %v1920, %v1919
      %v1952 = vpack.c.bf16 %v1922, %v1921
      %v1953 = vpack.c.bf16 %v1924, %v1923
      %v1954 = vpack.c.bf16 %v1926, %v1925
      %v1955 = vpack.c.bf16 %v1928, %v1927
      %v1956 = vpack.c.bf16 %v1930, %v1929
      %v1957 = vpack.c.bf16 %v1932, %v1931
      %v1958 = vpack.c.bf16 %v1934, %v1933
      %v1959 = vpack.c.bf16 %v1936, %v1935
      %v1960 = vpack.c.bf16 %v1938, %v1937
      %v1961 = vpack.c.bf16 %v1940, %v1939
      %v1962 = vpack.c.bf16 %v1942, %v1941
      %v1963 = vpack.c.bf16 %v1944, %v1943
      %v1964 = vpack.c.bf16 %v1946, %v1945
      %v1965 = vpack.c.bf16 %v1948, %v1947
      %v1966 = vpack.c.bf16 %v1950, %v1949
      %s1967 = scalar_lea.vmem %s1, 448
      %v1968 = vld [vmem:[%s1967] sm:$0xf]
      %v1969 = vld [vmem:[%s1967 + $0x4] sm:$0xf]
      %v1970 = vld [vmem:[%s1967 + $0x8] sm:$0xf]
      %v1971 = vld [vmem:[%s1967 + $0xc] sm:$0xf]
      %v1972 = vld [vmem:[%s1967 + $0x10] sm:$0xf]
      %v1973 = vld [vmem:[%s1967 + $0x14] sm:$0xf]
      %v1974 = vld [vmem:[%s1967 + $0x18] sm:$0xf]
      %v1975 = vld [vmem:[%s1967 + $0x1c] sm:$0xf]
      %v1976 = vld [vmem:[%s1967 + $0x20] sm:$0xf]
      %v1977 = vld [vmem:[%s1967 + $0x24] sm:$0xf]
      %v1978 = vld [vmem:[%s1967 + $0x28] sm:$0xf]
      %v1979 = vld [vmem:[%s1967 + $0x2c] sm:$0xf]
      %v1980 = vld [vmem:[%s1967 + $0x30] sm:$0xf]
      %v1981 = vld [vmem:[%s1967 + $0x34] sm:$0xf]
      %v1982 = vld [vmem:[%s1967 + $0x38] sm:$0xf]
      %v1983 = vld [vmem:[%s1967 + $0x3c] sm:$0xf]
      %v2000 = vunpack.c.l.b16 %v1968
      %v2001 = vunpack.c.l.b16 %v1969
      %v2002 = vunpack.c.l.b16 %v1970
      %v2003 = vunpack.c.l.b16 %v1971
      %v2004 = vunpack.c.l.b16 %v1972
      %v2005 = vunpack.c.l.b16 %v1973
      %v2006 = vunpack.c.l.b16 %v1974
      %v2007 = vunpack.c.l.b16 %v1975
      %v2008 = vunpack.c.l.b16 %v1976
      %v2009 = vunpack.c.l.b16 %v1977
      %v2010 = vunpack.c.l.b16 %v1978
      %v2011 = vunpack.c.l.b16 %v1979
      %v2012 = vunpack.c.l.b16 %v1980
      %v2013 = vunpack.c.l.b16 %v1981
      %v2014 = vunpack.c.l.b16 %v1982
      %v2015 = vunpack.c.l.b16 %v1983
      %v2016 = vpack.c.b16 %v2001, %v2000
      %v2017 = vpack.c.b16 %v2003, %v2002
      %v2018 = vpack.c.b16 %v2005, %v2004
      %v2019 = vpack.c.b16 %v2007, %v2006
      %v2020 = vpack.c.b16 %v2009, %v2008
      %v2021 = vpack.c.b16 %v2011, %v2010
      %v2022 = vpack.c.b16 %v2013, %v2012
      %v2023 = vpack.c.b16 %v2015, %v2014
      %2032 = vmatpush.bf16.msra.mxu0 %v2023
      %2033 = vmatpush.bf16.msra.mxu0 %v2022
      %2034 = vmatpush.bf16.msra.mxu0 %v2021
      %2035 = vmatpush.bf16.msra.mxu0 %v2020
      %2036 = vmatpush.bf16.msra.mxu0 %v2019
      %2037 = vmatpush.bf16.msra.mxu0 %v2018
      %2038 = vmatpush.bf16.msra.mxu0 %v2017
      %2039 = vmatpush.bf16.msra.mxu0 %v2016
      %2040 = vmatmul.bf16.gmra.mxu0 %v1951
      %v2041 = vpop.f32.mrf.mxu0
      %v2042 = vadd.f32 0.0, %v2041
      %v2043 = vpop.f32.mrf.mxu0
      %v2044 = vadd.f32 0.0, %v2043
      %2045 = vmatmul.bf16.gmra.mxu0 %v1952
      %v2046 = vpop.f32.mrf.mxu0
      %v2047 = vadd.f32 0.0, %v2046
      %v2048 = vpop.f32.mrf.mxu0
      %v2049 = vadd.f32 0.0, %v2048
      %2050 = vmatmul.bf16.gmra.mxu0 %v1953
      %v2051 = vpop.f32.mrf.mxu0
      %v2052 = vadd.f32 0.0, %v2051
      %v2053 = vpop.f32.mrf.mxu0
      %v2054 = vadd.f32 0.0, %v2053
      %2055 = vmatmul.bf16.gmra.mxu0 %v1954
      %v2056 = vpop.f32.mrf.mxu0
      %v2057 = vadd.f32 0.0, %v2056
      %v2058 = vpop.f32.mrf.mxu0
      %v2059 = vadd.f32 0.0, %v2058
      %2060 = vmatmul.bf16.gmra.mxu0 %v1955
      %v2061 = vpop.f32.mrf.mxu0
      %v2062 = vadd.f32 0.0, %v2061
      %v2063 = vpop.f32.mrf.mxu0
      %v2064 = vadd.f32 0.0, %v2063
      %2065 = vmatmul.bf16.gmra.mxu0 %v1956
      %v2066 = vpop.f32.mrf.mxu0
      %v2067 = vadd.f32 0.0, %v2066
      %v2068 = vpop.f32.mrf.mxu0
      %v2069 = vadd.f32 0.0, %v2068
      %2070 = vmatmul.bf16.gmra.mxu0 %v1957
      %v2071 = vpop.f32.mrf.mxu0
      %v2072 = vadd.f32 0.0, %v2071
      %v2073 = vpop.f32.mrf.mxu0
      %v2074 = vadd.f32 0.0, %v2073
      %2075 = vmatmul.bf16.gmra.mxu0 %v1958
      %v2076 = vpop.f32.mrf.mxu0
      %v2077 = vadd.f32 0.0, %v2076
      %v2078 = vpop.f32.mrf.mxu0
      %v2079 = vadd.f32 0.0, %v2078
      %2080 = vmatmul.bf16.gmra.mxu0 %v1959
      %v2081 = vpop.f32.mrf.mxu0
      %v2082 = vadd.f32 0.0, %v2081
      %v2083 = vpop.f32.mrf.mxu0
      %v2084 = vadd.f32 0.0, %v2083
      %2085 = vmatmul.bf16.gmra.mxu0 %v1960
      %v2086 = vpop.f32.mrf.mxu0
      %v2087 = vadd.f32 0.0, %v2086
      %v2088 = vpop.f32.mrf.mxu0
      %v2089 = vadd.f32 0.0, %v2088
      %2090 = vmatmul.bf16.gmra.mxu0 %v1961
      %v2091 = vpop.f32.mrf.mxu0
      %v2092 = vadd.f32 0.0, %v2091
      %v2093 = vpop.f32.mrf.mxu0
      %v2094 = vadd.f32 0.0, %v2093
      %2095 = vmatmul.bf16.gmra.mxu0 %v1962
      %v2096 = vpop.f32.mrf.mxu0
      %v2097 = vadd.f32 0.0, %v2096
      %v2098 = vpop.f32.mrf.mxu0
      %v2099 = vadd.f32 0.0, %v2098
      %2100 = vmatmul.bf16.gmra.mxu0 %v1963
      %v2101 = vpop.f32.mrf.mxu0
      %v2102 = vadd.f32 0.0, %v2101
      %v2103 = vpop.f32.mrf.mxu0
      %v2104 = vadd.f32 0.0, %v2103
      %2105 = vmatmul.bf16.gmra.mxu0 %v1964
      %v2106 = vpop.f32.mrf.mxu0
      %v2107 = vadd.f32 0.0, %v2106
      %v2108 = vpop.f32.mrf.mxu0
      %v2109 = vadd.f32 0.0, %v2108
      %2110 = vmatmul.bf16.gmra.mxu0 %v1965
      %v2111 = vpop.f32.mrf.mxu0
      %v2112 = vadd.f32 0.0, %v2111
      %v2113 = vpop.f32.mrf.mxu0
      %v2114 = vadd.f32 0.0, %v2113
      %2115 = vmatmul.bf16.gmra.mxu0 %v1966
      %v2116 = vpop.f32.mrf.mxu0
      %v2117 = vadd.f32 0.0, %v2116
      %v2118 = vpop.f32.mrf.mxu0
      %v2119 = vadd.f32 0.0, %v2118
      %2120 = vdwg.mxu0
      %v2121 = vadd.f32 %v1887, %v2042
      %v2122 = vadd.f32 %v1888, %v2044
      %v2123 = vadd.f32 %v1889, %v2047
      %v2124 = vadd.f32 %v1890, %v2049
      %v2125 = vadd.f32 %v1891, %v2052
      %v2126 = vadd.f32 %v1892, %v2054
      %v2127 = vadd.f32 %v1893, %v2057
      %v2128 = vadd.f32 %v1894, %v2059
      %v2129 = vadd.f32 %v1895, %v2062
      %v2130 = vadd.f32 %v1896, %v2064
      %v2131 = vadd.f32 %v1897, %v2067
      %v2132 = vadd.f32 %v1898, %v2069
      %v2133 = vadd.f32 %v1899, %v2072
      %v2134 = vadd.f32 %v1900, %v2074
      %v2135 = vadd.f32 %v1901, %v2077
      %v2136 = vadd.f32 %v1902, %v2079
      %v2137 = vadd.f32 %v1903, %v2082
      %v2138 = vadd.f32 %v1904, %v2084
      %v2139 = vadd.f32 %v1905, %v2087
      %v2140 = vadd.f32 %v1906, %v2089
      %v2141 = vadd.f32 %v1907, %v2092
      %v2142 = vadd.f32 %v1908, %v2094
      %v2143 = vadd.f32 %v1909, %v2097
      %v2144 = vadd.f32 %v1910, %v2099
      %v2145 = vadd.f32 %v1911, %v2102
      %v2146 = vadd.f32 %v1912, %v2104
      %v2147 = vadd.f32 %v1913, %v2107
      %v2148 = vadd.f32 %v1914, %v2109
      %v2149 = vadd.f32 %v1915, %v2112
      %v2150 = vadd.f32 %v1916, %v2114
      %v2151 = vadd.f32 %v1917, %v2117
      %v2152 = vadd.f32 %v1918, %v2119
      %v2153 = vld [vmem:[%s1684 + $0x2] sm:$0xff]
      %v2154 = vld [vmem:[%s1684 + $0xa] sm:$0xff]
      %v2155 = vld [vmem:[%s1684 + $0x1a] sm:$0xff]
      %v2156 = vld [vmem:[%s1684 + $0x22] sm:$0xff]
      %v2157 = vld [vmem:[%s1684 + $0x32] sm:$0xff]
      %v2158 = vld [vmem:[%s1684 + $0x3a] sm:$0xff]
      %v2159 = vld [vmem:[%s1684 + $0x4a] sm:$0xff]
      %v2160 = vld [vmem:[%s1684 + $0x52] sm:$0xff]
      %v2161 = vld [vmem:[%s1684 + $0x62] sm:$0xff]
      %v2162 = vld [vmem:[%s1684 + $0x6a] sm:$0xff]
      %v2163 = vld [vmem:[%s1684 + $0x7a] sm:$0xff]
      %v2164 = vld [vmem:[%s1684 + $0x82] sm:$0xff]
      %v2165 = vld [vmem:[%s1684 + $0x92] sm:$0xff]
      %v2166 = vld [vmem:[%s1684 + $0x9a] sm:$0xff]
      %v2167 = vld [vmem:[%s1684 + $0xaa] sm:$0xff]
      %v2168 = vld [vmem:[%s1684 + $0xb2] sm:$0xff]
      %v2169 = vld [vmem:[%s1684 + $0xc2] sm:$0xff]
      %v2170 = vld [vmem:[%s1684 + $0xca] sm:$0xff]
      %v2171 = vld [vmem:[%s1684 + $0xda] sm:$0xff]
      %v2172 = vld [vmem:[%s1684 + $0xe2] sm:$0xff]
      %v2173 = vld [vmem:[%s1684 + $0xf2] sm:$0xff]
      %v2174 = vld [vmem:[%s1684 + $0xfa] sm:$0xff]
      %v2175 = vld [vmem:[%s1684 + $0x10a] sm:$0xff]
      %v2176 = vld [vmem:[%s1684 + $0x112] sm:$0xff]
      %v2177 = vld [vmem:[%s1684 + $0x122] sm:$0xff]
      %v2178 = vld [vmem:[%s1684 + $0x12a] sm:$0xff]
      %v2179 = vld [vmem:[%s1684 + $0x13a] sm:$0xff]
      %v2180 = vld [vmem:[%s1684 + $0x142] sm:$0xff]
      %v2181 = vld [vmem:[%s1684 + $0x152] sm:$0xff]
      %v2182 = vld [vmem:[%s1684 + $0x15a] sm:$0xff]
      %v2183 = vld [vmem:[%s1684 + $0x16a] sm:$0xff]
      %v2184 = vld [vmem:[%s1684 + $0x172] sm:$0xff]
      %v2185 = vpack.c.bf16 %v2154, %v2153
      %v2186 = vpack.c.bf16 %v2156, %v2155
      %v2187 = vpack.c.bf16 %v2158, %v2157
      %v2188 = vpack.c.bf16 %v2160, %v2159
      %v2189 = vpack.c.bf16 %v2162, %v2161
      %v2190 = vpack.c.bf16 %v2164, %v2163
      %v2191 = vpack.c.bf16 %v2166, %v2165
      %v2192 = vpack.c.bf16 %v2168, %v2167
      %v2193 = vpack.c.bf16 %v2170, %v2169
      %v2194 = vpack.c.bf16 %v2172, %v2171
      %v2195 = vpack.c.bf16 %v2174, %v2173
      %v2196 = vpack.c.bf16 %v2176, %v2175
      %v2197 = vpack.c.bf16 %v2178, %v2177
      %v2198 = vpack.c.bf16 %v2180, %v2179
      %v2199 = vpack.c.bf16 %v2182, %v2181
      %v2200 = vpack.c.bf16 %v2184, %v2183
      %s2201 = scalar_lea.vmem %s1, 512
      %v2202 = vld [vmem:[%s2201] sm:$0xf]
      %v2203 = vld [vmem:[%s2201 + $0x4] sm:$0xf]
      %v2204 = vld [vmem:[%s2201 + $0x8] sm:$0xf]
      %v2205 = vld [vmem:[%s2201 + $0xc] sm:$0xf]
      %v2206 = vld [vmem:[%s2201 + $0x10] sm:$0xf]
      %v2207 = vld [vmem:[%s2201 + $0x14] sm:$0xf]
      %v2208 = vld [vmem:[%s2201 + $0x18] sm:$0xf]
      %v2209 = vld [vmem:[%s2201 + $0x1c] sm:$0xf]
      %v2210 = vld [vmem:[%s2201 + $0x20] sm:$0xf]
      %v2211 = vld [vmem:[%s2201 + $0x24] sm:$0xf]
      %v2212 = vld [vmem:[%s2201 + $0x28] sm:$0xf]
      %v2213 = vld [vmem:[%s2201 + $0x2c] sm:$0xf]
      %v2214 = vld [vmem:[%s2201 + $0x30] sm:$0xf]
      %v2215 = vld [vmem:[%s2201 + $0x34] sm:$0xf]
      %v2216 = vld [vmem:[%s2201 + $0x38] sm:$0xf]
      %v2217 = vld [vmem:[%s2201 + $0x3c] sm:$0xf]
      %v2234 = vunpack.c.l.b16 %v2202
      %v2235 = vunpack.c.l.b16 %v2203
      %v2236 = vunpack.c.l.b16 %v2204
      %v2237 = vunpack.c.l.b16 %v2205
      %v2238 = vunpack.c.l.b16 %v2206
      %v2239 = vunpack.c.l.b16 %v2207
      %v2240 = vunpack.c.l.b16 %v2208
      %v2241 = vunpack.c.l.b16 %v2209
      %v2242 = vunpack.c.l.b16 %v2210
      %v2243 = vunpack.c.l.b16 %v2211
      %v2244 = vunpack.c.l.b16 %v2212
      %v2245 = vunpack.c.l.b16 %v2213
      %v2246 = vunpack.c.l.b16 %v2214
      %v2247 = vunpack.c.l.b16 %v2215
      %v2248 = vunpack.c.l.b16 %v2216
      %v2249 = vunpack.c.l.b16 %v2217
      %v2250 = vpack.c.b16 %v2235, %v2234
      %v2251 = vpack.c.b16 %v2237, %v2236
      %v2252 = vpack.c.b16 %v2239, %v2238
      %v2253 = vpack.c.b16 %v2241, %v2240
      %v2254 = vpack.c.b16 %v2243, %v2242
      %v2255 = vpack.c.b16 %v2245, %v2244
      %v2256 = vpack.c.b16 %v2247, %v2246
      %v2257 = vpack.c.b16 %v2249, %v2248
      %2266 = vmatpush.bf16.msra.mxu0 %v2257
      %2267 = vmatpush.bf16.msra.mxu0 %v2256
      %2268 = vmatpush.bf16.msra.mxu0 %v2255
      %2269 = vmatpush.bf16.msra.mxu0 %v2254
      %2270 = vmatpush.bf16.msra.mxu0 %v2253
      %2271 = vmatpush.bf16.msra.mxu0 %v2252
      %2272 = vmatpush.bf16.msra.mxu0 %v2251
      %2273 = vmatpush.bf16.msra.mxu0 %v2250
      %2274 = vmatmul.bf16.gmra.mxu0 %v2185
      %v2275 = vpop.f32.mrf.mxu0
      %v2276 = vadd.f32 0.0, %v2275
      %v2277 = vpop.f32.mrf.mxu0
      %v2278 = vadd.f32 0.0, %v2277
      %2279 = vmatmul.bf16.gmra.mxu0 %v2186
      %v2280 = vpop.f32.mrf.mxu0
      %v2281 = vadd.f32 0.0, %v2280
      %v2282 = vpop.f32.mrf.mxu0
      %v2283 = vadd.f32 0.0, %v2282
      %2284 = vmatmul.bf16.gmra.mxu0 %v2187
      %v2285 = vpop.f32.mrf.mxu0
      %v2286 = vadd.f32 0.0, %v2285
      %v2287 = vpop.f32.mrf.mxu0
      %v2288 = vadd.f32 0.0, %v2287
      %2289 = vmatmul.bf16.gmra.mxu0 %v2188
      %v2290 = vpop.f32.mrf.mxu0
      %v2291 = vadd.f32 0.0, %v2290
      %v2292 = vpop.f32.mrf.mxu0
      %v2293 = vadd.f32 0.0, %v2292
      %2294 = vmatmul.bf16.gmra.mxu0 %v2189
      %v2295 = vpop.f32.mrf.mxu0
      %v2296 = vadd.f32 0.0, %v2295
      %v2297 = vpop.f32.mrf.mxu0
      %v2298 = vadd.f32 0.0, %v2297
      %2299 = vmatmul.bf16.gmra.mxu0 %v2190
      %v2300 = vpop.f32.mrf.mxu0
      %v2301 = vadd.f32 0.0, %v2300
      %v2302 = vpop.f32.mrf.mxu0
      %v2303 = vadd.f32 0.0, %v2302
      %2304 = vmatmul.bf16.gmra.mxu0 %v2191
      %v2305 = vpop.f32.mrf.mxu0
      %v2306 = vadd.f32 0.0, %v2305
      %v2307 = vpop.f32.mrf.mxu0
      %v2308 = vadd.f32 0.0, %v2307
      %2309 = vmatmul.bf16.gmra.mxu0 %v2192
      %v2310 = vpop.f32.mrf.mxu0
      %v2311 = vadd.f32 0.0, %v2310
      %v2312 = vpop.f32.mrf.mxu0
      %v2313 = vadd.f32 0.0, %v2312
      %2314 = vmatmul.bf16.gmra.mxu0 %v2193
      %v2315 = vpop.f32.mrf.mxu0
      %v2316 = vadd.f32 0.0, %v2315
      %v2317 = vpop.f32.mrf.mxu0
      %v2318 = vadd.f32 0.0, %v2317
      %2319 = vmatmul.bf16.gmra.mxu0 %v2194
      %v2320 = vpop.f32.mrf.mxu0
      %v2321 = vadd.f32 0.0, %v2320
      %v2322 = vpop.f32.mrf.mxu0
      %v2323 = vadd.f32 0.0, %v2322
      %2324 = vmatmul.bf16.gmra.mxu0 %v2195
      %v2325 = vpop.f32.mrf.mxu0
      %v2326 = vadd.f32 0.0, %v2325
      %v2327 = vpop.f32.mrf.mxu0
      %v2328 = vadd.f32 0.0, %v2327
      %2329 = vmatmul.bf16.gmra.mxu0 %v2196
      %v2330 = vpop.f32.mrf.mxu0
      %v2331 = vadd.f32 0.0, %v2330
      %v2332 = vpop.f32.mrf.mxu0
      %v2333 = vadd.f32 0.0, %v2332
      %2334 = vmatmul.bf16.gmra.mxu0 %v2197
      %v2335 = vpop.f32.mrf.mxu0
      %v2336 = vadd.f32 0.0, %v2335
      %v2337 = vpop.f32.mrf.mxu0
      %v2338 = vadd.f32 0.0, %v2337
      %2339 = vmatmul.bf16.gmra.mxu0 %v2198
      %v2340 = vpop.f32.mrf.mxu0
      %v2341 = vadd.f32 0.0, %v2340
      %v2342 = vpop.f32.mrf.mxu0
      %v2343 = vadd.f32 0.0, %v2342
      %2344 = vmatmul.bf16.gmra.mxu0 %v2199
      %v2345 = vpop.f32.mrf.mxu0
      %v2346 = vadd.f32 0.0, %v2345
      %v2347 = vpop.f32.mrf.mxu0
      %v2348 = vadd.f32 0.0, %v2347
      %2349 = vmatmul.bf16.gmra.mxu0 %v2200
      %v2350 = vpop.f32.mrf.mxu0
      %v2351 = vadd.f32 0.0, %v2350
      %v2352 = vpop.f32.mrf.mxu0
      %v2353 = vadd.f32 0.0, %v2352
      %2354 = vdwg.mxu0
      %v2355 = vadd.f32 %v2121, %v2276
      %v2356 = vadd.f32 %v2122, %v2278
      %v2357 = vadd.f32 %v2123, %v2281
      %v2358 = vadd.f32 %v2124, %v2283
      %v2359 = vadd.f32 %v2125, %v2286
      %v2360 = vadd.f32 %v2126, %v2288
      %v2361 = vadd.f32 %v2127, %v2291
      %v2362 = vadd.f32 %v2128, %v2293
      %v2363 = vadd.f32 %v2129, %v2296
      %v2364 = vadd.f32 %v2130, %v2298
      %v2365 = vadd.f32 %v2131, %v2301
      %v2366 = vadd.f32 %v2132, %v2303
      %v2367 = vadd.f32 %v2133, %v2306
      %v2368 = vadd.f32 %v2134, %v2308
      %v2369 = vadd.f32 %v2135, %v2311
      %v2370 = vadd.f32 %v2136, %v2313
      %v2371 = vadd.f32 %v2137, %v2316
      %v2372 = vadd.f32 %v2138, %v2318
      %v2373 = vadd.f32 %v2139, %v2321
      %v2374 = vadd.f32 %v2140, %v2323
      %v2375 = vadd.f32 %v2141, %v2326
      %v2376 = vadd.f32 %v2142, %v2328
      %v2377 = vadd.f32 %v2143, %v2331
      %v2378 = vadd.f32 %v2144, %v2333
      %v2379 = vadd.f32 %v2145, %v2336
      %v2380 = vadd.f32 %v2146, %v2338
      %v2381 = vadd.f32 %v2147, %v2341
      %v2382 = vadd.f32 %v2148, %v2343
      %v2383 = vadd.f32 %v2149, %v2346
      %v2384 = vadd.f32 %v2150, %v2348
      %v2385 = vadd.f32 %v2151, %v2351
      %v2386 = vadd.f32 %v2152, %v2353
      %v2387 = vmax.f32 %v2355, 0.0
      %v2388 = vmax.f32 %v2356, 0.0
      %v2389 = vmax.f32 %v2357, 0.0
      %v2390 = vmax.f32 %v2358, 0.0
      %v2391 = vmax.f32 %v2359, 0.0
      %v2392 = vmax.f32 %v2360, 0.0
      %v2393 = vmax.f32 %v2361, 0.0
      %v2394 = vmax.f32 %v2362, 0.0
      %v2395 = vmax.f32 %v2363, 0.0
      %v2396 = vmax.f32 %v2364, 0.0
      %v2397 = vmax.f32 %v2365, 0.0
      %v2398 = vmax.f32 %v2366, 0.0
      %v2399 = vmax.f32 %v2367, 0.0
      %v2400 = vmax.f32 %v2368, 0.0
      %v2401 = vmax.f32 %v2369, 0.0
      %v2402 = vmax.f32 %v2370, 0.0
      %v2403 = vmax.f32 %v2371, 0.0
      %v2404 = vmax.f32 %v2372, 0.0
      %v2405 = vmax.f32 %v2373, 0.0
      %v2406 = vmax.f32 %v2374, 0.0
      %v2407 = vmax.f32 %v2375, 0.0
      %v2408 = vmax.f32 %v2376, 0.0
      %v2409 = vmax.f32 %v2377, 0.0
      %v2410 = vmax.f32 %v2378, 0.0
      %v2411 = vmax.f32 %v2379, 0.0
      %v2412 = vmax.f32 %v2380, 0.0
      %v2413 = vmax.f32 %v2381, 0.0
      %v2414 = vmax.f32 %v2382, 0.0
      %v2415 = vmax.f32 %v2383, 0.0
      %v2416 = vmax.f32 %v2384, 0.0
      %v2417 = vmax.f32 %v2385, 0.0
      %v2418 = vmax.f32 %v2386, 0.0
      %v2419 = vpack.c.bf16 %v2387, %v2387
      %v2420 = vpack.c.bf16 %v2388, %v2388
      %v2421 = vpack.c.bf16 %v2389, %v2389
      %v2422 = vpack.c.bf16 %v2390, %v2390
      %v2423 = vpack.c.bf16 %v2391, %v2391
      %v2424 = vpack.c.bf16 %v2392, %v2392
      %v2425 = vpack.c.bf16 %v2393, %v2393
      %v2426 = vpack.c.bf16 %v2394, %v2394
      %v2427 = vpack.c.bf16 %v2395, %v2395
      %v2428 = vpack.c.bf16 %v2396, %v2396
      %v2429 = vpack.c.bf16 %v2397, %v2397
      %v2430 = vpack.c.bf16 %v2398, %v2398
      %v2431 = vpack.c.bf16 %v2399, %v2399
      %v2432 = vpack.c.bf16 %v2400, %v2400
      %v2433 = vpack.c.bf16 %v2401, %v2401
      %v2434 = vpack.c.bf16 %v2402, %v2402
      %v2435 = vpack.c.bf16 %v2403, %v2403
      %v2436 = vpack.c.bf16 %v2404, %v2404
      %v2437 = vpack.c.bf16 %v2405, %v2405
      %v2438 = vpack.c.bf16 %v2406, %v2406
      %v2439 = vpack.c.bf16 %v2407, %v2407
      %v2440 = vpack.c.bf16 %v2408, %v2408
      %v2441 = vpack.c.bf16 %v2409, %v2409
      %v2442 = vpack.c.bf16 %v2410, %v2410
      %v2443 = vpack.c.bf16 %v2411, %v2411
      %v2444 = vpack.c.bf16 %v2412, %v2412
      %v2445 = vpack.c.bf16 %v2413, %v2413
      %v2446 = vpack.c.bf16 %v2414, %v2414
      %v2447 = vpack.c.bf16 %v2415, %v2415
      %v2448 = vpack.c.bf16 %v2416, %v2416
      %v2449 = vpack.c.bf16 %v2417, %v2417
      %v2450 = vpack.c.bf16 %v2418, %v2418
      %2451 = vst [vmem:[%s177] sm:$0xf] %v2419
      %2452 = vst [vmem:[%s177 + $0x4] sm:$0xf] %v2420
      %2453 = vst [vmem:[%s177 + $0x8] sm:$0xf] %v2421
      %2454 = vst [vmem:[%s177 + $0xc] sm:$0xf] %v2422
      %2455 = vst [vmem:[%s177 + $0x10] sm:$0xf] %v2423
      %2456 = vst [vmem:[%s177 + $0x14] sm:$0xf] %v2424
      %2457 = vst [vmem:[%s177 + $0x18] sm:$0xf] %v2425
      %2458 = vst [vmem:[%s177 + $0x1c] sm:$0xf] %v2426
      %2459 = vst [vmem:[%s177 + $0x20] sm:$0xf] %v2427
      %2460 = vst [vmem:[%s177 + $0x24] sm:$0xf] %v2428
      %2461 = vst [vmem:[%s177 + $0x28] sm:$0xf] %v2429
      %2462 = vst [vmem:[%s177 + $0x2c] sm:$0xf] %v2430
      %2463 = vst [vmem:[%s177 + $0x30] sm:$0xf] %v2431
      %2464 = vst [vmem:[%s177 + $0x34] sm:$0xf] %v2432
      %2465 = vst [vmem:[%s177 + $0x38] sm:$0xf] %v2433
      %2466 = vst [vmem:[%s177 + $0x3c] sm:$0xf] %v2434
      %2467 = vst [vmem:[%s177 + $0x40] sm:$0xf] %v2435
      %2468 = vst [vmem:[%s177 + $0x44] sm:$0xf] %v2436
      %2469 = vst [vmem:[%s177 + $0x48] sm:$0xf] %v2437
      %2470 = vst [vmem:[%s177 + $0x4c] sm:$0xf] %v2438
      %2471 = vst [vmem:[%s177 + $0x50] sm:$0xf] %v2439
      %2472 = vst [vmem:[%s177 + $0x54] sm:$0xf] %v2440
      %2473 = vst [vmem:[%s177 + $0x58] sm:$0xf] %v2441
      %2474 = vst [vmem:[%s177 + $0x5c] sm:$0xf] %v2442
      %2475 = vst [vmem:[%s177 + $0x60] sm:$0xf] %v2443
      %2476 = vst [vmem:[%s177 + $0x64] sm:$0xf] %v2444
      %2477 = vst [vmem:[%s177 + $0x68] sm:$0xf] %v2445
      %2478 = vst [vmem:[%s177 + $0x6c] sm:$0xf] %v2446
      %2479 = vst [vmem:[%s177 + $0x70] sm:$0xf] %v2447
      %2480 = vst [vmem:[%s177 + $0x74] sm:$0xf] %v2448
      %2481 = vst [vmem:[%s177 + $0x78] sm:$0xf] %v2449
      %2482 = vst [vmem:[%s177 + $0x7c] sm:$0xf] %v2450
      %v2483 = vadd.f32 %v2387, %v2388
      %v2484 = vadd.f32 %v2483, %v2389
      %v2485 = vadd.f32 %v2484, %v2390
      %v2486 = vadd.f32 %v2485, %v2391
      %v2487 = vadd.f32 %v2486, %v2392
      %v2488 = vadd.f32 %v2487, %v2393
      %v2489 = vadd.f32 %v2488, %v2394
      %v2490 = vadd.f32 %v2489, %v2395
      %v2491 = vadd.f32 %v2490, %v2396
      %v2492 = vadd.f32 %v2491, %v2397
      %v2493 = vadd.f32 %v2492, %v2398
      %v2494 = vadd.f32 %v2493, %v2399
      %v2495 = vadd.f32 %v2494, %v2400
      %v2496 = vadd.f32 %v2495, %v2401
      %v2497 = vadd.f32 %v2496, %v2402
      %v2498 = vadd.f32 %v2497, %v2403
      %v2499 = vadd.f32 %v2498, %v2404
      %v2500 = vadd.f32 %v2499, %v2405
      %v2501 = vadd.f32 %v2500, %v2406
      %v2502 = vadd.f32 %v2501, %v2407
      %v2503 = vadd.f32 %v2502, %v2408
      %v2504 = vadd.f32 %v2503, %v2409
      %v2505 = vadd.f32 %v2504, %v2410
      %v2506 = vadd.f32 %v2505, %v2411
      %v2507 = vadd.f32 %v2506, %v2412
      %v2508 = vadd.f32 %v2507, %v2413
      %v2509 = vadd.f32 %v2508, %v2414
      %v2510 = vadd.f32 %v2509, %v2415
      %v2511 = vadd.f32 %v2510, %v2416
      %v2512 = vadd.f32 %v2511, %v2417
      %v2513 = vadd.f32 %v2512, %v2418
      %v2514 = vrot.slane %v2513, 4
      %v2515 = vadd.f32 %v2513, %v2514
      %v2516 = vrot.slane %v2515, 2
      %v2517 = vadd.f32 %v2515, %v2516
      %v2518 = vrot.slane %v2517, 1
      %v2519 = vadd.f32 %v2517, %v2518
      %2520 = vst [vmem:[%s181] sm:$0x1] %v2519
      %v2521 = vmul.f32 %v2387, %v2387
      %v2522 = vmul.f32 %v2388, %v2388
      %v2523 = vmul.f32 %v2389, %v2389
      %v2524 = vmul.f32 %v2390, %v2390
      %v2525 = vmul.f32 %v2391, %v2391
      %v2526 = vmul.f32 %v2392, %v2392
      %v2527 = vmul.f32 %v2393, %v2393
      %v2528 = vmul.f32 %v2394, %v2394
      %v2529 = vmul.f32 %v2395, %v2395
      %v2530 = vmul.f32 %v2396, %v2396
      %v2531 = vmul.f32 %v2397, %v2397
      %v2532 = vmul.f32 %v2398, %v2398
      %v2533 = vmul.f32 %v2399, %v2399
      %v2534 = vmul.f32 %v2400, %v2400
      %v2535 = vmul.f32 %v2401, %v2401
      %v2536 = vmul.f32 %v2402, %v2402
      %v2537 = vmul.f32 %v2403, %v2403
      %v2538 = vmul.f32 %v2404, %v2404
      %v2539 = vmul.f32 %v2405, %v2405
      %v2540 = vmul.f32 %v2406, %v2406
      %v2541 = vmul.f32 %v2407, %v2407
      %v2542 = vmul.f32 %v2408, %v2408
      %v2543 = vmul.f32 %v2409, %v2409
      %v2544 = vmul.f32 %v2410, %v2410
      %v2545 = vmul.f32 %v2411, %v2411
      %v2546 = vmul.f32 %v2412, %v2412
      %v2547 = vmul.f32 %v2413, %v2413
      %v2548 = vmul.f32 %v2414, %v2414
      %v2549 = vmul.f32 %v2415, %v2415
      %v2550 = vmul.f32 %v2416, %v2416
      %v2551 = vmul.f32 %v2417, %v2417
      %v2552 = vmul.f32 %v2418, %v2418
      %v2553 = vadd.f32 %v2521, %v2522
      %v2554 = vadd.f32 %v2553, %v2523
      %v2555 = vadd.f32 %v2554, %v2524
      %v2556 = vadd.f32 %v2555, %v2525
      %v2557 = vadd.f32 %v2556, %v2526
      %v2558 = vadd.f32 %v2557, %v2527
      %v2559 = vadd.f32 %v2558, %v2528
      %v2560 = vadd.f32 %v2559, %v2529
      %v2561 = vadd.f32 %v2560, %v2530
      %v2562 = vadd.f32 %v2561, %v2531
      %v2563 = vadd.f32 %v2562, %v2532
      %v2564 = vadd.f32 %v2563, %v2533
      %v2565 = vadd.f32 %v2564, %v2534
      %v2566 = vadd.f32 %v2565, %v2535
      %v2567 = vadd.f32 %v2566, %v2536
      %v2568 = vadd.f32 %v2567, %v2537
      %v2569 = vadd.f32 %v2568, %v2538
      %v2570 = vadd.f32 %v2569, %v2539
      %v2571 = vadd.f32 %v2570, %v2540
      %v2572 = vadd.f32 %v2571, %v2541
      %v2573 = vadd.f32 %v2572, %v2542
      %v2574 = vadd.f32 %v2573, %v2543
      %v2575 = vadd.f32 %v2574, %v2544
      %v2576 = vadd.f32 %v2575, %v2545
      %v2577 = vadd.f32 %v2576, %v2546
      %v2578 = vadd.f32 %v2577, %v2547
      %v2579 = vadd.f32 %v2578, %v2548
      %v2580 = vadd.f32 %v2579, %v2549
      %v2581 = vadd.f32 %v2580, %v2550
      %v2582 = vadd.f32 %v2581, %v2551
      %v2583 = vadd.f32 %v2582, %v2552
      %v2584 = vrot.slane %v2583, 4
      %v2585 = vadd.f32 %v2583, %v2584
      %v2586 = vrot.slane %v2585, 2
      %v2587 = vadd.f32 %v2585, %v2586
      %v2588 = vrot.slane %v2587, 1
      %v2589 = vadd.f32 %v2587, %v2588
      %2590 = vst [vmem:[%s181 + $0x1] sm:$0x1] %v2589
      %p2591 = scmp.lt.s32.totalorder %s15, 1
      %s2592 = scalar_select %p2591, %s15, 1
      %s2593 = smul.addr %s2592, 32
      %s2594 = smul.addr %s2593, 4
      %s2595 = scalar_lea.vmem %s2, %s2594
      %p2596 = scmp.lt.s32.totalorder %s15, 1
      %s2597 = scalar_select %p2596, %s15, 1
      %s2598 = smul.addr %s2597, 2
      %s2599 = scalar_lea.vmem %s3, %s2598
      // Predicated region
      $region29: #{_lambda_.5} parent=27 // pred_check
        %p2600 = pneg %p80
      $region30: #{_lambda_.5} parent=27 // pred_check_branch
        %2602 = sbr.rel (%p2600) target = $region32
      $region31: #{_lambda_.5} parent=27 // pred_region
        _
      $region32: #{_lambda_.5} parent=27 // pred_fallthru
        _
      // Predicated region
      $region33: #{_lambda_.5} parent=27 // pred_check
        %p2603 = pneg %p106
      $region34: #{_lambda_.5} parent=27 // pred_check_branch
        %2605 = sbr.rel (%p2603) target = $region36
      $region35: #{_lambda_.5} parent=27 // pred_region
        _
      $region36: #{_lambda_.5} parent=27 // pred_fallthru
        _
    $region28: #{_lambda_.5} parent=5 // pred_fallthru
      _
    %p2606 = scmp.le.s32.totalorder 2, %s10
    // Predicated region
    $region37: #{_lambda_.5} parent=5 // pred_check
      %p2607 = pneg %p2606
    $region38: #{_lambda_.5} parent=5 // pred_check_branch
      %2609 = sbr.rel (%p2607) target = $region40
    $region39: #{_lambda_.5} parent=5 // pred_region
      %s2610 = ssub.s32 %s10, 2
      // Predicated region
      $region41: #{_lambda_.5} parent=39 // pred_check
        %p2611 = pneg %p86
      $region42: #{_lambda_.5} parent=39 // pred_check_branch
        %2613 = sbr.rel (%p2611) target = $region44
      $region43: #{_lambda_.5} parent=39 // pred_region
        %p2614 = scmp.lt.s32.totalorder %s16, 1
        %s2615 = scalar_select %p2614, %s16, 1
        %s2616 = smul.addr %s2615, 32
        %s2617 = smul.addr %s2616, 4
        %s2618 = scalar_lea.vmem %s2, %s2617
      $region44: #{_lambda_.5} parent=39 // pred_fallthru
        _
      // Predicated region
      $region45: #{_lambda_.5} parent=39 // pred_check
        %p2619 = pneg %p112
      $region46: #{_lambda_.5} parent=39 // pred_check_branch
        %2621 = sbr.rel (%p2619) target = $region48
      $region47: #{_lambda_.5} parent=39 // pred_region
        %p2622 = scmp.lt.s32.totalorder %s16, 1
        %s2623 = scalar_select %p2622, %s16, 1
        %s2624 = smul.addr %s2623, 2
        %s2625 = scalar_lea.vmem %s3, %s2624
      $region48: #{_lambda_.5} parent=39 // pred_fallthru
        _
    $region40: #{_lambda_.5} parent=5 // pred_fallthru
      _
  $region6: #{_lambda_.5} parent=0 // loop_footer
    %s14 = sadd.s32 1, %s10
  $region7: #{_lambda_.5} parent=0 // loop_footer_branch
    %9 = sbr.rel target = $region3
  $region8: #{_lambda_.5} parent=0 // loop_exit
    _

// kernel: _lambda_.7
$region0: #{_lambda_.7}
  #allocation0 [shape = 'u32[]', space=smem, size = 0x4, offset = 0x4, fixed_abs, tag = 'smem constant byte address 0x4 - core index']
  #allocation1 [shape = 'u32[72,128]{1,0:T(1,128)}', space=vmem, size = 0x9000, scoped, tag = 'internal scratch']
  %s0 = inlined_call_operand.vmem [shape: bf16[512,128], index: 0, kind: input, shape index: {}]
  %s1 = inlined_call_operand.vmem [shape: bf16[512,128], index: 1, kind: input, shape index: {}]
  %s2 = inlined_call_operand.vmem [shape: bf16[512,128], index: 2, kind: input, shape index: {}]
  %s3 = inlined_call_operand.vmem [shape: f32[1,128], index: 3, kind: input, shape index: {}]
  %s4 = inlined_call_operand.vmem [shape: f32[1,128], index: 4, kind: input, shape index: {}]
  %s5 = inlined_call_operand.vmem [shape: f32[1,128], index: 5, kind: input, shape index: {}]
  %s6 = inlined_call_operand.vmem [shape: f32[1,128], index: 6, kind: input, shape index: {}]
  %s7 = inlined_call_operand.vmem [shape: f32[1,128], index: 7, kind: input, shape index: {}]
  %s8 = inlined_call_operand.vmem [shape: f32[1,128], index: 8, kind: input, shape index: {}]
  %s9 = inlined_call_operand.vmem [shape: f32[512,128], index: 9, kind: output, shape index: {0}]
  %s10 = inlined_call_operand.vmem [shape: f32[512,128], index: 10, kind: output, shape index: {1}]
  %s11 = inlined_call_operand.vmem [shape: f32[512,128], index: 11, kind: output, shape index: {2}]
  %12 = xla_tuple %s9, %s10, %s11
  %s13 = sld [smem:[#allocation0]]
  $region85: #{_lambda_.7} parent=0
    _
  %s15 = ssub.s32 1, %s13
  %s16 = scalar_select 0, %s15, %s13
  loop: start=0, step=1, limit=4
  $region2: #{_lambda_.7} parent=0 // loop_pre_header
    _
  $region3: #{_lambda_.7} parent=0 // loop_header
    %s18 = sphi 0, %s22
    %p19 = scmp.ge.s32.totalorder %s18, 4
    %s28 = sphi 0, %s30
    %s31 = sphi 0, %s28
    %s32 = sphi 0, %s31
    %s48 = sphi 0, %s32
    %s54 = sphi 0, %s56
    %s57 = sphi 0, %s54
    %s58 = sphi 0, %s57
    %s74 = sphi 0, %s58
    %s80 = sphi 0, %s82
    %s83 = sphi 0, %s80
    %s84 = sphi 0, %s83
    %s100 = sphi 0, %s84
    %s104 = sphi 0, %s104
    %s106 = sphi 0, %s104
    %s107 = sphi 0, %s106
    %s121 = sphi 0, %s107
    %s125 = sphi 0, %s125
    %s127 = sphi 0, %s125
    %s128 = sphi 0, %s127
    %s142 = sphi 0, %s128
    %s146 = sphi 0, %s146
    %s148 = sphi 0, %s146
    %s149 = sphi 0, %s148
    %s163 = sphi 0, %s149
    %s167 = sphi 0, %s167
    %s169 = sphi 0, %s167
    %s170 = sphi 0, %s169
    %s184 = sphi 0, %s170
    %s188 = sphi 0, %s188
    %s190 = sphi 0, %s188
    %s191 = sphi 0, %s190
    %s205 = sphi 0, %s191
    %s209 = sphi 0, %s209
    %s211 = sphi 0, %s209
    %s212 = sphi 0, %s211
    %s226 = sphi 0, %s212
    %s232 = sphi 0, %s234
    %s235 = sphi 0, %s232
    %s236 = sphi 0, %s235
    %s252 = sphi 0, %s236
    %s258 = sphi 0, %s260
    %s261 = sphi 0, %s258
    %s262 = sphi 0, %s261
    %s278 = sphi 0, %s262
    %s284 = sphi 0, %s286
    %s287 = sphi 0, %s284
    %s288 = sphi 0, %s287
    %s304 = sphi 0, %s288
  $region4: #{_lambda_.7} parent=0 // loop_header_branch
    %21 = sbr.rel (%p19) target = $region8
  $region5: #{_lambda_.7} parent=0 // loop_body
    %s23 = ssub.s32 %s18, 1
    %s24 = ssub.s32 %s18, 2
    %s25 = sadd.s32 %s18, 1
    %s26 = ssub.s32 %s18, %s25
    %p27 = scmp.eq.s32.totalorder %s26, 0
    %s29 = sadd.s32 %s28, 1
    %s30 = scalar_select %p27, %s28, %s29
    %p33 = pneg %p27
    %p34 = scmp.eq.s32.totalorder %s18, 1
    %p35 = por %p33, %p34
    %p36 = scmp.ne.s32.totalorder %s28, %s31
    %p37 = scmp.eq.s32.totalorder %s18, 0
    %p38 = por %p36, %p37
    %p39 = scmp.ne.s32.totalorder %s28, %s31
    %p40 = scmp.eq.s32.totalorder %s23, 1
    %p41 = por %p39, %p40
    %p42 = scmp.ne.s32.totalorder %s31, %s32
    %p43 = scmp.eq.s32.totalorder %s23, 0
    %p44 = por %p42, %p43
    %p45 = scmp.ne.s32.totalorder %s31, %s32
    %p46 = scmp.eq.s32.totalorder %s24, 1
    %p47 = por %p45, %p46
    %p49 = scmp.ne.s32.totalorder %s32, %s48
    %p50 = scmp.eq.s32.totalorder %s24, 0
    %p51 = por %p49, %p50
    %s52 = ssub.s32 %s18, %s25
    %p53 = scmp.eq.s32.totalorder %s52, 0
    %s55 = sadd.s32 %s54, 1
    %s56 = scalar_select %p53, %s54, %s55
    %p59 = pneg %p53
    %p60 = scmp.eq.s32.totalorder %s18, 1
    %p61 = por %p59, %p60
    %p62 = scmp.ne.s32.totalorder %s54, %s57
    %p63 = scmp.eq.s32.totalorder %s18, 0
    %p64 = por %p62, %p63
    %p65 = scmp.ne.s32.totalorder %s54, %s57
    %p66 = scmp.eq.s32.totalorder %s23, 1
    %p67 = por %p65, %p66
    %p68 = scmp.ne.s32.totalorder %s57, %s58
    %p69 = scmp.eq.s32.totalorder %s23, 0
    %p70 = por %p68, %p69
    %p71 = scmp.ne.s32.totalorder %s57, %s58
    %p72 = scmp.eq.s32.totalorder %s24, 1
    %p73 = por %p71, %p72
    %p75 = scmp.ne.s32.totalorder %s58, %s74
    %p76 = scmp.eq.s32.totalorder %s24, 0
    %p77 = por %p75, %p76
    %s78 = ssub.s32 %s18, %s25
    %p79 = scmp.eq.s32.totalorder %s78, 0
    %s81 = sadd.s32 %s80, 1
    %s82 = scalar_select %p79, %s80, %s81
    %p85 = pneg %p79
    %p86 = scmp.eq.s32.totalorder %s18, 1
    %p87 = por %p85, %p86
    %p88 = scmp.ne.s32.totalorder %s80, %s83
    %p89 = scmp.eq.s32.totalorder %s18, 0
    %p90 = por %p88, %p89
    %p91 = scmp.ne.s32.totalorder %s80, %s83
    %p92 = scmp.eq.s32.totalorder %s23, 1
    %p93 = por %p91, %p92
    %p94 = scmp.ne.s32.totalorder %s83, %s84
    %p95 = scmp.eq.s32.totalorder %s23, 0
    %p96 = por %p94, %p95
    %p97 = scmp.ne.s32.totalorder %s83, %s84
    %p98 = scmp.eq.s32.totalorder %s24, 1
    %p99 = por %p97, %p98
    %p101 = scmp.ne.s32.totalorder %s84, %s100
    %p102 = scmp.eq.s32.totalorder %s24, 0
    %p103 = por %p101, %p102
    %s105 = sadd.s32 %s104, 1
    %p108 = scmp.eq.s32.totalorder %s18, 1
    %p109 = scmp.ne.s32.totalorder %s104, %s106
    %p110 = scmp.eq.s32.totalorder %s18, 0
    %p111 = por %p109, %p110
    %p112 = scmp.ne.s32.totalorder %s104, %s106
    %p113 = scmp.eq.s32.totalorder %s23, 1
    %p114 = por %p112, %p113
    %p115 = scmp.ne.s32.totalorder %s106, %s107
    %p116 = scmp.eq.s32.totalorder %s23, 0
    %p117 = por %p115, %p116
    %p118 = scmp.ne.s32.totalorder %s106, %s107
    %p119 = scmp.eq.s32.totalorder %s24, 1
    %p120 = por %p118, %p119
    %p122 = scmp.ne.s32.totalorder %s107, %s121
    %p123 = scmp.eq.s32.totalorder %s24, 0
    %p124 = por %p122, %p123
    %s126 = sadd.s32 %s125, 1
    %p129 = scmp.eq.s32.totalorder %s18, 1
    %p130 = scmp.ne.s32.totalorder %s125, %s127
    %p131 = scmp.eq.s32.totalorder %s18, 0
    %p132 = por %p130, %p131
    %p133 = scmp.ne.s32.totalorder %s125, %s127
    %p134 = scmp.eq.s32.totalorder %s23, 1
    %p135 = por %p133, %p134
    %p136 = scmp.ne.s32.totalorder %s127, %s128
    %p137 = scmp.eq.s32.totalorder %s23, 0
    %p138 = por %p136, %p137
    %p139 = scmp.ne.s32.totalorder %s127, %s128
    %p140 = scmp.eq.s32.totalorder %s24, 1
    %p141 = por %p139, %p140
    %p143 = scmp.ne.s32.totalorder %s128, %s142
    %p144 = scmp.eq.s32.totalorder %s24, 0
    %p145 = por %p143, %p144
    %s147 = sadd.s32 %s146, 1
    %p150 = scmp.eq.s32.totalorder %s18, 1
    %p151 = scmp.ne.s32.totalorder %s146, %s148
    %p152 = scmp.eq.s32.totalorder %s18, 0
    %p153 = por %p151, %p152
    %p154 = scmp.ne.s32.totalorder %s146, %s148
    %p155 = scmp.eq.s32.totalorder %s23, 1
    %p156 = por %p154, %p155
    %p157 = scmp.ne.s32.totalorder %s148, %s149
    %p158 = scmp.eq.s32.totalorder %s23, 0
    %p159 = por %p157, %p158
    %p160 = scmp.ne.s32.totalorder %s148, %s149
    %p161 = scmp.eq.s32.totalorder %s24, 1
    %p162 = por %p160, %p161
    %p164 = scmp.ne.s32.totalorder %s149, %s163
    %p165 = scmp.eq.s32.totalorder %s24, 0
    %p166 = por %p164, %p165
    %s168 = sadd.s32 %s167, 1
    %p171 = scmp.eq.s32.totalorder %s18, 1
    %p172 = scmp.ne.s32.totalorder %s167, %s169
    %p173 = scmp.eq.s32.totalorder %s18, 0
    %p174 = por %p172, %p173
    %p175 = scmp.ne.s32.totalorder %s167, %s169
    %p176 = scmp.eq.s32.totalorder %s23, 1
    %p177 = por %p175, %p176
    %p178 = scmp.ne.s32.totalorder %s169, %s170
    %p179 = scmp.eq.s32.totalorder %s23, 0
    %p180 = por %p178, %p179
    %p181 = scmp.ne.s32.totalorder %s169, %s170
    %p182 = scmp.eq.s32.totalorder %s24, 1
    %p183 = por %p181, %p182
    %p185 = scmp.ne.s32.totalorder %s170, %s184
    %p186 = scmp.eq.s32.totalorder %s24, 0
    %p187 = por %p185, %p186
    %s189 = sadd.s32 %s188, 1
    %p192 = scmp.eq.s32.totalorder %s18, 1
    %p193 = scmp.ne.s32.totalorder %s188, %s190
    %p194 = scmp.eq.s32.totalorder %s18, 0
    %p195 = por %p193, %p194
    %p196 = scmp.ne.s32.totalorder %s188, %s190
    %p197 = scmp.eq.s32.totalorder %s23, 1
    %p198 = por %p196, %p197
    %p199 = scmp.ne.s32.totalorder %s190, %s191
    %p200 = scmp.eq.s32.totalorder %s23, 0
    %p201 = por %p199, %p200
    %p202 = scmp.ne.s32.totalorder %s190, %s191
    %p203 = scmp.eq.s32.totalorder %s24, 1
    %p204 = por %p202, %p203
    %p206 = scmp.ne.s32.totalorder %s191, %s205
    %p207 = scmp.eq.s32.totalorder %s24, 0
    %p208 = por %p206, %p207
    %s210 = sadd.s32 %s209, 1
    %p213 = scmp.eq.s32.totalorder %s18, 1
    %p214 = scmp.ne.s32.totalorder %s209, %s211
    %p215 = scmp.eq.s32.totalorder %s18, 0
    %p216 = por %p214, %p215
    %p217 = scmp.ne.s32.totalorder %s209, %s211
    %p218 = scmp.eq.s32.totalorder %s23, 1
    %p219 = por %p217, %p218
    %p220 = scmp.ne.s32.totalorder %s211, %s212
    %p221 = scmp.eq.s32.totalorder %s23, 0
    %p222 = por %p220, %p221
    %p223 = scmp.ne.s32.totalorder %s211, %s212
    %p224 = scmp.eq.s32.totalorder %s24, 1
    %p225 = por %p223, %p224
    %p227 = scmp.ne.s32.totalorder %s212, %s226
    %p228 = scmp.eq.s32.totalorder %s24, 0
    %p229 = por %p227, %p228
    %s230 = ssub.s32 %s18, %s25
    %p231 = scmp.eq.s32.totalorder %s230, 0
    %s233 = sadd.s32 %s232, 1
    %s234 = scalar_select %p231, %s232, %s233
    %p237 = pneg %p231
    %p238 = scmp.eq.s32.totalorder %s18, 1
    %p239 = por %p237, %p238
    %p240 = scmp.ne.s32.totalorder %s232, %s235
    %p241 = scmp.eq.s32.totalorder %s18, 0
    %p242 = por %p240, %p241
    %p243 = scmp.ne.s32.totalorder %s232, %s235
    %p244 = scmp.eq.s32.totalorder %s23, 1
    %p245 = por %p243, %p244
    %p246 = scmp.ne.s32.totalorder %s235, %s236
    %p247 = scmp.eq.s32.totalorder %s23, 0
    %p248 = por %p246, %p247
    %p249 = scmp.ne.s32.totalorder %s235, %s236
    %p250 = scmp.eq.s32.totalorder %s24, 1
    %p251 = por %p249, %p250
    %p253 = scmp.ne.s32.totalorder %s236, %s252
    %p254 = scmp.eq.s32.totalorder %s24, 0
    %p255 = por %p253, %p254
    %s256 = ssub.s32 %s18, %s25
    %p257 = scmp.eq.s32.totalorder %s256, 0
    %s259 = sadd.s32 %s258, 1
    %s260 = scalar_select %p257, %s258, %s259
    %p263 = pneg %p257
    %p264 = scmp.eq.s32.totalorder %s18, 1
    %p265 = por %p263, %p264
    %p266 = scmp.ne.s32.totalorder %s258, %s261
    %p267 = scmp.eq.s32.totalorder %s18, 0
    %p268 = por %p266, %p267
    %p269 = scmp.ne.s32.totalorder %s258, %s261
    %p270 = scmp.eq.s32.totalorder %s23, 1
    %p271 = por %p269, %p270
    %p272 = scmp.ne.s32.totalorder %s261, %s262
    %p273 = scmp.eq.s32.totalorder %s23, 0
    %p274 = por %p272, %p273
    %p275 = scmp.ne.s32.totalorder %s261, %s262
    %p276 = scmp.eq.s32.totalorder %s24, 1
    %p277 = por %p275, %p276
    %p279 = scmp.ne.s32.totalorder %s262, %s278
    %p280 = scmp.eq.s32.totalorder %s24, 0
    %p281 = por %p279, %p280
    %s282 = ssub.s32 %s18, %s25
    %p283 = scmp.eq.s32.totalorder %s282, 0
    %s285 = sadd.s32 %s284, 1
    %s286 = scalar_select %p283, %s284, %s285
    %p289 = pneg %p283
    %p290 = scmp.eq.s32.totalorder %s18, 1
    %p291 = por %p289, %p290
    %p292 = scmp.ne.s32.totalorder %s284, %s287
    %p293 = scmp.eq.s32.totalorder %s18, 0
    %p294 = por %p292, %p293
    %p295 = scmp.ne.s32.totalorder %s284, %s287
    %p296 = scmp.eq.s32.totalorder %s23, 1
    %p297 = por %p295, %p296
    %p298 = scmp.ne.s32.totalorder %s287, %s288
    %p299 = scmp.eq.s32.totalorder %s23, 0
    %p300 = por %p298, %p299
    %p301 = scmp.ne.s32.totalorder %s287, %s288
    %p302 = scmp.eq.s32.totalorder %s24, 1
    %p303 = por %p301, %p302
    %p305 = scmp.ne.s32.totalorder %s288, %s304
    %p306 = scmp.eq.s32.totalorder %s24, 0
    %p307 = por %p305, %p306
    %p308 = scmp.le.s32.totalorder 1, %s18
    %p309 = scmp.lt.s32.totalorder %s18, 3
    %p310 = pnand %p308, %p309
    %p311 = pneg %p310
    // Predicated region
    $region9: #{_lambda_.7} parent=5 // pred_check
      _
    $region10: #{_lambda_.7} parent=5 // pred_check_branch
      %313 = sbr.rel (%p310) target = $region12
    $region11: #{_lambda_.7} parent=5 // pred_region
      %s314 = ssub.s32 %s18, 1
      // Predicated region
      $region13: #{_lambda_.7} parent=11 // pred_check
        %p315 = pneg %p117
      $region14: #{_lambda_.7} parent=11 // pred_check_branch
        %317 = sbr.rel (%p315) target = $region16
      $region15: #{_lambda_.7} parent=11 // pred_region
        _
      $region16: #{_lambda_.7} parent=11 // pred_fallthru
        _
      // Predicated region
      $region17: #{_lambda_.7} parent=11 // pred_check
        %p318 = pneg %p138
      $region18: #{_lambda_.7} parent=11 // pred_check_branch
        %320 = sbr.rel (%p318) target = $region20
      $region19: #{_lambda_.7} parent=11 // pred_region
        _
      $region20: #{_lambda_.7} parent=11 // pred_fallthru
        _
      // Predicated region
      $region21: #{_lambda_.7} parent=11 // pred_check
        %p321 = pneg %p159
      $region22: #{_lambda_.7} parent=11 // pred_check_branch
        %323 = sbr.rel (%p321) target = $region24
      $region23: #{_lambda_.7} parent=11 // pred_region
        _
      $region24: #{_lambda_.7} parent=11 // pred_fallthru
        _
      // Predicated region
      $region25: #{_lambda_.7} parent=11 // pred_check
        %p324 = pneg %p180
      $region26: #{_lambda_.7} parent=11 // pred_check_branch
        %326 = sbr.rel (%p324) target = $region28
      $region27: #{_lambda_.7} parent=11 // pred_region
        _
      $region28: #{_lambda_.7} parent=11 // pred_fallthru
        _
      // Predicated region
      $region29: #{_lambda_.7} parent=11 // pred_check
        %p327 = pneg %p201
      $region30: #{_lambda_.7} parent=11 // pred_check_branch
        %329 = sbr.rel (%p327) target = $region32
      $region31: #{_lambda_.7} parent=11 // pred_region
        _
      $region32: #{_lambda_.7} parent=11 // pred_fallthru
        _
      // Predicated region
      $region33: #{_lambda_.7} parent=11 // pred_check
        %p330 = pneg %p222
      $region34: #{_lambda_.7} parent=11 // pred_check_branch
        %332 = sbr.rel (%p330) target = $region36
      $region35: #{_lambda_.7} parent=11 // pred_region
        _
      $region36: #{_lambda_.7} parent=11 // pred_fallthru
        _
    $region12: #{_lambda_.7} parent=5 // pred_fallthru
      _
    %p333 = scmp.lt.s32.totalorder %s18, 2
    // Predicated region
    $region37: #{_lambda_.7} parent=5 // pred_check
      %p334 = pneg %p333
    $region38: #{_lambda_.7} parent=5 // pred_check_branch
      %336 = sbr.rel (%p334) target = $region40
    $region39: #{_lambda_.7} parent=5 // pred_region
      // Predicated region
      $region41: #{_lambda_.7} parent=39 // pred_check
        %p337 = pneg %p38
      $region42: #{_lambda_.7} parent=39 // pred_check_branch
        %339 = sbr.rel (%p337) target = $region44
      $region43: #{_lambda_.7} parent=39 // pred_region
        %s340 = smul.u32 32, %s18
        %p341 = scmp.lt.s32.totalorder %s340, 63
        %s342 = scalar_select %p341, %s340, 63
        %s343 = smul.addr %s342, 4
        %s344 = scalar_lea.vmem %s0, %s343
        %s345 = smul.u32 32, %s18
      $region44: #{_lambda_.7} parent=39 // pred_fallthru
        _
      // Predicated region
      $region45: #{_lambda_.7} parent=39 // pred_check
        %p346 = pneg %p64
      $region46: #{_lambda_.7} parent=39 // pred_check_branch
        %348 = sbr.rel (%p346) target = $region48
      $region47: #{_lambda_.7} parent=39 // pred_region
        %s349 = smul.u32 32, %s18
        %p350 = scmp.lt.s32.totalorder %s349, 63
        %s351 = scalar_select %p350, %s349, 63
        %s352 = smul.addr %s351, 4
        %s353 = scalar_lea.vmem %s1, %s352
        %s354 = smul.u32 32, %s18
      $region48: #{_lambda_.7} parent=39 // pred_fallthru
        _
      // Predicated region
      $region49: #{_lambda_.7} parent=39 // pred_check
        %p355 = pneg %p90
      $region50: #{_lambda_.7} parent=39 // pred_check_branch
        %357 = sbr.rel (%p355) target = $region52
      $region51: #{_lambda_.7} parent=39 // pred_region
        %s358 = smul.u32 32, %s18
        %p359 = scmp.lt.s32.totalorder %s358, 63
        %s360 = scalar_select %p359, %s358, 63
        %s361 = smul.addr %s360, 4
        %s362 = scalar_lea.vmem %s2, %s361
        %s363 = smul.u32 32, %s18
      $region52: #{_lambda_.7} parent=39 // pred_fallthru
        _
    $region40: #{_lambda_.7} parent=5 // pred_fallthru
      _
    %p364 = scmp.le.s32.totalorder 1, %s18
    %p365 = scmp.lt.s32.totalorder %s18, 3
    %p366 = pnand %p364, %p365
    %p367 = pneg %p366
    // Predicated region
    $region53: #{_lambda_.7} parent=5 // pred_check
      _
    $region54: #{_lambda_.7} parent=5 // pred_check_branch
      %369 = sbr.rel (%p366) target = $region56
    $region55: #{_lambda_.7} parent=5 // pred_region
      %s370 = ssub.s32 %s18, 1
      %s371 = smul.u32 32, %s23
      %p372 = scmp.lt.s32.totalorder %s371, 63
      %s373 = scalar_select %p372, %s371, 63
      %s374 = smul.addr %s373, 4
      %s375 = scalar_lea.vmem %s0, %s374
      %p376 = pneg %p44
      %p377 = pneg %p41
      %s378 = smul.u32 32, %s23
      %p379 = scmp.lt.s32.totalorder %s378, 63
      %s380 = scalar_select %p379, %s378, 63
      %s381 = smul.addr %s380, 4
      %s382 = scalar_lea.vmem %s1, %s381
      %p383 = pneg %p70
      %p384 = pneg %p67
      %s385 = smul.u32 32, %s23
      %p386 = scmp.lt.s32.totalorder %s385, 63
      %s387 = scalar_select %p386, %s385, 63
      %s388 = smul.addr %s387, 4
      %s389 = scalar_lea.vmem %s2, %s388
      %p390 = pneg %p96
      %p391 = pneg %p93
      %p392 = pneg %p117
      %p393 = pneg %p114
      %p394 = pneg %p138
      %p395 = pneg %p135
      %p396 = pneg %p159
      %p397 = pneg %p156
      %p398 = pneg %p180
      %p399 = pneg %p177
      %p400 = pneg %p201
      %p401 = pneg %p198
      %p402 = pneg %p222
      %p403 = pneg %p219
      %p404 = pneg %p248
      %p405 = pneg %p245
      %s406 = smul.u32 32, %s23
      %p407 = scmp.lt.s32.totalorder %s406, 63
      %s408 = scalar_select %p407, %s406, 63
      %s409 = smul.addr %s408, 8
      %s410 = scalar_lea.vmem %s9, %s409
      %p411 = pneg %p274
      %p412 = pneg %p271
      %s413 = smul.u32 32, %s23
      %p414 = scmp.lt.s32.totalorder %s413, 63
      %s415 = scalar_select %p414, %s413, 63
      %s416 = smul.addr %s415, 8
      %s417 = scalar_lea.vmem %s10, %s416
      %p418 = pneg %p300
      %p419 = pneg %p297
      %s420 = smul.u32 32, %s23
      %p421 = scmp.lt.s32.totalorder %s420, 63
      %s422 = scalar_select %p421, %s420, 63
      %s423 = smul.addr %s422, 8
      %s424 = scalar_lea.vmem %s11, %s423
      %s425 = smul.u32 32, %s23
      %p426 = scmp.lt.s32.totalorder %s425, 63
      %s427 = scalar_select %p426, %s425, 63
      %s428 = smul.addr %s427, 4
      %s429 = scalar_lea.vmem %s0, %s428
      %s430 = smul.u32 32, %s23
      %s431 = smul.u32 32, %s23
      %p432 = scmp.lt.s32.totalorder %s431, 63
      %s433 = scalar_select %p432, %s431, 63
      %s434 = smul.addr %s433, 4
      %s435 = scalar_lea.vmem %s1, %s434
      %s436 = smul.u32 32, %s23
      %s437 = smul.u32 32, %s23
      %p438 = scmp.lt.s32.totalorder %s437, 63
      %s439 = scalar_select %p438, %s437, 63
      %s440 = smul.addr %s439, 4
      %s441 = scalar_lea.vmem %s2, %s440
      %s442 = smul.u32 32, %s23
      %s443 = smul.u32 32, %s23
      %p444 = scmp.lt.s32.totalorder %s443, 63
      %s445 = scalar_select %p444, %s443, 63
      %s446 = smul.addr %s445, 8
      %s447 = scalar_lea.vmem %s9, %s446
      %s448 = smul.u32 32, %s23
      %s449 = smul.u32 32, %s23
      %p450 = scmp.lt.s32.totalorder %s449, 63
      %s451 = scalar_select %p450, %s449, 63
      %s452 = smul.addr %s451, 8
      %s453 = scalar_lea.vmem %s10, %s452
      %s454 = smul.u32 32, %s23
      %s455 = smul.u32 32, %s23
      %p456 = scmp.lt.s32.totalorder %s455, 63
      %s457 = scalar_select %p456, %s455, 63
      %s458 = smul.addr %s457, 8
      %s459 = scalar_lea.vmem %s11, %s458
      %s460 = smul.u32 32, %s23
      %v461 = vld [vmem:[%s429] sm:$0xf]
      %v462 = vld [vmem:[%s429 + $0x4] sm:$0xf]
      %v463 = vld [vmem:[%s429 + $0x8] sm:$0xf]
      %v464 = vld [vmem:[%s429 + $0xc] sm:$0xf]
      %v465 = vld [vmem:[%s429 + $0x10] sm:$0xf]
      %v466 = vld [vmem:[%s429 + $0x14] sm:$0xf]
      %v467 = vld [vmem:[%s429 + $0x18] sm:$0xf]
      %v468 = vld [vmem:[%s429 + $0x1c] sm:$0xf]
      %v469 = vld [vmem:[%s429 + $0x20] sm:$0xf]
      %v470 = vld [vmem:[%s429 + $0x24] sm:$0xf]
      %v471 = vld [vmem:[%s429 + $0x28] sm:$0xf]
      %v472 = vld [vmem:[%s429 + $0x2c] sm:$0xf]
      %v473 = vld [vmem:[%s429 + $0x30] sm:$0xf]
      %v474 = vld [vmem:[%s429 + $0x34] sm:$0xf]
      %v475 = vld [vmem:[%s429 + $0x38] sm:$0xf]
      %v476 = vld [vmem:[%s429 + $0x3c] sm:$0xf]
      %v477 = vld [vmem:[%s429 + $0x40] sm:$0xf]
      %v478 = vld [vmem:[%s429 + $0x44] sm:$0xf]
      %v479 = vld [vmem:[%s429 + $0x48] sm:$0xf]
      %v480 = vld [vmem:[%s429 + $0x4c] sm:$0xf]
      %v481 = vld [vmem:[%s429 + $0x50] sm:$0xf]
      %v482 = vld [vmem:[%s429 + $0x54] sm:$0xf]
      %v483 = vld [vmem:[%s429 + $0x58] sm:$0xf]
      %v484 = vld [vmem:[%s429 + $0x5c] sm:$0xf]
      %v485 = vld [vmem:[%s429 + $0x60] sm:$0xf]
      %v486 = vld [vmem:[%s429 + $0x64] sm:$0xf]
      %v487 = vld [vmem:[%s429 + $0x68] sm:$0xf]
      %v488 = vld [vmem:[%s429 + $0x6c] sm:$0xf]
      %v489 = vld [vmem:[%s429 + $0x70] sm:$0xf]
      %v490 = vld [vmem:[%s429 + $0x74] sm:$0xf]
      %v491 = vld [vmem:[%s429 + $0x78] sm:$0xf]
      %v492 = vld [vmem:[%s429 + $0x7c] sm:$0xf]
      %v493 = vunpack.c.l.bf16 %v461
      %v494 = vunpack.c.l.bf16 %v462
      %v495 = vunpack.c.l.bf16 %v463
      %v496 = vunpack.c.l.bf16 %v464
      %v497 = vunpack.c.l.bf16 %v465
      %v498 = vunpack.c.l.bf16 %v466
      %v499 = vunpack.c.l.bf16 %v467
      %v500 = vunpack.c.l.bf16 %v468
      %v501 = vunpack.c.l.bf16 %v469
      %v502 = vunpack.c.l.bf16 %v470
      %v503 = vunpack.c.l.bf16 %v471
      %v504 = vunpack.c.l.bf16 %v472
      %v505 = vunpack.c.l.bf16 %v473
      %v506 = vunpack.c.l.bf16 %v474
      %v507 = vunpack.c.l.bf16 %v475
      %v508 = vunpack.c.l.bf16 %v476
      %v509 = vunpack.c.l.bf16 %v477
      %v510 = vunpack.c.l.bf16 %v478
      %v511 = vunpack.c.l.bf16 %v479
      %v512 = vunpack.c.l.bf16 %v480
      %v513 = vunpack.c.l.bf16 %v481
      %v514 = vunpack.c.l.bf16 %v482
      %v515 = vunpack.c.l.bf16 %v483
      %v516 = vunpack.c.l.bf16 %v484
      %v517 = vunpack.c.l.bf16 %v485
      %v518 = vunpack.c.l.bf16 %v486
      %v519 = vunpack.c.l.bf16 %v487
      %v520 = vunpack.c.l.bf16 %v488
      %v521 = vunpack.c.l.bf16 %v489
      %v522 = vunpack.c.l.bf16 %v490
      %v523 = vunpack.c.l.bf16 %v491
      %v524 = vunpack.c.l.bf16 %v492
      %v525 = vld [vmem:[%s3] sm:$0x1]
      %v527 = vperm.slane %v525, 0
      %v529 = vmul.f32 %v493, %v527
      %v530 = vmul.f32 %v494, %v527
      %v531 = vmul.f32 %v495, %v527
      %v532 = vmul.f32 %v496, %v527
      %v533 = vmul.f32 %v497, %v527
      %v534 = vmul.f32 %v498, %v527
      %v535 = vmul.f32 %v499, %v527
      %v536 = vmul.f32 %v500, %v527
      %v537 = vmul.f32 %v501, %v527
      %v538 = vmul.f32 %v502, %v527
      %v539 = vmul.f32 %v503, %v527
      %v540 = vmul.f32 %v504, %v527
      %v541 = vmul.f32 %v505, %v527
      %v542 = vmul.f32 %v506, %v527
      %v543 = vmul.f32 %v507, %v527
      %v544 = vmul.f32 %v508, %v527
      %v545 = vmul.f32 %v509, %v527
      %v546 = vmul.f32 %v510, %v527
      %v547 = vmul.f32 %v511, %v527
      %v548 = vmul.f32 %v512, %v527
      %v549 = vmul.f32 %v513, %v527
      %v550 = vmul.f32 %v514, %v527
      %v551 = vmul.f32 %v515, %v527
      %v552 = vmul.f32 %v516, %v527
      %v553 = vmul.f32 %v517, %v527
      %v554 = vmul.f32 %v518, %v527
      %v555 = vmul.f32 %v519, %v527
      %v556 = vmul.f32 %v520, %v527
      %v557 = vmul.f32 %v521, %v527
      %v558 = vmul.f32 %v522, %v527
      %v559 = vmul.f32 %v523, %v527
      %v560 = vmul.f32 %v524, %v527
      %v561 = vld [vmem:[%s4] sm:$0x1]
      %v563 = vperm.slane %v561, 0
      %v565 = vadd.f32 %v529, %v563
      %v566 = vadd.f32 %v530, %v563
      %v567 = vadd.f32 %v531, %v563
      %v568 = vadd.f32 %v532, %v563
      %v569 = vadd.f32 %v533, %v563
      %v570 = vadd.f32 %v534, %v563
      %v571 = vadd.f32 %v535, %v563
      %v572 = vadd.f32 %v536, %v563
      %v573 = vadd.f32 %v537, %v563
      %v574 = vadd.f32 %v538, %v563
      %v575 = vadd.f32 %v539, %v563
      %v576 = vadd.f32 %v540, %v563
      %v577 = vadd.f32 %v541, %v563
      %v578 = vadd.f32 %v542, %v563
      %v579 = vadd.f32 %v543, %v563
      %v580 = vadd.f32 %v544, %v563
      %v581 = vadd.f32 %v545, %v563
      %v582 = vadd.f32 %v546, %v563
      %v583 = vadd.f32 %v547, %v563
      %v584 = vadd.f32 %v548, %v563
      %v585 = vadd.f32 %v549, %v563
      %v586 = vadd.f32 %v550, %v563
      %v587 = vadd.f32 %v551, %v563
      %v588 = vadd.f32 %v552, %v563
      %v589 = vadd.f32 %v553, %v563
      %v590 = vadd.f32 %v554, %v563
      %v591 = vadd.f32 %v555, %v563
      %v592 = vadd.f32 %v556, %v563
      %v593 = vadd.f32 %v557, %v563
      %v594 = vadd.f32 %v558, %v563
      %v595 = vadd.f32 %v559, %v563
      %v596 = vadd.f32 %v560, %v563
      %597 = vst [vmem:[%s447] sm:$0xff] %v565
      %598 = vst [vmem:[%s447 + $0x8] sm:$0xff] %v566
      %599 = vst [vmem:[%s447 + $0x10] sm:$0xff] %v567
      %600 = vst [vmem:[%s447 + $0x18] sm:$0xff] %v568
      %601 = vst [vmem:[%s447 + $0x20] sm:$0xff] %v569
      %602 = vst [vmem:[%s447 + $0x28] sm:$0xff] %v570
      %603 = vst [vmem:[%s447 + $0x30] sm:$0xff] %v571
      %604 = vst [vmem:[%s447 + $0x38] sm:$0xff] %v572
      %605 = vst [vmem:[%s447 + $0x40] sm:$0xff] %v573
      %606 = vst [vmem:[%s447 + $0x48] sm:$0xff] %v574
      %607 = vst [vmem:[%s447 + $0x50] sm:$0xff] %v575
      %608 = vst [vmem:[%s447 + $0x58] sm:$0xff] %v576
      %609 = vst [vmem:[%s447 + $0x60] sm:$0xff] %v577
      %610 = vst [vmem:[%s447 + $0x68] sm:$0xff] %v578
      %611 = vst [vmem:[%s447 + $0x70] sm:$0xff] %v579
      %612 = vst [vmem:[%s447 + $0x78] sm:$0xff] %v580
      %613 = vst [vmem:[%s447 + $0x80] sm:$0xff] %v581
      %614 = vst [vmem:[%s447 + $0x88] sm:$0xff] %v582
      %615 = vst [vmem:[%s447 + $0x90] sm:$0xff] %v583
      %616 = vst [vmem:[%s447 + $0x98] sm:$0xff] %v584
      %617 = vst [vmem:[%s447 + $0xa0] sm:$0xff] %v585
      %618 = vst [vmem:[%s447 + $0xa8] sm:$0xff] %v586
      %619 = vst [vmem:[%s447 + $0xb0] sm:$0xff] %v587
      %620 = vst [vmem:[%s447 + $0xb8] sm:$0xff] %v588
      %621 = vst [vmem:[%s447 + $0xc0] sm:$0xff] %v589
      %622 = vst [vmem:[%s447 + $0xc8] sm:$0xff] %v590
      %623 = vst [vmem:[%s447 + $0xd0] sm:$0xff] %v591
      %624 = vst [vmem:[%s447 + $0xd8] sm:$0xff] %v592
      %625 = vst [vmem:[%s447 + $0xe0] sm:$0xff] %v593
      %626 = vst [vmem:[%s447 + $0xe8] sm:$0xff] %v594
      %627 = vst [vmem:[%s447 + $0xf0] sm:$0xff] %v595
      %628 = vst [vmem:[%s447 + $0xf8] sm:$0xff] %v596
      %v629 = vld [vmem:[%s435] sm:$0xf]
      %v630 = vld [vmem:[%s435 + $0x4] sm:$0xf]
      %v631 = vld [vmem:[%s435 + $0x8] sm:$0xf]
      %v632 = vld [vmem:[%s435 + $0xc] sm:$0xf]
      %v633 = vld [vmem:[%s435 + $0x10] sm:$0xf]
      %v634 = vld [vmem:[%s435 + $0x14] sm:$0xf]
      %v635 = vld [vmem:[%s435 + $0x18] sm:$0xf]
      %v636 = vld [vmem:[%s435 + $0x1c] sm:$0xf]
      %v637 = vld [vmem:[%s435 + $0x20] sm:$0xf]
      %v638 = vld [vmem:[%s435 + $0x24] sm:$0xf]
      %v639 = vld [vmem:[%s435 + $0x28] sm:$0xf]
      %v640 = vld [vmem:[%s435 + $0x2c] sm:$0xf]
      %v641 = vld [vmem:[%s435 + $0x30] sm:$0xf]
      %v642 = vld [vmem:[%s435 + $0x34] sm:$0xf]
      %v643 = vld [vmem:[%s435 + $0x38] sm:$0xf]
      %v644 = vld [vmem:[%s435 + $0x3c] sm:$0xf]
      %v645 = vld [vmem:[%s435 + $0x40] sm:$0xf]
      %v646 = vld [vmem:[%s435 + $0x44] sm:$0xf]
      %v647 = vld [vmem:[%s435 + $0x48] sm:$0xf]
      %v648 = vld [vmem:[%s435 + $0x4c] sm:$0xf]
      %v649 = vld [vmem:[%s435 + $0x50] sm:$0xf]
      %v650 = vld [vmem:[%s435 + $0x54] sm:$0xf]
      %v651 = vld [vmem:[%s435 + $0x58] sm:$0xf]
      %v652 = vld [vmem:[%s435 + $0x5c] sm:$0xf]
      %v653 = vld [vmem:[%s435 + $0x60] sm:$0xf]
      %v654 = vld [vmem:[%s435 + $0x64] sm:$0xf]
      %v655 = vld [vmem:[%s435 + $0x68] sm:$0xf]
      %v656 = vld [vmem:[%s435 + $0x6c] sm:$0xf]
      %v657 = vld [vmem:[%s435 + $0x70] sm:$0xf]
      %v658 = vld [vmem:[%s435 + $0x74] sm:$0xf]
      %v659 = vld [vmem:[%s435 + $0x78] sm:$0xf]
      %v660 = vld [vmem:[%s435 + $0x7c] sm:$0xf]
      %v661 = vunpack.c.l.bf16 %v629
      %v662 = vunpack.c.l.bf16 %v630
      %v663 = vunpack.c.l.bf16 %v631
      %v664 = vunpack.c.l.bf16 %v632
      %v665 = vunpack.c.l.bf16 %v633
      %v666 = vunpack.c.l.bf16 %v634
      %v667 = vunpack.c.l.bf16 %v635
      %v668 = vunpack.c.l.bf16 %v636
      %v669 = vunpack.c.l.bf16 %v637
      %v670 = vunpack.c.l.bf16 %v638
      %v671 = vunpack.c.l.bf16 %v639
      %v672 = vunpack.c.l.bf16 %v640
      %v673 = vunpack.c.l.bf16 %v641
      %v674 = vunpack.c.l.bf16 %v642
      %v675 = vunpack.c.l.bf16 %v643
      %v676 = vunpack.c.l.bf16 %v644
      %v677 = vunpack.c.l.bf16 %v645
      %v678 = vunpack.c.l.bf16 %v646
      %v679 = vunpack.c.l.bf16 %v647
      %v680 = vunpack.c.l.bf16 %v648
      %v681 = vunpack.c.l.bf16 %v649
      %v682 = vunpack.c.l.bf16 %v650
      %v683 = vunpack.c.l.bf16 %v651
      %v684 = vunpack.c.l.bf16 %v652
      %v685 = vunpack.c.l.bf16 %v653
      %v686 = vunpack.c.l.bf16 %v654
      %v687 = vunpack.c.l.bf16 %v655
      %v688 = vunpack.c.l.bf16 %v656
      %v689 = vunpack.c.l.bf16 %v657
      %v690 = vunpack.c.l.bf16 %v658
      %v691 = vunpack.c.l.bf16 %v659
      %v692 = vunpack.c.l.bf16 %v660
      %v693 = vld [vmem:[%s5] sm:$0x1]
      %v695 = vperm.slane %v693, 0
      %v697 = vmul.f32 %v661, %v695
      %v698 = vmul.f32 %v662, %v695
      %v699 = vmul.f32 %v663, %v695
      %v700 = vmul.f32 %v664, %v695
      %v701 = vmul.f32 %v665, %v695
      %v702 = vmul.f32 %v666, %v695
      %v703 = vmul.f32 %v667, %v695
      %v704 = vmul.f32 %v668, %v695
      %v705 = vmul.f32 %v669, %v695
      %v706 = vmul.f32 %v670, %v695
      %v707 = vmul.f32 %v671, %v695
      %v708 = vmul.f32 %v672, %v695
      %v709 = vmul.f32 %v673, %v695
      %v710 = vmul.f32 %v674, %v695
      %v711 = vmul.f32 %v675, %v695
      %v712 = vmul.f32 %v676, %v695
      %v713 = vmul.f32 %v677, %v695
      %v714 = vmul.f32 %v678, %v695
      %v715 = vmul.f32 %v679, %v695
      %v716 = vmul.f32 %v680, %v695
      %v717 = vmul.f32 %v681, %v695
      %v718 = vmul.f32 %v682, %v695
      %v719 = vmul.f32 %v683, %v695
      %v720 = vmul.f32 %v684, %v695
      %v721 = vmul.f32 %v685, %v695
      %v722 = vmul.f32 %v686, %v695
      %v723 = vmul.f32 %v687, %v695
      %v724 = vmul.f32 %v688, %v695
      %v725 = vmul.f32 %v689, %v695
      %v726 = vmul.f32 %v690, %v695
      %v727 = vmul.f32 %v691, %v695
      %v728 = vmul.f32 %v692, %v695
      %v729 = vld [vmem:[%s6] sm:$0x1]
      %v731 = vperm.slane %v729, 0
      %v733 = vadd.f32 %v697, %v731
      %v734 = vadd.f32 %v698, %v731
      %v735 = vadd.f32 %v699, %v731
      %v736 = vadd.f32 %v700, %v731
      %v737 = vadd.f32 %v701, %v731
      %v738 = vadd.f32 %v702, %v731
      %v739 = vadd.f32 %v703, %v731
      %v740 = vadd.f32 %v704, %v731
      %v741 = vadd.f32 %v705, %v731
      %v742 = vadd.f32 %v706, %v731
      %v743 = vadd.f32 %v707, %v731
      %v744 = vadd.f32 %v708, %v731
      %v745 = vadd.f32 %v709, %v731
      %v746 = vadd.f32 %v710, %v731
      %v747 = vadd.f32 %v711, %v731
      %v748 = vadd.f32 %v712, %v731
      %v749 = vadd.f32 %v713, %v731
      %v750 = vadd.f32 %v714, %v731
      %v751 = vadd.f32 %v715, %v731
      %v752 = vadd.f32 %v716, %v731
      %v753 = vadd.f32 %v717, %v731
      %v754 = vadd.f32 %v718, %v731
      %v755 = vadd.f32 %v719, %v731
      %v756 = vadd.f32 %v720, %v731
      %v757 = vadd.f32 %v721, %v731
      %v758 = vadd.f32 %v722, %v731
      %v759 = vadd.f32 %v723, %v731
      %v760 = vadd.f32 %v724, %v731
      %v761 = vadd.f32 %v725, %v731
      %v762 = vadd.f32 %v726, %v731
      %v763 = vadd.f32 %v727, %v731
      %v764 = vadd.f32 %v728, %v731
      %765 = vst [vmem:[%s453] sm:$0xff] %v733
      %766 = vst [vmem:[%s453 + $0x8] sm:$0xff] %v734
      %767 = vst [vmem:[%s453 + $0x10] sm:$0xff] %v735
      %768 = vst [vmem:[%s453 + $0x18] sm:$0xff] %v736
      %769 = vst [vmem:[%s453 + $0x20] sm:$0xff] %v737
      %770 = vst [vmem:[%s453 + $0x28] sm:$0xff] %v738
      %771 = vst [vmem:[%s453 + $0x30] sm:$0xff] %v739
      %772 = vst [vmem:[%s453 + $0x38] sm:$0xff] %v740
      %773 = vst [vmem:[%s453 + $0x40] sm:$0xff] %v741
      %774 = vst [vmem:[%s453 + $0x48] sm:$0xff] %v742
      %775 = vst [vmem:[%s453 + $0x50] sm:$0xff] %v743
      %776 = vst [vmem:[%s453 + $0x58] sm:$0xff] %v744
      %777 = vst [vmem:[%s453 + $0x60] sm:$0xff] %v745
      %778 = vst [vmem:[%s453 + $0x68] sm:$0xff] %v746
      %779 = vst [vmem:[%s453 + $0x70] sm:$0xff] %v747
      %780 = vst [vmem:[%s453 + $0x78] sm:$0xff] %v748
      %781 = vst [vmem:[%s453 + $0x80] sm:$0xff] %v749
      %782 = vst [vmem:[%s453 + $0x88] sm:$0xff] %v750
      %783 = vst [vmem:[%s453 + $0x90] sm:$0xff] %v751
      %784 = vst [vmem:[%s453 + $0x98] sm:$0xff] %v752
      %785 = vst [vmem:[%s453 + $0xa0] sm:$0xff] %v753
      %786 = vst [vmem:[%s453 + $0xa8] sm:$0xff] %v754
      %787 = vst [vmem:[%s453 + $0xb0] sm:$0xff] %v755
      %788 = vst [vmem:[%s453 + $0xb8] sm:$0xff] %v756
      %789 = vst [vmem:[%s453 + $0xc0] sm:$0xff] %v757
      %790 = vst [vmem:[%s453 + $0xc8] sm:$0xff] %v758
      %791 = vst [vmem:[%s453 + $0xd0] sm:$0xff] %v759
      %792 = vst [vmem:[%s453 + $0xd8] sm:$0xff] %v760
      %793 = vst [vmem:[%s453 + $0xe0] sm:$0xff] %v761
      %794 = vst [vmem:[%s453 + $0xe8] sm:$0xff] %v762
      %795 = vst [vmem:[%s453 + $0xf0] sm:$0xff] %v763
      %796 = vst [vmem:[%s453 + $0xf8] sm:$0xff] %v764
      %v797 = vld [vmem:[%s441] sm:$0xf]
      %v798 = vld [vmem:[%s441 + $0x4] sm:$0xf]
      %v799 = vld [vmem:[%s441 + $0x8] sm:$0xf]
      %v800 = vld [vmem:[%s441 + $0xc] sm:$0xf]
      %v801 = vld [vmem:[%s441 + $0x10] sm:$0xf]
      %v802 = vld [vmem:[%s441 + $0x14] sm:$0xf]
      %v803 = vld [vmem:[%s441 + $0x18] sm:$0xf]
      %v804 = vld [vmem:[%s441 + $0x1c] sm:$0xf]
      %v805 = vld [vmem:[%s441 + $0x20] sm:$0xf]
      %v806 = vld [vmem:[%s441 + $0x24] sm:$0xf]
      %v807 = vld [vmem:[%s441 + $0x28] sm:$0xf]
      %v808 = vld [vmem:[%s441 + $0x2c] sm:$0xf]
      %v809 = vld [vmem:[%s441 + $0x30] sm:$0xf]
      %v810 = vld [vmem:[%s441 + $0x34] sm:$0xf]
      %v811 = vld [vmem:[%s441 + $0x38] sm:$0xf]
      %v812 = vld [vmem:[%s441 + $0x3c] sm:$0xf]
      %v813 = vld [vmem:[%s441 + $0x40] sm:$0xf]
      %v814 = vld [vmem:[%s441 + $0x44] sm:$0xf]
      %v815 = vld [vmem:[%s441 + $0x48] sm:$0xf]
      %v816 = vld [vmem:[%s441 + $0x4c] sm:$0xf]
      %v817 = vld [vmem:[%s441 + $0x50] sm:$0xf]
      %v818 = vld [vmem:[%s441 + $0x54] sm:$0xf]
      %v819 = vld [vmem:[%s441 + $0x58] sm:$0xf]
      %v820 = vld [vmem:[%s441 + $0x5c] sm:$0xf]
      %v821 = vld [vmem:[%s441 + $0x60] sm:$0xf]
      %v822 = vld [vmem:[%s441 + $0x64] sm:$0xf]
      %v823 = vld [vmem:[%s441 + $0x68] sm:$0xf]
      %v824 = vld [vmem:[%s441 + $0x6c] sm:$0xf]
      %v825 = vld [vmem:[%s441 + $0x70] sm:$0xf]
      %v826 = vld [vmem:[%s441 + $0x74] sm:$0xf]
      %v827 = vld [vmem:[%s441 + $0x78] sm:$0xf]
      %v828 = vld [vmem:[%s441 + $0x7c] sm:$0xf]
      %v829 = vunpack.c.l.bf16 %v797
      %v830 = vunpack.c.l.bf16 %v798
      %v831 = vunpack.c.l.bf16 %v799
      %v832 = vunpack.c.l.bf16 %v800
      %v833 = vunpack.c.l.bf16 %v801
      %v834 = vunpack.c.l.bf16 %v802
      %v835 = vunpack.c.l.bf16 %v803
      %v836 = vunpack.c.l.bf16 %v804
      %v837 = vunpack.c.l.bf16 %v805
      %v838 = vunpack.c.l.bf16 %v806
      %v839 = vunpack.c.l.bf16 %v807
      %v840 = vunpack.c.l.bf16 %v808
      %v841 = vunpack.c.l.bf16 %v809
      %v842 = vunpack.c.l.bf16 %v810
      %v843 = vunpack.c.l.bf16 %v811
      %v844 = vunpack.c.l.bf16 %v812
      %v845 = vunpack.c.l.bf16 %v813
      %v846 = vunpack.c.l.bf16 %v814
      %v847 = vunpack.c.l.bf16 %v815
      %v848 = vunpack.c.l.bf16 %v816
      %v849 = vunpack.c.l.bf16 %v817
      %v850 = vunpack.c.l.bf16 %v818
      %v851 = vunpack.c.l.bf16 %v819
      %v852 = vunpack.c.l.bf16 %v820
      %v853 = vunpack.c.l.bf16 %v821
      %v854 = vunpack.c.l.bf16 %v822
      %v855 = vunpack.c.l.bf16 %v823
      %v856 = vunpack.c.l.bf16 %v824
      %v857 = vunpack.c.l.bf16 %v825
      %v858 = vunpack.c.l.bf16 %v826
      %v859 = vunpack.c.l.bf16 %v827
      %v860 = vunpack.c.l.bf16 %v828
      %v861 = vld [vmem:[%s7] sm:$0x1]
      %v863 = vperm.slane %v861, 0
      %v865 = vmul.f32 %v829, %v863
      %v866 = vmul.f32 %v830, %v863
      %v867 = vmul.f32 %v831, %v863
      %v868 = vmul.f32 %v832, %v863
      %v869 = vmul.f32 %v833, %v863
      %v870 = vmul.f32 %v834, %v863
      %v871 = vmul.f32 %v835, %v863
      %v872 = vmul.f32 %v836, %v863
      %v873 = vmul.f32 %v837, %v863
      %v874 = vmul.f32 %v838, %v863
      %v875 = vmul.f32 %v839, %v863
      %v876 = vmul.f32 %v840, %v863
      %v877 = vmul.f32 %v841, %v863
      %v878 = vmul.f32 %v842, %v863
      %v879 = vmul.f32 %v843, %v863
      %v880 = vmul.f32 %v844, %v863
      %v881 = vmul.f32 %v845, %v863
      %v882 = vmul.f32 %v846, %v863
      %v883 = vmul.f32 %v847, %v863
      %v884 = vmul.f32 %v848, %v863
      %v885 = vmul.f32 %v849, %v863
      %v886 = vmul.f32 %v850, %v863
      %v887 = vmul.f32 %v851, %v863
      %v888 = vmul.f32 %v852, %v863
      %v889 = vmul.f32 %v853, %v863
      %v890 = vmul.f32 %v854, %v863
      %v891 = vmul.f32 %v855, %v863
      %v892 = vmul.f32 %v856, %v863
      %v893 = vmul.f32 %v857, %v863
      %v894 = vmul.f32 %v858, %v863
      %v895 = vmul.f32 %v859, %v863
      %v896 = vmul.f32 %v860, %v863
      %v897 = vld [vmem:[%s8] sm:$0x1]
      %v899 = vperm.slane %v897, 0
      %v901 = vadd.f32 %v865, %v899
      %v902 = vadd.f32 %v866, %v899
      %v903 = vadd.f32 %v867, %v899
      %v904 = vadd.f32 %v868, %v899
      %v905 = vadd.f32 %v869, %v899
      %v906 = vadd.f32 %v870, %v899
      %v907 = vadd.f32 %v871, %v899
      %v908 = vadd.f32 %v872, %v899
      %v909 = vadd.f32 %v873, %v899
      %v910 = vadd.f32 %v874, %v899
      %v911 = vadd.f32 %v875, %v899
      %v912 = vadd.f32 %v876, %v899
      %v913 = vadd.f32 %v877, %v899
      %v914 = vadd.f32 %v878, %v899
      %v915 = vadd.f32 %v879, %v899
      %v916 = vadd.f32 %v880, %v899
      %v917 = vadd.f32 %v881, %v899
      %v918 = vadd.f32 %v882, %v899
      %v919 = vadd.f32 %v883, %v899
      %v920 = vadd.f32 %v884, %v899
      %v921 = vadd.f32 %v885, %v899
      %v922 = vadd.f32 %v886, %v899
      %v923 = vadd.f32 %v887, %v899
      %v924 = vadd.f32 %v888, %v899
      %v925 = vadd.f32 %v889, %v899
      %v926 = vadd.f32 %v890, %v899
      %v927 = vadd.f32 %v891, %v899
      %v928 = vadd.f32 %v892, %v899
      %v929 = vadd.f32 %v893, %v899
      %v930 = vadd.f32 %v894, %v899
      %v931 = vadd.f32 %v895, %v899
      %v932 = vadd.f32 %v896, %v899
      %933 = vst [vmem:[%s459] sm:$0xff] %v901
      %934 = vst [vmem:[%s459 + $0x8] sm:$0xff] %v902
      %935 = vst [vmem:[%s459 + $0x10] sm:$0xff] %v903
      %936 = vst [vmem:[%s459 + $0x18] sm:$0xff] %v904
      %937 = vst [vmem:[%s459 + $0x20] sm:$0xff] %v905
      %938 = vst [vmem:[%s459 + $0x28] sm:$0xff] %v906
      %939 = vst [vmem:[%s459 + $0x30] sm:$0xff] %v907
      %940 = vst [vmem:[%s459 + $0x38] sm:$0xff] %v908
      %941 = vst [vmem:[%s459 + $0x40] sm:$0xff] %v909
      %942 = vst [vmem:[%s459 + $0x48] sm:$0xff] %v910
      %943 = vst [vmem:[%s459 + $0x50] sm:$0xff] %v911
      %944 = vst [vmem:[%s459 + $0x58] sm:$0xff] %v912
      %945 = vst [vmem:[%s459 + $0x60] sm:$0xff] %v913
      %946 = vst [vmem:[%s459 + $0x68] sm:$0xff] %v914
      %947 = vst [vmem:[%s459 + $0x70] sm:$0xff] %v915
      %948 = vst [vmem:[%s459 + $0x78] sm:$0xff] %v916
      %949 = vst [vmem:[%s459 + $0x80] sm:$0xff] %v917
      %950 = vst [vmem:[%s459 + $0x88] sm:$0xff] %v918
      %951 = vst [vmem:[%s459 + $0x90] sm:$0xff] %v919
      %952 = vst [vmem:[%s459 + $0x98] sm:$0xff] %v920
      %953 = vst [vmem:[%s459 + $0xa0] sm:$0xff] %v921
      %954 = vst [vmem:[%s459 + $0xa8] sm:$0xff] %v922
      %955 = vst [vmem:[%s459 + $0xb0] sm:$0xff] %v923
      %956 = vst [vmem:[%s459 + $0xb8] sm:$0xff] %v924
      %957 = vst [vmem:[%s459 + $0xc0] sm:$0xff] %v925
      %958 = vst [vmem:[%s459 + $0xc8] sm:$0xff] %v926
      %959 = vst [vmem:[%s459 + $0xd0] sm:$0xff] %v927
      %960 = vst [vmem:[%s459 + $0xd8] sm:$0xff] %v928
      %961 = vst [vmem:[%s459 + $0xe0] sm:$0xff] %v929
      %962 = vst [vmem:[%s459 + $0xe8] sm:$0xff] %v930
      %963 = vst [vmem:[%s459 + $0xf0] sm:$0xff] %v931
      %964 = vst [vmem:[%s459 + $0xf8] sm:$0xff] %v932
      %s965 = smul.u32 32, %s23
      %p966 = scmp.lt.s32.totalorder %s965, 63
      %s967 = scalar_select %p966, %s965, 63
      %s968 = smul.addr %s967, 8
      %s969 = scalar_lea.vmem %s9, %s968
      %s970 = smul.u32 32, %s23
      %p971 = scmp.lt.s32.totalorder %s970, 63
      %s972 = scalar_select %p971, %s970, 63
      %s973 = smul.addr %s972, 8
      %s974 = scalar_lea.vmem %s10, %s973
      %s975 = smul.u32 32, %s23
      %p976 = scmp.lt.s32.totalorder %s975, 63
      %s977 = scalar_select %p976, %s975, 63
      %s978 = smul.addr %s977, 8
      %s979 = scalar_lea.vmem %s11, %s978
      // Predicated region
      $region57: #{_lambda_.7} parent=55 // pred_check
        %p980 = pneg %p245
      $region58: #{_lambda_.7} parent=55 // pred_check_branch
        %982 = sbr.rel (%p980) target = $region60
      $region59: #{_lambda_.7} parent=55 // pred_region
        %s983 = smul.u32 32, %s23
      $region60: #{_lambda_.7} parent=55 // pred_fallthru
        _
      // Predicated region
      $region61: #{_lambda_.7} parent=55 // pred_check
        %p984 = pneg %p271
      $region62: #{_lambda_.7} parent=55 // pred_check_branch
        %986 = sbr.rel (%p984) target = $region64
      $region63: #{_lambda_.7} parent=55 // pred_region
        %s987 = smul.u32 32, %s23
      $region64: #{_lambda_.7} parent=55 // pred_fallthru
        _
      // Predicated region
      $region65: #{_lambda_.7} parent=55 // pred_check
        %p988 = pneg %p297
      $region66: #{_lambda_.7} parent=55 // pred_check_branch
        %990 = sbr.rel (%p988) target = $region68
      $region67: #{_lambda_.7} parent=55 // pred_region
        %s991 = smul.u32 32, %s23
      $region68: #{_lambda_.7} parent=55 // pred_fallthru
        _
    $region56: #{_lambda_.7} parent=5 // pred_fallthru
      _
    %p992 = scmp.le.s32.totalorder 2, %s18
    // Predicated region
    $region69: #{_lambda_.7} parent=5 // pred_check
      %p993 = pneg %p992
    $region70: #{_lambda_.7} parent=5 // pred_check_branch
      %995 = sbr.rel (%p993) target = $region72
    $region71: #{_lambda_.7} parent=5 // pred_region
      %s996 = ssub.s32 %s18, 2
      // Predicated region
      $region73: #{_lambda_.7} parent=71 // pred_check
        %p997 = pneg %p251
      $region74: #{_lambda_.7} parent=71 // pred_check_branch
        %999 = sbr.rel (%p997) target = $region76
      $region75: #{_lambda_.7} parent=71 // pred_region
        %s1000 = smul.u32 32, %s24
        %p1001 = scmp.lt.s32.totalorder %s1000, 63
        %s1002 = scalar_select %p1001, %s1000, 63
        %s1003 = smul.addr %s1002, 8
        %s1004 = scalar_lea.vmem %s9, %s1003
      $region76: #{_lambda_.7} parent=71 // pred_fallthru
        _
      // Predicated region
      $region77: #{_lambda_.7} parent=71 // pred_check
        %p1005 = pneg %p277
      $region78: #{_lambda_.7} parent=71 // pred_check_branch
        %1007 = sbr.rel (%p1005) target = $region80
      $region79: #{_lambda_.7} parent=71 // pred_region
        %s1008 = smul.u32 32, %s24
        %p1009 = scmp.lt.s32.totalorder %s1008, 63
        %s1010 = scalar_select %p1009, %s1008, 63
        %s1011 = smul.addr %s1010, 8
        %s1012 = scalar_lea.vmem %s10, %s1011
      $region80: #{_lambda_.7} parent=71 // pred_fallthru
        _
      // Predicated region
      $region81: #{_lambda_.7} parent=71 // pred_check
        %p1013 = pneg %p303
      $region82: #{_lambda_.7} parent=71 // pred_check_branch
        %1015 = sbr.rel (%p1013) target = $region84
      $region83: #{_lambda_.7} parent=71 // pred_region
        %s1016 = smul.u32 32, %s24
        %p1017 = scmp.lt.s32.totalorder %s1016, 63
        %s1018 = scalar_select %p1017, %s1016, 63
        %s1019 = smul.addr %s1018, 8
        %s1020 = scalar_lea.vmem %s11, %s1019
      $region84: #{_lambda_.7} parent=71 // pred_fallthru
        _
    $region72: #{_lambda_.7} parent=5 // pred_fallthru
      _
  $region6: #{_lambda_.7} parent=0 // loop_footer
    %s22 = sadd.s32 1, %s18
  $region7: #{_lambda_.7} parent=0 // loop_footer_branch
    %17 = sbr.rel target = $region3
  $region8: #{_lambda_.7} parent=0 // loop_exit
    _

</llo_original>
